<compile_context>
chip_gen: v6e
topology: v6e:2x2x1
jax: 0.10.0
libtpu: 0.0.40
codegen_flags: <defaults>
</compile_context>

<pallas_src>
import functools

import jax
import jax.numpy as jnp
from jax import lax
from jax.experimental import pallas as pl
from jax.experimental.pallas import tpu as pltpu


def _decoder_block_kernel(xe_ref, w_ref, b_ref, gamma_ref, beta_ref, gmat_ref,
                          mask_ref, out_ref, patch_ref, *, ksize, cin, wp,
                          hpwp_pad, inv_count, eps):
    # xe_ref    : (1, Cin, Lext)      f32  flattened upsampled+padded input (+ zero tail)
    # w_ref     : (Cout, K*K*Cin)     bf16 packed conv weight, contraction order (kh,kw,cin)
    # b_ref     : (Cout, 1)           f32  ConvTranspose2d bias
    # gamma_ref, beta_ref : (Cout, 1) f32  GroupNorm affine
    # gmat_ref  : (Cout, Cout)        f32  gmat[i,j] = 1 iff channels i,j share a group
    # mask_ref  : (1, HpWp_pad)       f32  1.0 on valid (non-pad) flat output positions
    # out_ref   : (1, Cout, HpWp_pad) f32  conv+ReLU+GroupNorm result on the padded flat grid
    # patch_ref : (K*K*Cin, HpWp_pad) f32  VMEM im2col scratch

    # ---- im2col: 49 lane-shifted full-width copies of the flat input ---------------
    # (the flat input carries a zero tail so every tap slice is a full HpWp_pad window;
    #  wrapped/garbage columns only ever land on masked / cropped output positions)
    for kh in range(ksize):
        for kw in range(ksize):
            t = kh * ksize + kw
            s = kh * wp + kw
            patch_ref[t * cin:(t + 1) * cin, :] = xe_ref[0, :, s:s + hpwp_pad]

    # ---- fused 7x7 conv (== ConvTranspose2d s=1,p=3): ONE MXU matmul ---------------
    # bf16 operands, f32 accumulation; contraction depth = K*K*Cin, N = 128-aligned.
    y = jnp.dot(w_ref[...], patch_ref[...].astype(w_ref.dtype),
                preferred_element_type=jnp.float32)              # (Cout, HpWp_pad)
    y = jnp.maximum(y + b_ref[...], 0.0)                         # bias + ReLU (f32)

    # ---- single-pass GroupNorm over the valid output positions ---------------------
    ym = y * mask_ref[...]                                       # zero pad columns + tail
    rs = jnp.sum(ym, axis=1, keepdims=True)                      # (Cout, 1) sum
    rq = jnp.sum(ym * ym, axis=1, keepdims=True)                 # (Cout, 1) sum of squares
    gsum = jnp.dot(gmat_ref[...], rs, preferred_element_type=jnp.float32)
    gsq = jnp.dot(gmat_ref[...], rq, preferred_element_type=jnp.float32)
    mean = gsum * inv_count                                      # per-channel group mean
    var = gsq * inv_count - mean * mean                          # biased group variance
    scale = gamma_ref[...] * lax.rsqrt(var + eps)                # (Cout, 1)
    shift = beta_ref[...] - mean * scale
    out_ref[0] = y * scale + shift                               # ONE dense lane-major store


def decoder_block_forward(x_nchw, w_t, bias, gamma, beta, *, num_groups,
                          kernel_size=7, padding=3, conv_dtype=jnp.bfloat16):
    """Forward pass matching the PyTorch DecoderBlock (group_norm variant).

    x_nchw : (N, Cin, H, W) float32
    w_t    : (Cin, Cout, K, K)  ConvTranspose2d weight (PyTorch layout)
    bias   : (Cout,)            ConvTranspose2d bias
    gamma, beta : (Cout,)       GroupNorm affine parameters
    returns (N, Cout, 2H, 2W) float32
    """
    N, Cin, H, W = x_nchw.shape
    Cout = w_t.shape[1]
    K, P = kernel_size, padding
    H2, W2 = 2 * H, 2 * W
    Hp, Wp = H2 + 2 * P, W2 + 2 * P
    HpWp = Hp * Wp
    HpWp_pad = ((HpWp + 127) // 128) * 128          # lane-dense flat spatial width
    Lext = (K - 1) * Wp + (K - 1) + HpWp_pad        # zero tail keeps every tap slice in-bounds
    KKCin = K * K * Cin
    cper = Cout // num_groups

    # ---- glue (layout / data movement only, stays channel-major NCHW) --------------
    x = x_nchw.astype(jnp.float32)
    x_up = jnp.repeat(jnp.repeat(x, 2, axis=2), 2, axis=3)              # nearest x2
    x_pad = jnp.pad(x_up, ((0, 0), (0, 0), (P, P), (P, P)))             # (N, Cin, Hp, Wp)
    xe = jnp.pad(x_pad.reshape(N, Cin, HpWp),
                 ((0, 0), (0, 0), (0, Lext - HpWp)))                    # flat + zero tail

    # ConvTranspose2d(stride=1) == correlation with flipped weights; pack the
    # contraction axis in (kh, kw, cin) order to match the im2col rows.
    wf = w_t[:, :, ::-1, ::-1]                                          # (Cin, Cout, K, K)
    w2 = jnp.transpose(wf, (1, 2, 3, 0)).reshape(Cout, KKCin).astype(conv_dtype)

    b2 = bias.reshape(Cout, 1).astype(jnp.float32)
    g2 = gamma.reshape(Cout, 1).astype(jnp.float32)
    be2 = beta.reshape(Cout, 1).astype(jnp.float32)

    ch = jnp.arange(Cout) // cper
    gmat = (ch[:, None] == ch[None, :]).astype(jnp.float32)             # (Cout, Cout)

    col = jnp.arange(HpWp_pad)
    vmask = ((col < HpWp) & ((col // Wp) < H2) & ((col % Wp) < W2))
    vmask = vmask.astype(jnp.float32).reshape(1, HpWp_pad)

    kernel = functools.partial(
        _decoder_block_kernel, ksize=K, cin=Cin, wp=Wp, hpwp_pad=HpWp_pad,
        inv_count=1.0 / float(cper * H2 * W2), eps=1e-5)

    out_flat = pl.pallas_call(
        kernel,
        out_shape=jax.ShapeDtypeStruct((N, Cout, HpWp_pad), jnp.float32),
        grid_spec=pltpu.PrefetchScalarGridSpec(
            num_scalar_prefetch=0,
            grid=(N,),
            in_specs=[
                pl.BlockSpec((1, Cin, Lext), lambda n: (n, 0, 0)),
                pl.BlockSpec((Cout, KKCin), lambda n: (0, 0)),   # resident weight
                pl.BlockSpec((Cout, 1), lambda n: (0, 0)),
                pl.BlockSpec((Cout, 1), lambda n: (0, 0)),
                pl.BlockSpec((Cout, 1), lambda n: (0, 0)),
                pl.BlockSpec((Cout, Cout), lambda n: (0, 0)),
                pl.BlockSpec((1, HpWp_pad), lambda n: (0, 0)),
            ],
            out_specs=pl.BlockSpec((1, Cout, HpWp_pad), lambda n: (n, 0, 0)),
            scratch_shapes=[pltpu.VMEM((KKCin, HpWp_pad), jnp.float32)],
        ),
        compiler_params=pltpu.CompilerParams(dimension_semantics=("parallel",)),
    )(xe, w2, b2, g2, be2, gmat, vmask)

    # crop the valid region of the padded flat grid -> NCHW output (tiny wrapper slice)
    out = out_flat[:, :, :HpWp].reshape(N, Cout, Hp, Wp)[:, :, :H2, :W2]
    return out


def _reference(x_nchw, w_t, bias, gamma, beta, num_groups):
    """Pure-JAX f32 reference (upsample -> conv -> ReLU -> GroupNorm)."""
    x = jnp.transpose(x_nchw, (0, 2, 3, 1)).astype(jnp.float32)
    x = jnp.repeat(jnp.repeat(x, 2, axis=1), 2, axis=2)
    w_conv = jnp.transpose(w_t[:, :, ::-1, ::-1], (2, 3, 0, 1)).astype(jnp.float32)
    y = lax.conv_general_dilated(x, w_conv, (1, 1), ((3, 3), (3, 3)),
                                 dimension_numbers=("NHWC", "HWIO", "NHWC"),
                                 precision=lax.Precision.HIGHEST)
    y = jnp.maximum(y + bias.reshape(1, 1, 1, -1), 0.0)
    N, H2, W2, Cout = y.shape
    cper = Cout // num_groups
    yr = y.reshape(N, H2 * W2, num_groups, cper)
    mean = yr.mean(axis=(1, 3), keepdims=True)
    var = ((yr - mean) ** 2).mean(axis=(1, 3), keepdims=True)
    yn = (yr - mean) / jnp.sqrt(var + 1e-5)
    yn = yn.reshape(N, H2, W2, Cout) * gamma.reshape(1, 1, 1, -1) + beta.reshape(1, 1, 1, -1)
    return jnp.transpose(yn, (0, 3, 1, 2))


if __name__ == "__main__":
    # Shapes consistent with the module: in_channels=8, out_channels=16,
    # GroupNorm groups (num_encoders)=4, spatial 8x8 -> 16x16 after the x2 upsample.
    N, Cin, Cout, H, W, K = 2, 8, 16, 8, 8, 7
    num_groups = 4

    key = jax.random.PRNGKey(0)
    kx, kw, kb, kg, kbe = jax.random.split(key, 5)

    x = jax.random.normal(kx, (N, Cin, H, W), jnp.float32)
    # ConvTranspose2d weight layout: (in_channels, out_channels, kH, kW)
    w_t = 0.1 * jax.random.normal(kw, (Cin, Cout, K, K), jnp.float32)
    bias = 0.1 * jax.random.normal(kb, (Cout,), jnp.float32)
    gamma = 1.0 + 0.1 * jax.random.normal(kg, (Cout,), jnp.float32)
    beta = 0.1 * jax.random.normal(kbe, (Cout,), jnp.float32)

    out = decoder_block_forward(x, w_t, bias, gamma, beta, num_groups=num_groups)
    out = jax.block_until_ready(out)
    ref = jax.block_until_ready(_reference(x, w_t, bias, gamma, beta, num_groups))

    assert out.shape == (N, Cout, 2 * H, 2 * W), out.shape
    # bf16 MXU operands over a 392-deep contraction give ~1e-2 worst-case abs error on
    # the ~unit-scale, zero-mean GroupNorm output (rtol alone is meaningless there),
    # so verify with a relative-RMS bound plus a generous elementwise tolerance.
    rms_err = jnp.sqrt(jnp.mean((out - ref) ** 2))
    rms_ref = jnp.sqrt(jnp.mean(ref ** 2)) + 1e-12
    assert float(rms_err / rms_ref) < 2e-2, float(rms_err / rms_ref)
    assert bool(jnp.allclose(out, ref, rtol=5e-2, atol=5e-2)), float(jnp.max(jnp.abs(out - ref)))

    print("KERNEL_OK")
</pallas_src>

<mosaic_0001>
module attributes {stable_mosaic.version = 11 : i64} {
  func.func @_decoder_block_kernel(%arg0: i32, %arg1: memref<1x8x650xf32, #tpu.memory_space<vmem>>, %arg2: memref<16x392xbf16, #tpu.memory_space<vmem>>, %arg3: memref<16x1xf32, #tpu.memory_space<vmem>>, %arg4: memref<16x1xf32, #tpu.memory_space<vmem>>, %arg5: memref<16x1xf32, #tpu.memory_space<vmem>>, %arg6: memref<16x16xf32, #tpu.memory_space<vmem>>, %arg7: memref<1x512xf32, #tpu.memory_space<vmem>>, %arg8: memref<1x16x512xf32, #tpu.memory_space<vmem>>, %arg9: memref<392x512xf32, #tpu.memory_space<vmem>>) attributes {dimension_semantics = [#tpu.dimension_semantics<parallel>], iteration_bounds = array<i64: 2>, scalar_prefetch = 0 : i64, scratch_operands = 1 : i64, tpu.core_type = #tpu.core_type<tc>, window_params = [{transform_indices = @transform_0, window_bounds = array<i64: 1, 8, 650>}, {pipeline_mode = #tpu.pipeline_mode<synchronous>, transform_indices = @transform_1, window_bounds = array<i64: 16, 392>}, {pipeline_mode = #tpu.pipeline_mode<synchronous>, transform_indices = @transform_2, window_bounds = array<i64: 16, 1>}, {pipeline_mode = #tpu.pipeline_mode<synchronous>, transform_indices = @transform_3, window_bounds = array<i64: 16, 1>}, {pipeline_mode = #tpu.pipeline_mode<synchronous>, transform_indices = @transform_4, window_bounds = array<i64: 16, 1>}, {pipeline_mode = #tpu.pipeline_mode<synchronous>, transform_indices = @transform_5, window_bounds = array<i64: 16, 16>}, {pipeline_mode = #tpu.pipeline_mode<synchronous>, transform_indices = @transform_6, window_bounds = array<i64: 1, 512>}, {transform_indices = @transform_7, window_bounds = array<i64: 1, 16, 512>}]} {
    %c0 = arith.constant 0 : index
    %c0_0 = arith.constant 0 : index
    %c0_1 = arith.constant 0 : index
    %0 = vector.load %arg1[%c0, %c0_0, %c0_1] : memref<1x8x650xf32, #tpu.memory_space<vmem>>, vector<1x8x512xf32>
    %1 = vector.shape_cast %0 : vector<1x8x512xf32> to vector<8x512xf32>
    %c0_2 = arith.constant 0 : index
    %c0_3 = arith.constant 0 : index
    %2 = vector.load %arg9[%c0_2, %c0_3] : memref<392x512xf32, #tpu.memory_space<vmem>>, vector<8x512xf32>
    tpu.vector_store %arg9[%c0_2, %c0_3], %1 {strides = array<i32>} : memref<392x512xf32, #tpu.memory_space<vmem>>, vector<8x512xf32>,
    %c0_4 = arith.constant 0 : index
    %c0_5 = arith.constant 0 : index
    %c1 = arith.constant 1 : index
    %3 = vector.load %arg1[%c0_4, %c0_5, %c1] : memref<1x8x650xf32, #tpu.memory_space<vmem>>, vector<1x8x512xf32>
    %4 = vector.shape_cast %3 : vector<1x8x512xf32> to vector<8x512xf32>
    %c8 = arith.constant 8 : index
    %c0_6 = arith.constant 0 : index
    %5 = vector.load %arg9[%c8, %c0_6] : memref<392x512xf32, #tpu.memory_space<vmem>>, vector<8x512xf32>
    tpu.vector_store %arg9[%c8, %c0_6], %4 {strides = array<i32>} : memref<392x512xf32, #tpu.memory_space<vmem>>, vector<8x512xf32>,
    %c0_7 = arith.constant 0 : index
    %c0_8 = arith.constant 0 : index
    %c2 = arith.constant 2 : index
    %6 = vector.load %arg1[%c0_7, %c0_8, %c2] : memref<1x8x650xf32, #tpu.memory_space<vmem>>, vector<1x8x512xf32>
    %7 = vector.shape_cast %6 : vector<1x8x512xf32> to vector<8x512xf32>
    %c16 = arith.constant 16 : index
    %c0_9 = arith.constant 0 : index
    %8 = vector.load %arg9[%c16, %c0_9] : memref<392x512xf32, #tpu.memory_space<vmem>>, vector<8x512xf32>
    tpu.vector_store %arg9[%c16, %c0_9], %7 {strides = array<i32>} : memref<392x512xf32, #tpu.memory_space<vmem>>, vector<8x512xf32>,
    %c0_10 = arith.constant 0 : index
    %c0_11 = arith.constant 0 : index
    %c3 = arith.constant 3 : index
    %9 = vector.load %arg1[%c0_10, %c0_11, %c3] : memref<1x8x650xf32, #tpu.memory_space<vmem>>, vector<1x8x512xf32>
    %10 = vector.shape_cast %9 : vector<1x8x512xf32> to vector<8x512xf32>
    %c24 = arith.constant 24 : index
    %c0_12 = arith.constant 0 : index
    %11 = vector.load %arg9[%c24, %c0_12] : memref<392x512xf32, #tpu.memory_space<vmem>>, vector<8x512xf32>
    tpu.vector_store %arg9[%c24, %c0_12], %10 {strides = array<i32>} : memref<392x512xf32, #tpu.memory_space<vmem>>, vector<8x512xf32>,
    %c0_13 = arith.constant 0 : index
    %c0_14 = arith.constant 0 : index
    %c4 = arith.constant 4 : index
    %12 = vector.load %arg1[%c0_13, %c0_14, %c4] : memref<1x8x650xf32, #tpu.memory_space<vmem>>, vector<1x8x512xf32>
    %13 = vector.shape_cast %12 : vector<1x8x512xf32> to vector<8x512xf32>
    %c32 = arith.constant 32 : index
    %c0_15 = arith.constant 0 : index
    %14 = vector.load %arg9[%c32, %c0_15] : memref<392x512xf32, #tpu.memory_space<vmem>>, vector<8x512xf32>
    tpu.vector_store %arg9[%c32, %c0_15], %13 {strides = array<i32>} : memref<392x512xf32, #tpu.memory_space<vmem>>, vector<8x512xf32>,
    %c0_16 = arith.constant 0 : index
    %c0_17 = arith.constant 0 : index
    %c5 = arith.constant 5 : index
    %15 = vector.load %arg1[%c0_16, %c0_17, %c5] : memref<1x8x650xf32, #tpu.memory_space<vmem>>, vector<1x8x512xf32>
    %16 = vector.shape_cast %15 : vector<1x8x512xf32> to vector<8x512xf32>
    %c40 = arith.constant 40 : index
    %c0_18 = arith.constant 0 : index
    %17 = vector.load %arg9[%c40, %c0_18] : memref<392x512xf32, #tpu.memory_space<vmem>>, vector<8x512xf32>
    tpu.vector_store %arg9[%c40, %c0_18], %16 {strides = array<i32>} : memref<392x512xf32, #tpu.memory_space<vmem>>, vector<8x512xf32>,
    %c0_19 = arith.constant 0 : index
    %c0_20 = arith.constant 0 : index
    %c6 = arith.constant 6 : index
    %18 = vector.load %arg1[%c0_19, %c0_20, %c6] : memref<1x8x650xf32, #tpu.memory_space<vmem>>, vector<1x8x512xf32>
    %19 = vector.shape_cast %18 : vector<1x8x512xf32> to vector<8x512xf32>
    %c48 = arith.constant 48 : index
    %c0_21 = arith.constant 0 : index
    %20 = vector.load %arg9[%c48, %c0_21] : memref<392x512xf32, #tpu.memory_space<vmem>>, vector<8x512xf32>
    tpu.vector_store %arg9[%c48, %c0_21], %19 {strides = array<i32>} : memref<392x512xf32, #tpu.memory_space<vmem>>, vector<8x512xf32>,
    %c0_22 = arith.constant 0 : index
    %c0_23 = arith.constant 0 : index
    %c22 = arith.constant 22 : index
    %21 = vector.load %arg1[%c0_22, %c0_23, %c22] : memref<1x8x650xf32, #tpu.memory_space<vmem>>, vector<1x8x512xf32>
    %22 = vector.shape_cast %21 : vector<1x8x512xf32> to vector<8x512xf32>
    %c56 = arith.constant 56 : index
    %c0_24 = arith.constant 0 : index
    %23 = vector.load %arg9[%c56, %c0_24] : memref<392x512xf32, #tpu.memory_space<vmem>>, vector<8x512xf32>
    tpu.vector_store %arg9[%c56, %c0_24], %22 {strides = array<i32>} : memref<392x512xf32, #tpu.memory_space<vmem>>, vector<8x512xf32>,
    %c0_25 = arith.constant 0 : index
    %c0_26 = arith.constant 0 : index
    %c23 = arith.constant 23 : index
    %24 = vector.load %arg1[%c0_25, %c0_26, %c23] : memref<1x8x650xf32, #tpu.memory_space<vmem>>, vector<1x8x512xf32>
    %25 = vector.shape_cast %24 : vector<1x8x512xf32> to vector<8x512xf32>
    %c64 = arith.constant 64 : index
    %c0_27 = arith.constant 0 : index
    %26 = vector.load %arg9[%c64, %c0_27] : memref<392x512xf32, #tpu.memory_space<vmem>>, vector<8x512xf32>
    tpu.vector_store %arg9[%c64, %c0_27], %25 {strides = array<i32>} : memref<392x512xf32, #tpu.memory_space<vmem>>, vector<8x512xf32>,
    %c0_28 = arith.constant 0 : index
    %c0_29 = arith.constant 0 : index
    %c24_30 = arith.constant 24 : index
    %27 = vector.load %arg1[%c0_28, %c0_29, %c24_30] : memref<1x8x650xf32, #tpu.memory_space<vmem>>, vector<1x8x512xf32>
    %28 = vector.shape_cast %27 : vector<1x8x512xf32> to vector<8x512xf32>
    %c72 = arith.constant 72 : index
    %c0_31 = arith.constant 0 : index
    %29 = vector.load %arg9[%c72, %c0_31] : memref<392x512xf32, #tpu.memory_space<vmem>>, vector<8x512xf32>
    tpu.vector_store %arg9[%c72, %c0_31], %28 {strides = array<i32>} : memref<392x512xf32, #tpu.memory_space<vmem>>, vector<8x512xf32>,
    %c0_32 = arith.constant 0 : index
    %c0_33 = arith.constant 0 : index
    %c25 = arith.constant 25 : index
    %30 = vector.load %arg1[%c0_32, %c0_33, %c25] : memref<1x8x650xf32, #tpu.memory_space<vmem>>, vector<1x8x512xf32>
    %31 = vector.shape_cast %30 : vector<1x8x512xf32> to vector<8x512xf32>
    %c80 = arith.constant 80 : index
    %c0_34 = arith.constant 0 : index
    %32 = vector.load %arg9[%c80, %c0_34] : memref<392x512xf32, #tpu.memory_space<vmem>>, vector<8x512xf32>
    tpu.vector_store %arg9[%c80, %c0_34], %31 {strides = array<i32>} : memref<392x512xf32, #tpu.memory_space<vmem>>, vector<8x512xf32>,
    %c0_35 = arith.constant 0 : index
    %c0_36 = arith.constant 0 : index
    %c26 = arith.constant 26 : index
    %33 = vector.load %arg1[%c0_35, %c0_36, %c26] : memref<1x8x650xf32, #tpu.memory_space<vmem>>, vector<1x8x512xf32>
    %34 = vector.shape_cast %33 : vector<1x8x512xf32> to vector<8x512xf32>
    %c88 = arith.constant 88 : index
    %c0_37 = arith.constant 0 : index
    %35 = vector.load %arg9[%c88, %c0_37] : memref<392x512xf32, #tpu.memory_space<vmem>>, vector<8x512xf32>
    tpu.vector_store %arg9[%c88, %c0_37], %34 {strides = array<i32>} : memref<392x512xf32, #tpu.memory_space<vmem>>, vector<8x512xf32>,
    %c0_38 = arith.constant 0 : index
    %c0_39 = arith.constant 0 : index
    %c27 = arith.constant 27 : index
    %36 = vector.load %arg1[%c0_38, %c0_39, %c27] : memref<1x8x650xf32, #tpu.memory_space<vmem>>, vector<1x8x512xf32>
    %37 = vector.shape_cast %36 : vector<1x8x512xf32> to vector<8x512xf32>
    %c96 = arith.constant 96 : index
    %c0_40 = arith.constant 0 : index
    %38 = vector.load %arg9[%c96, %c0_40] : memref<392x512xf32, #tpu.memory_space<vmem>>, vector<8x512xf32>
    tpu.vector_store %arg9[%c96, %c0_40], %37 {strides = array<i32>} : memref<392x512xf32, #tpu.memory_space<vmem>>, vector<8x512xf32>,
    %c0_41 = arith.constant 0 : index
    %c0_42 = arith.constant 0 : index
    %c28 = arith.constant 28 : index
    %39 = vector.load %arg1[%c0_41, %c0_42, %c28] : memref<1x8x650xf32, #tpu.memory_space<vmem>>, vector<1x8x512xf32>
    %40 = vector.shape_cast %39 : vector<1x8x512xf32> to vector<8x512xf32>
    %c104 = arith.constant 104 : index
    %c0_43 = arith.constant 0 : index
    %41 = vector.load %arg9[%c104, %c0_43] : memref<392x512xf32, #tpu.memory_space<vmem>>, vector<8x512xf32>
    tpu.vector_store %arg9[%c104, %c0_43], %40 {strides = array<i32>} : memref<392x512xf32, #tpu.memory_space<vmem>>, vector<8x512xf32>,
    %c0_44 = arith.constant 0 : index
    %c0_45 = arith.constant 0 : index
    %c44 = arith.constant 44 : index
    %42 = vector.load %arg1[%c0_44, %c0_45, %c44] : memref<1x8x650xf32, #tpu.memory_space<vmem>>, vector<1x8x512xf32>
    %43 = vector.shape_cast %42 : vector<1x8x512xf32> to vector<8x512xf32>
    %c112 = arith.constant 112 : index
    %c0_46 = arith.constant 0 : index
    %44 = vector.load %arg9[%c112, %c0_46] : memref<392x512xf32, #tpu.memory_space<vmem>>, vector<8x512xf32>
    tpu.vector_store %arg9[%c112, %c0_46], %43 {strides = array<i32>} : memref<392x512xf32, #tpu.memory_space<vmem>>, vector<8x512xf32>,
    %c0_47 = arith.constant 0 : index
    %c0_48 = arith.constant 0 : index
    %c45 = arith.constant 45 : index
    %45 = vector.load %arg1[%c0_47, %c0_48, %c45] : memref<1x8x650xf32, #tpu.memory_space<vmem>>, vector<1x8x512xf32>
    %46 = vector.shape_cast %45 : vector<1x8x512xf32> to vector<8x512xf32>
    %c120 = arith.constant 120 : index
    %c0_49 = arith.constant 0 : index
    %47 = vector.load %arg9[%c120, %c0_49] : memref<392x512xf32, #tpu.memory_space<vmem>>, vector<8x512xf32>
    tpu.vector_store %arg9[%c120, %c0_49], %46 {strides = array<i32>} : memref<392x512xf32, #tpu.memory_space<vmem>>, vector<8x512xf32>,
    %c0_50 = arith.constant 0 : index
    %c0_51 = arith.constant 0 : index
    %c46 = arith.constant 46 : index
    %48 = vector.load %arg1[%c0_50, %c0_51, %c46] : memref<1x8x650xf32, #tpu.memory_space<vmem>>, vector<1x8x512xf32>
    %49 = vector.shape_cast %48 : vector<1x8x512xf32> to vector<8x512xf32>
    %c128 = arith.constant 128 : index
    %c0_52 = arith.constant 0 : index
    %50 = vector.load %arg9[%c128, %c0_52] : memref<392x512xf32, #tpu.memory_space<vmem>>, vector<8x512xf32>
    tpu.vector_store %arg9[%c128, %c0_52], %49 {strides = array<i32>} : memref<392x512xf32, #tpu.memory_space<vmem>>, vector<8x512xf32>,
    %c0_53 = arith.constant 0 : index
    %c0_54 = arith.constant 0 : index
    %c47 = arith.constant 47 : index
    %51 = vector.load %arg1[%c0_53, %c0_54, %c47] : memref<1x8x650xf32, #tpu.memory_space<vmem>>, vector<1x8x512xf32>
    %52 = vector.shape_cast %51 : vector<1x8x512xf32> to vector<8x512xf32>
    %c136 = arith.constant 136 : index
    %c0_55 = arith.constant 0 : index
    %53 = vector.load %arg9[%c136, %c0_55] : memref<392x512xf32, #tpu.memory_space<vmem>>, vector<8x512xf32>
    tpu.vector_store %arg9[%c136, %c0_55], %52 {strides = array<i32>} : memref<392x512xf32, #tpu.memory_space<vmem>>, vector<8x512xf32>,
    %c0_56 = arith.constant 0 : index
    %c0_57 = arith.constant 0 : index
    %c48_58 = arith.constant 48 : index
    %54 = vector.load %arg1[%c0_56, %c0_57, %c48_58] : memref<1x8x650xf32, #tpu.memory_space<vmem>>, vector<1x8x512xf32>
    %55 = vector.shape_cast %54 : vector<1x8x512xf32> to vector<8x512xf32>
    %c144 = arith.constant 144 : index
    %c0_59 = arith.constant 0 : index
    %56 = vector.load %arg9[%c144, %c0_59] : memref<392x512xf32, #tpu.memory_space<vmem>>, vector<8x512xf32>
    tpu.vector_store %arg9[%c144, %c0_59], %55 {strides = array<i32>} : memref<392x512xf32, #tpu.memory_space<vmem>>, vector<8x512xf32>,
    %c0_60 = arith.constant 0 : index
    %c0_61 = arith.constant 0 : index
    %c49 = arith.constant 49 : index
    %57 = vector.load %arg1[%c0_60, %c0_61, %c49] : memref<1x8x650xf32, #tpu.memory_space<vmem>>, vector<1x8x512xf32>
    %58 = vector.shape_cast %57 : vector<1x8x512xf32> to vector<8x512xf32>
    %c152 = arith.constant 152 : index
    %c0_62 = arith.constant 0 : index
    %59 = vector.load %arg9[%c152, %c0_62] : memref<392x512xf32, #tpu.memory_space<vmem>>, vector<8x512xf32>
    tpu.vector_store %arg9[%c152, %c0_62], %58 {strides = array<i32>} : memref<392x512xf32, #tpu.memory_space<vmem>>, vector<8x512xf32>,
    %c0_63 = arith.constant 0 : index
    %c0_64 = arith.constant 0 : index
    %c50 = arith.constant 50 : index
    %60 = vector.load %arg1[%c0_63, %c0_64, %c50] : memref<1x8x650xf32, #tpu.memory_space<vmem>>, vector<1x8x512xf32>
    %61 = vector.shape_cast %60 : vector<1x8x512xf32> to vector<8x512xf32>
    %c160 = arith.constant 160 : index
    %c0_65 = arith.constant 0 : index
    %62 = vector.load %arg9[%c160, %c0_65] : memref<392x512xf32, #tpu.memory_space<vmem>>, vector<8x512xf32>
    tpu.vector_store %arg9[%c160, %c0_65], %61 {strides = array<i32>} : memref<392x512xf32, #tpu.memory_space<vmem>>, vector<8x512xf32>,
    %c0_66 = arith.constant 0 : index
    %c0_67 = arith.constant 0 : index
    %c66 = arith.constant 66 : index
    %63 = vector.load %arg1[%c0_66, %c0_67, %c66] : memref<1x8x650xf32, #tpu.memory_space<vmem>>, vector<1x8x512xf32>
    %64 = vector.shape_cast %63 : vector<1x8x512xf32> to vector<8x512xf32>
    %c168 = arith.constant 168 : index
    %c0_68 = arith.constant 0 : index
    %65 = vector.load %arg9[%c168, %c0_68] : memref<392x512xf32, #tpu.memory_space<vmem>>, vector<8x512xf32>
    tpu.vector_store %arg9[%c168, %c0_68], %64 {strides = array<i32>} : memref<392x512xf32, #tpu.memory_space<vmem>>, vector<8x512xf32>,
    %c0_69 = arith.constant 0 : index
    %c0_70 = arith.constant 0 : index
    %c67 = arith.constant 67 : index
    %66 = vector.load %arg1[%c0_69, %c0_70, %c67] : memref<1x8x650xf32, #tpu.memory_space<vmem>>, vector<1x8x512xf32>
    %67 = vector.shape_cast %66 : vector<1x8x512xf32> to vector<8x512xf32>
    %c176 = arith.constant 176 : index
    %c0_71 = arith.constant 0 : index
    %68 = vector.load %arg9[%c176, %c0_71] : memref<392x512xf32, #tpu.memory_space<vmem>>, vector<8x512xf32>
    tpu.vector_store %arg9[%c176, %c0_71], %67 {strides = array<i32>} : memref<392x512xf32, #tpu.memory_space<vmem>>, vector<8x512xf32>,
    %c0_72 = arith.constant 0 : index
    %c0_73 = arith.constant 0 : index
    %c68 = arith.constant 68 : index
    %69 = vector.load %arg1[%c0_72, %c0_73, %c68] : memref<1x8x650xf32, #tpu.memory_space<vmem>>, vector<1x8x512xf32>
    %70 = vector.shape_cast %69 : vector<1x8x512xf32> to vector<8x512xf32>
    %c184 = arith.constant 184 : index
    %c0_74 = arith.constant 0 : index
    %71 = vector.load %arg9[%c184, %c0_74] : memref<392x512xf32, #tpu.memory_space<vmem>>, vector<8x512xf32>
    tpu.vector_store %arg9[%c184, %c0_74], %70 {strides = array<i32>} : memref<392x512xf32, #tpu.memory_space<vmem>>, vector<8x512xf32>,
    %c0_75 = arith.constant 0 : index
    %c0_76 = arith.constant 0 : index
    %c69 = arith.constant 69 : index
    %72 = vector.load %arg1[%c0_75, %c0_76, %c69] : memref<1x8x650xf32, #tpu.memory_space<vmem>>, vector<1x8x512xf32>
    %73 = vector.shape_cast %72 : vector<1x8x512xf32> to vector<8x512xf32>
    %c192 = arith.constant 192 : index
    %c0_77 = arith.constant 0 : index
    %74 = vector.load %arg9[%c192, %c0_77] : memref<392x512xf32, #tpu.memory_space<vmem>>, vector<8x512xf32>
    tpu.vector_store %arg9[%c192, %c0_77], %73 {strides = array<i32>} : memref<392x512xf32, #tpu.memory_space<vmem>>, vector<8x512xf32>,
    %c0_78 = arith.constant 0 : index
    %c0_79 = arith.constant 0 : index
    %c70 = arith.constant 70 : index
    %75 = vector.load %arg1[%c0_78, %c0_79, %c70] : memref<1x8x650xf32, #tpu.memory_space<vmem>>, vector<1x8x512xf32>
    %76 = vector.shape_cast %75 : vector<1x8x512xf32> to vector<8x512xf32>
    %c200 = arith.constant 200 : index
    %c0_80 = arith.constant 0 : index
    %77 = vector.load %arg9[%c200, %c0_80] : memref<392x512xf32, #tpu.memory_space<vmem>>, vector<8x512xf32>
    tpu.vector_store %arg9[%c200, %c0_80], %76 {strides = array<i32>} : memref<392x512xf32, #tpu.memory_space<vmem>>, vector<8x512xf32>,
    %c0_81 = arith.constant 0 : index
    %c0_82 = arith.constant 0 : index
    %c71 = arith.constant 71 : index
    %78 = vector.load %arg1[%c0_81, %c0_82, %c71] : memref<1x8x650xf32, #tpu.memory_space<vmem>>, vector<1x8x512xf32>
    %79 = vector.shape_cast %78 : vector<1x8x512xf32> to vector<8x512xf32>
    %c208 = arith.constant 208 : index
    %c0_83 = arith.constant 0 : index
    %80 = vector.load %arg9[%c208, %c0_83] : memref<392x512xf32, #tpu.memory_space<vmem>>, vector<8x512xf32>
    tpu.vector_store %arg9[%c208, %c0_83], %79 {strides = array<i32>} : memref<392x512xf32, #tpu.memory_space<vmem>>, vector<8x512xf32>,
    %c0_84 = arith.constant 0 : index
    %c0_85 = arith.constant 0 : index
    %c72_86 = arith.constant 72 : index
    %81 = vector.load %arg1[%c0_84, %c0_85, %c72_86] : memref<1x8x650xf32, #tpu.memory_space<vmem>>, vector<1x8x512xf32>
    %82 = vector.shape_cast %81 : vector<1x8x512xf32> to vector<8x512xf32>
    %c216 = arith.constant 216 : index
    %c0_87 = arith.constant 0 : index
    %83 = vector.load %arg9[%c216, %c0_87] : memref<392x512xf32, #tpu.memory_space<vmem>>, vector<8x512xf32>
    tpu.vector_store %arg9[%c216, %c0_87], %82 {strides = array<i32>} : memref<392x512xf32, #tpu.memory_space<vmem>>, vector<8x512xf32>,
    %c0_88 = arith.constant 0 : index
    %c0_89 = arith.constant 0 : index
    %c88_90 = arith.constant 88 : index
    %84 = vector.load %arg1[%c0_88, %c0_89, %c88_90] : memref<1x8x650xf32, #tpu.memory_space<vmem>>, vector<1x8x512xf32>
    %85 = vector.shape_cast %84 : vector<1x8x512xf32> to vector<8x512xf32>
    %c224 = arith.constant 224 : index
    %c0_91 = arith.constant 0 : index
    %86 = vector.load %arg9[%c224, %c0_91] : memref<392x512xf32, #tpu.memory_space<vmem>>, vector<8x512xf32>
    tpu.vector_store %arg9[%c224, %c0_91], %85 {strides = array<i32>} : memref<392x512xf32, #tpu.memory_space<vmem>>, vector<8x512xf32>,
    %c0_92 = arith.constant 0 : index
    %c0_93 = arith.constant 0 : index
    %c89 = arith.constant 89 : index
    %87 = vector.load %arg1[%c0_92, %c0_93, %c89] : memref<1x8x650xf32, #tpu.memory_space<vmem>>, vector<1x8x512xf32>
    %88 = vector.shape_cast %87 : vector<1x8x512xf32> to vector<8x512xf32>
    %c232 = arith.constant 232 : index
    %c0_94 = arith.constant 0 : index
    %89 = vector.load %arg9[%c232, %c0_94] : memref<392x512xf32, #tpu.memory_space<vmem>>, vector<8x512xf32>
    tpu.vector_store %arg9[%c232, %c0_94], %88 {strides = array<i32>} : memref<392x512xf32, #tpu.memory_space<vmem>>, vector<8x512xf32>,
    %c0_95 = arith.constant 0 : index
    %c0_96 = arith.constant 0 : index
    %c90 = arith.constant 90 : index
    %90 = vector.load %arg1[%c0_95, %c0_96, %c90] : memref<1x8x650xf32, #tpu.memory_space<vmem>>, vector<1x8x512xf32>
    %91 = vector.shape_cast %90 : vector<1x8x512xf32> to vector<8x512xf32>
    %c240 = arith.constant 240 : index
    %c0_97 = arith.constant 0 : index
    %92 = vector.load %arg9[%c240, %c0_97] : memref<392x512xf32, #tpu.memory_space<vmem>>, vector<8x512xf32>
    tpu.vector_store %arg9[%c240, %c0_97], %91 {strides = array<i32>} : memref<392x512xf32, #tpu.memory_space<vmem>>, vector<8x512xf32>,
    %c0_98 = arith.constant 0 : index
    %c0_99 = arith.constant 0 : index
    %c91 = arith.constant 91 : index
    %93 = vector.load %arg1[%c0_98, %c0_99, %c91] : memref<1x8x650xf32, #tpu.memory_space<vmem>>, vector<1x8x512xf32>
    %94 = vector.shape_cast %93 : vector<1x8x512xf32> to vector<8x512xf32>
    %c248 = arith.constant 248 : index
    %c0_100 = arith.constant 0 : index
    %95 = vector.load %arg9[%c248, %c0_100] : memref<392x512xf32, #tpu.memory_space<vmem>>, vector<8x512xf32>
    tpu.vector_store %arg9[%c248, %c0_100], %94 {strides = array<i32>} : memref<392x512xf32, #tpu.memory_space<vmem>>, vector<8x512xf32>,
    %c0_101 = arith.constant 0 : index
    %c0_102 = arith.constant 0 : index
    %c92 = arith.constant 92 : index
    %96 = vector.load %arg1[%c0_101, %c0_102, %c92] : memref<1x8x650xf32, #tpu.memory_space<vmem>>, vector<1x8x512xf32>
    %97 = vector.shape_cast %96 : vector<1x8x512xf32> to vector<8x512xf32>
    %c256 = arith.constant 256 : index
    %c0_103 = arith.constant 0 : index
    %98 = vector.load %arg9[%c256, %c0_103] : memref<392x512xf32, #tpu.memory_space<vmem>>, vector<8x512xf32>
    tpu.vector_store %arg9[%c256, %c0_103], %97 {strides = array<i32>} : memref<392x512xf32, #tpu.memory_space<vmem>>, vector<8x512xf32>,
    %c0_104 = arith.constant 0 : index
    %c0_105 = arith.constant 0 : index
    %c93 = arith.constant 93 : index
    %99 = vector.load %arg1[%c0_104, %c0_105, %c93] : memref<1x8x650xf32, #tpu.memory_space<vmem>>, vector<1x8x512xf32>
    %100 = vector.shape_cast %99 : vector<1x8x512xf32> to vector<8x512xf32>
    %c264 = arith.constant 264 : index
    %c0_106 = arith.constant 0 : index
    %101 = vector.load %arg9[%c264, %c0_106] : memref<392x512xf32, #tpu.memory_space<vmem>>, vector<8x512xf32>
    tpu.vector_store %arg9[%c264, %c0_106], %100 {strides = array<i32>} : memref<392x512xf32, #tpu.memory_space<vmem>>, vector<8x512xf32>,
    %c0_107 = arith.constant 0 : index
    %c0_108 = arith.constant 0 : index
    %c94 = arith.constant 94 : index
    %102 = vector.load %arg1[%c0_107, %c0_108, %c94] : memref<1x8x650xf32, #tpu.memory_space<vmem>>, vector<1x8x512xf32>
    %103 = vector.shape_cast %102 : vector<1x8x512xf32> to vector<8x512xf32>
    %c272 = arith.constant 272 : index
    %c0_109 = arith.constant 0 : index
    %104 = vector.load %arg9[%c272, %c0_109] : memref<392x512xf32, #tpu.memory_space<vmem>>, vector<8x512xf32>
    tpu.vector_store %arg9[%c272, %c0_109], %103 {strides = array<i32>} : memref<392x512xf32, #tpu.memory_space<vmem>>, vector<8x512xf32>,
    %c0_110 = arith.constant 0 : index
    %c0_111 = arith.constant 0 : index
    %c110 = arith.constant 110 : index
    %105 = vector.load %arg1[%c0_110, %c0_111, %c110] : memref<1x8x650xf32, #tpu.memory_space<vmem>>, vector<1x8x512xf32>
    %106 = vector.shape_cast %105 : vector<1x8x512xf32> to vector<8x512xf32>
    %c280 = arith.constant 280 : index
    %c0_112 = arith.constant 0 : index
    %107 = vector.load %arg9[%c280, %c0_112] : memref<392x512xf32, #tpu.memory_space<vmem>>, vector<8x512xf32>
    tpu.vector_store %arg9[%c280, %c0_112], %106 {strides = array<i32>} : memref<392x512xf32, #tpu.memory_space<vmem>>, vector<8x512xf32>,
    %c0_113 = arith.constant 0 : index
    %c0_114 = arith.constant 0 : index
    %c111 = arith.constant 111 : index
    %108 = vector.load %arg1[%c0_113, %c0_114, %c111] : memref<1x8x650xf32, #tpu.memory_space<vmem>>, vector<1x8x512xf32>
    %109 = vector.shape_cast %108 : vector<1x8x512xf32> to vector<8x512xf32>
    %c288 = arith.constant 288 : index
    %c0_115 = arith.constant 0 : index
    %110 = vector.load %arg9[%c288, %c0_115] : memref<392x512xf32, #tpu.memory_space<vmem>>, vector<8x512xf32>
    tpu.vector_store %arg9[%c288, %c0_115], %109 {strides = array<i32>} : memref<392x512xf32, #tpu.memory_space<vmem>>, vector<8x512xf32>,
    %c0_116 = arith.constant 0 : index
    %c0_117 = arith.constant 0 : index
    %c112_118 = arith.constant 112 : index
    %111 = vector.load %arg1[%c0_116, %c0_117, %c112_118] : memref<1x8x650xf32, #tpu.memory_space<vmem>>, vector<1x8x512xf32>
    %112 = vector.shape_cast %111 : vector<1x8x512xf32> to vector<8x512xf32>
    %c296 = arith.constant 296 : index
    %c0_119 = arith.constant 0 : index
    %113 = vector.load %arg9[%c296, %c0_119] : memref<392x512xf32, #tpu.memory_space<vmem>>, vector<8x512xf32>
    tpu.vector_store %arg9[%c296, %c0_119], %112 {strides = array<i32>} : memref<392x512xf32, #tpu.memory_space<vmem>>, vector<8x512xf32>,
    %c0_120 = arith.constant 0 : index
    %c0_121 = arith.constant 0 : index
    %c113 = arith.constant 113 : index
    %114 = vector.load %arg1[%c0_120, %c0_121, %c113] : memref<1x8x650xf32, #tpu.memory_space<vmem>>, vector<1x8x512xf32>
    %115 = vector.shape_cast %114 : vector<1x8x512xf32> to vector<8x512xf32>
    %c304 = arith.constant 304 : index
    %c0_122 = arith.constant 0 : index
    %116 = vector.load %arg9[%c304, %c0_122] : memref<392x512xf32, #tpu.memory_space<vmem>>, vector<8x512xf32>
    tpu.vector_store %arg9[%c304, %c0_122], %115 {strides = array<i32>} : memref<392x512xf32, #tpu.memory_space<vmem>>, vector<8x512xf32>,
    %c0_123 = arith.constant 0 : index
    %c0_124 = arith.constant 0 : index
    %c114 = arith.constant 114 : index
    %117 = vector.load %arg1[%c0_123, %c0_124, %c114] : memref<1x8x650xf32, #tpu.memory_space<vmem>>, vector<1x8x512xf32>
    %118 = vector.shape_cast %117 : vector<1x8x512xf32> to vector<8x512xf32>
    %c312 = arith.constant 312 : index
    %c0_125 = arith.constant 0 : index
    %119 = vector.load %arg9[%c312, %c0_125] : memref<392x512xf32, #tpu.memory_space<vmem>>, vector<8x512xf32>
    tpu.vector_store %arg9[%c312, %c0_125], %118 {strides = array<i32>} : memref<392x512xf32, #tpu.memory_space<vmem>>, vector<8x512xf32>,
    %c0_126 = arith.constant 0 : index
    %c0_127 = arith.constant 0 : index
    %c115 = arith.constant 115 : index
    %120 = vector.load %arg1[%c0_126, %c0_127, %c115] : memref<1x8x650xf32, #tpu.memory_space<vmem>>, vector<1x8x512xf32>
    %121 = vector.shape_cast %120 : vector<1x8x512xf32> to vector<8x512xf32>
    %c320 = arith.constant 320 : index
    %c0_128 = arith.constant 0 : index
    %122 = vector.load %arg9[%c320, %c0_128] : memref<392x512xf32, #tpu.memory_space<vmem>>, vector<8x512xf32>
    tpu.vector_store %arg9[%c320, %c0_128], %121 {strides = array<i32>} : memref<392x512xf32, #tpu.memory_space<vmem>>, vector<8x512xf32>,
    %c0_129 = arith.constant 0 : index
    %c0_130 = arith.constant 0 : index
    %c116 = arith.constant 116 : index
    %123 = vector.load %arg1[%c0_129, %c0_130, %c116] : memref<1x8x650xf32, #tpu.memory_space<vmem>>, vector<1x8x512xf32>
    %124 = vector.shape_cast %123 : vector<1x8x512xf32> to vector<8x512xf32>
    %c328 = arith.constant 328 : index
    %c0_131 = arith.constant 0 : index
    %125 = vector.load %arg9[%c328, %c0_131] : memref<392x512xf32, #tpu.memory_space<vmem>>, vector<8x512xf32>
    tpu.vector_store %arg9[%c328, %c0_131], %124 {strides = array<i32>} : memref<392x512xf32, #tpu.memory_space<vmem>>, vector<8x512xf32>,
    %c0_132 = arith.constant 0 : index
    %c0_133 = arith.constant 0 : index
    %c132 = arith.constant 132 : index
    %126 = vector.load %arg1[%c0_132, %c0_133, %c132] : memref<1x8x650xf32, #tpu.memory_space<vmem>>, vector<1x8x512xf32>
    %127 = vector.shape_cast %126 : vector<1x8x512xf32> to vector<8x512xf32>
    %c336 = arith.constant 336 : index
    %c0_134 = arith.constant 0 : index
    %128 = vector.load %arg9[%c336, %c0_134] : memref<392x512xf32, #tpu.memory_space<vmem>>, vector<8x512xf32>
    tpu.vector_store %arg9[%c336, %c0_134], %127 {strides = array<i32>} : memref<392x512xf32, #tpu.memory_space<vmem>>, vector<8x512xf32>,
    %c0_135 = arith.constant 0 : index
    %c0_136 = arith.constant 0 : index
    %c133 = arith.constant 133 : index
    %129 = vector.load %arg1[%c0_135, %c0_136, %c133] : memref<1x8x650xf32, #tpu.memory_space<vmem>>, vector<1x8x512xf32>
    %130 = vector.shape_cast %129 : vector<1x8x512xf32> to vector<8x512xf32>
    %c344 = arith.constant 344 : index
    %c0_137 = arith.constant 0 : index
    %131 = vector.load %arg9[%c344, %c0_137] : memref<392x512xf32, #tpu.memory_space<vmem>>, vector<8x512xf32>
    tpu.vector_store %arg9[%c344, %c0_137], %130 {strides = array<i32>} : memref<392x512xf32, #tpu.memory_space<vmem>>, vector<8x512xf32>,
    %c0_138 = arith.constant 0 : index
    %c0_139 = arith.constant 0 : index
    %c134 = arith.constant 134 : index
    %132 = vector.load %arg1[%c0_138, %c0_139, %c134] : memref<1x8x650xf32, #tpu.memory_space<vmem>>, vector<1x8x512xf32>
    %133 = vector.shape_cast %132 : vector<1x8x512xf32> to vector<8x512xf32>
    %c352 = arith.constant 352 : index
    %c0_140 = arith.constant 0 : index
    %134 = vector.load %arg9[%c352, %c0_140] : memref<392x512xf32, #tpu.memory_space<vmem>>, vector<8x512xf32>
    tpu.vector_store %arg9[%c352, %c0_140], %133 {strides = array<i32>} : memref<392x512xf32, #tpu.memory_space<vmem>>, vector<8x512xf32>,
    %c0_141 = arith.constant 0 : index
    %c0_142 = arith.constant 0 : index
    %c135 = arith.constant 135 : index
    %135 = vector.load %arg1[%c0_141, %c0_142, %c135] : memref<1x8x650xf32, #tpu.memory_space<vmem>>, vector<1x8x512xf32>
    %136 = vector.shape_cast %135 : vector<1x8x512xf32> to vector<8x512xf32>
    %c360 = arith.constant 360 : index
    %c0_143 = arith.constant 0 : index
    %137 = vector.load %arg9[%c360, %c0_143] : memref<392x512xf32, #tpu.memory_space<vmem>>, vector<8x512xf32>
    tpu.vector_store %arg9[%c360, %c0_143], %136 {strides = array<i32>} : memref<392x512xf32, #tpu.memory_space<vmem>>, vector<8x512xf32>,
    %c0_144 = arith.constant 0 : index
    %c0_145 = arith.constant 0 : index
    %c136_146 = arith.constant 136 : index
    %138 = vector.load %arg1[%c0_144, %c0_145, %c136_146] : memref<1x8x650xf32, #tpu.memory_space<vmem>>, vector<1x8x512xf32>
    %139 = vector.shape_cast %138 : vector<1x8x512xf32> to vector<8x512xf32>
    %c368 = arith.constant 368 : index
    %c0_147 = arith.constant 0 : index
    %140 = vector.load %arg9[%c368, %c0_147] : memref<392x512xf32, #tpu.memory_space<vmem>>, vector<8x512xf32>
    tpu.vector_store %arg9[%c368, %c0_147], %139 {strides = array<i32>} : memref<392x512xf32, #tpu.memory_space<vmem>>, vector<8x512xf32>,
    %c0_148 = arith.constant 0 : index
    %c0_149 = arith.constant 0 : index
    %c137 = arith.constant 137 : index
    %141 = vector.load %arg1[%c0_148, %c0_149, %c137] : memref<1x8x650xf32, #tpu.memory_space<vmem>>, vector<1x8x512xf32>
    %142 = vector.shape_cast %141 : vector<1x8x512xf32> to vector<8x512xf32>
    %c376 = arith.constant 376 : index
    %c0_150 = arith.constant 0 : index
    %143 = vector.load %arg9[%c376, %c0_150] : memref<392x512xf32, #tpu.memory_space<vmem>>, vector<8x512xf32>
    tpu.vector_store %arg9[%c376, %c0_150], %142 {strides = array<i32>} : memref<392x512xf32, #tpu.memory_space<vmem>>, vector<8x512xf32>,
    %c0_151 = arith.constant 0 : index
    %c0_152 = arith.constant 0 : index
    %c138 = arith.constant 138 : index
    %144 = vector.load %arg1[%c0_151, %c0_152, %c138] : memref<1x8x650xf32, #tpu.memory_space<vmem>>, vector<1x8x512xf32>
    %145 = vector.shape_cast %144 : vector<1x8x512xf32> to vector<8x512xf32>
    %c384 = arith.constant 384 : index
    %c0_153 = arith.constant 0 : index
    %146 = vector.load %arg9[%c384, %c0_153] : memref<392x512xf32, #tpu.memory_space<vmem>>, vector<8x512xf32>
    tpu.vector_store %arg9[%c384, %c0_153], %145 {strides = array<i32>} : memref<392x512xf32, #tpu.memory_space<vmem>>, vector<8x512xf32>,
    %c0_154 = arith.constant 0 : index
    %c0_155 = arith.constant 0 : index
    %147 = vector.load %arg2[%c0_154, %c0_155] : memref<16x392xbf16, #tpu.memory_space<vmem>>, vector<16x392xbf16>
    %c0_156 = arith.constant 0 : index
    %c0_157 = arith.constant 0 : index
    %148 = vector.load %arg9[%c0_156, %c0_157] : memref<392x512xf32, #tpu.memory_space<vmem>>, vector<392x512xf32>
    %149 = arith.truncf %148 : vector<392x512xf32> to vector<392x512xbf16>
    %cst = arith.constant dense<0.000000e+00> : vector<16x512xf32>
    %150 = tpu.matmul %147, %149, %cst {dimension_numbers = #tpu.dot_dimension_numbers<[1], [0], [0], [1], [0, 0, 1, 1], [], []>} : vector<16x392xbf16>, vector<392x512xbf16>, vector<16x512xf32> -> vector<16x512xf32>
    %c0_158 = arith.constant 0 : index
    %c0_159 = arith.constant 0 : index
    %151 = vector.load %arg3[%c0_158, %c0_159] : memref<16x1xf32, #tpu.memory_space<vmem>>, vector<16x1xf32>
    %152 = vector.broadcast %151 : vector<16x1xf32> to vector<16x512xf32>
    %153 = arith.addf %150, %152 : vector<16x512xf32>
    %cst_160 = arith.constant 0.000000e+00 : f32
    %154 = vector.broadcast %cst_160 : f32 to vector<16x512xf32>
    %155 = arith.maximumf %153, %154 : vector<16x512xf32>
    %c0_161 = arith.constant 0 : index
    %c0_162 = arith.constant 0 : index
    %156 = vector.load %arg7[%c0_161, %c0_162] : memref<1x512xf32, #tpu.memory_space<vmem>>, vector<1x512xf32>
    %157 = vector.broadcast %156 : vector<1x512xf32> to vector<16x512xf32>
    %158 = arith.mulf %155, %157 : vector<16x512xf32>
    %cst_163 = arith.constant dense<0.000000e+00> : vector<16xf32>
    %159 = vector.multi_reduction <add>, %158, %cst_163 [1] : vector<16x512xf32> to vector<16xf32>
    %160 = vector.shape_cast %159 : vector<16xf32> to vector<16x1xf32>
    %161 = arith.mulf %158, %158 : vector<16x512xf32>
    %cst_164 = arith.constant dense<0.000000e+00> : vector<16xf32>
    %162 = vector.multi_reduction <add>, %161, %cst_164 [1] : vector<16x512xf32> to vector<16xf32>
    %163 = vector.shape_cast %162 : vector<16xf32> to vector<16x1xf32>
    %c0_165 = arith.constant 0 : index
    %c0_166 = arith.constant 0 : index
    %164 = vector.load %arg6[%c0_165, %c0_166] : memref<16x16xf32, #tpu.memory_space<vmem>>, vector<16x16xf32>
    %cst_167 = arith.constant dense<0.000000e+00> : vector<16x1xf32>
    %165 = tpu.matmul %164, %160, %cst_167 {dimension_numbers = #tpu.dot_dimension_numbers<[1], [0], [0], [1], [0, 0, 1, 1], [], []>} : vector<16x16xf32>, vector<16x1xf32>, vector<16x1xf32> -> vector<16x1xf32>
    %c0_168 = arith.constant 0 : index
    %c0_169 = arith.constant 0 : index
    %166 = vector.load %arg6[%c0_168, %c0_169] : memref<16x16xf32, #tpu.memory_space<vmem>>, vector<16x16xf32>
    %cst_170 = arith.constant dense<0.000000e+00> : vector<16x1xf32>
    %167 = tpu.matmul %166, %163, %cst_170 {dimension_numbers = #tpu.dot_dimension_numbers<[1], [0], [0], [1], [0, 0, 1, 1], [], []>} : vector<16x16xf32>, vector<16x1xf32>, vector<16x1xf32> -> vector<16x1xf32>
    %cst_171 = arith.constant 9.765625E-4 : f32
    %168 = vector.broadcast %cst_171 : f32 to vector<16x1xf32>
    %169 = arith.mulf %165, %168 : vector<16x1xf32>
    %cst_172 = arith.constant 9.765625E-4 : f32
    %170 = vector.broadcast %cst_172 : f32 to vector<16x1xf32>
    %171 = arith.mulf %167, %170 : vector<16x1xf32>
    %172 = arith.mulf %169, %169 : vector<16x1xf32>
    %173 = arith.subf %171, %172 : vector<16x1xf32>
    %c0_173 = arith.constant 0 : index
    %c0_174 = arith.constant 0 : index
    %174 = vector.load %arg4[%c0_173, %c0_174] : memref<16x1xf32, #tpu.memory_space<vmem>>, vector<16x1xf32>
    %cst_175 = arith.constant 9.99999974E-6 : f32
    %175 = vector.broadcast %cst_175 : f32 to vector<16x1xf32>
    %176 = arith.addf %173, %175 : vector<16x1xf32>
    %177 = math.rsqrt %176 : vector<16x1xf32>
    %178 = arith.mulf %174, %177 : vector<16x1xf32>
    %c0_176 = arith.constant 0 : index
    %c0_177 = arith.constant 0 : index
    %179 = vector.load %arg5[%c0_176, %c0_177] : memref<16x1xf32, #tpu.memory_space<vmem>>, vector<16x1xf32>
    %180 = arith.mulf %169, %178 : vector<16x1xf32>
    %181 = arith.subf %179, %180 : vector<16x1xf32>
    %182 = vector.broadcast %178 : vector<16x1xf32> to vector<16x512xf32>
    %183 = arith.mulf %155, %182 : vector<16x512xf32>
    %184 = vector.broadcast %181 : vector<16x1xf32> to vector<16x512xf32>
    %185 = arith.addf %183, %184 : vector<16x512xf32>
    %c0_178 = arith.constant 0 : index
    %c0_179 = arith.constant 0 : index
    %c0_180 = arith.constant 0 : index
    %186 = vector.load %arg8[%c0_178, %c0_179, %c0_180] : memref<1x16x512xf32, #tpu.memory_space<vmem>>, vector<1x16x512xf32>
    %187 = vector.shape_cast %186 : vector<1x16x512xf32> to vector<16x512xf32>
    %188 = vector.shape_cast %185 : vector<16x512xf32> to vector<1x16x512xf32>
    tpu.vector_store %arg8[%c0_178, %c0_179, %c0_180], %188 {strides = array<i32>} : memref<1x16x512xf32, #tpu.memory_space<vmem>>, vector<1x16x512xf32>,
    return
  }
  func.func @transform_0(%arg0: i32) -> (i32, i32, i32) {
    %c0_i32 = arith.constant 0 : i32
    %c0_i32_0 = arith.constant 0 : i32
    %c0_i32_1 = arith.constant 0 : i32
    return %arg0, %c0_i32, %c0_i32_0 : i32, i32, i32
  }
  func.func @transform_1(%arg0: i32) -> (i32, i32) {
    %c0_i32 = arith.constant 0 : i32
    %c0_i32_0 = arith.constant 0 : i32
    %c0_i32_1 = arith.constant 0 : i32
    return %c0_i32, %c0_i32_0 : i32, i32
  }
  func.func @transform_2(%arg0: i32) -> (i32, i32) {
    %c0_i32 = arith.constant 0 : i32
    %c0_i32_0 = arith.constant 0 : i32
    %c0_i32_1 = arith.constant 0 : i32
    return %c0_i32, %c0_i32_0 : i32, i32
  }
  func.func @transform_3(%arg0: i32) -> (i32, i32) {
    %c0_i32 = arith.constant 0 : i32
    %c0_i32_0 = arith.constant 0 : i32
    %c0_i32_1 = arith.constant 0 : i32
    return %c0_i32, %c0_i32_0 : i32, i32
  }
  func.func @transform_4(%arg0: i32) -> (i32, i32) {
    %c0_i32 = arith.constant 0 : i32
    %c0_i32_0 = arith.constant 0 : i32
    %c0_i32_1 = arith.constant 0 : i32
    return %c0_i32, %c0_i32_0 : i32, i32
  }
  func.func @transform_5(%arg0: i32) -> (i32, i32) {
    %c0_i32 = arith.constant 0 : i32
    %c0_i32_0 = arith.constant 0 : i32
    %c0_i32_1 = arith.constant 0 : i32
    return %c0_i32, %c0_i32_0 : i32, i32
  }
  func.func @transform_6(%arg0: i32) -> (i32, i32) {
    %c0_i32 = arith.constant 0 : i32
    %c0_i32_0 = arith.constant 0 : i32
    %c0_i32_1 = arith.constant 0 : i32
    return %c0_i32, %c0_i32_0 : i32, i32
  }
  func.func @transform_7(%arg0: i32) -> (i32, i32, i32) {
    %c0_i32 = arith.constant 0 : i32
    %c0_i32_0 = arith.constant 0 : i32
    %c0_i32_1 = arith.constant 0 : i32
    return %arg0, %c0_i32, %c0_i32_0 : i32, i32, i32
  }
}

</mosaic_0001>

<llo_original>
// kernel: tpu_custom_call.1
$region0: #{tpu_custom_call.1}
  #allocation0 [shape = 'u32[]', space=smem, size = 0x4, offset = 0x4, fixed_abs, tag = 'smem constant byte address 0x4 - core index']
  #allocation1 [shape = 'u32[144,128]{1,0:T(1,128)}', space=vmem, size = 0x12000, scoped, tag = 'internal scratch']
  #allocation2 [shape = 'f32[392,512]{1,0:T(8,128)}', space=vmem, size = 0xc4000, scoped, tag = 'scratch operand']
  %s0 = inlined_call_operand.hbm [shape: f32[2,8,650], index: 0, kind: input, shape index: {}]
  %s1 = inlined_call_operand.vmem [shape: bf16[16,392], index: 1, kind: input, shape index: {}]
  %s2 = inlined_call_operand.vmem [shape: f32[16,1], index: 2, kind: input, shape index: {}]
  %s3 = inlined_call_operand.vmem [shape: f32[16,1], index: 3, kind: input, shape index: {}]
  %s4 = inlined_call_operand.vmem [shape: f32[16,1], index: 4, kind: input, shape index: {}]
  %s5 = inlined_call_operand.vmem [shape: f32[16,16], index: 5, kind: input, shape index: {}]
  %s6 = inlined_call_operand.vmem [shape: f32[1,512], index: 6, kind: input, shape index: {}]
  %s7 = inlined_call_operand.hbm [shape: f32[2,16,512], index: 7, kind: output, shape index: {}]
  %s8 = sld [smem:[#allocation0]]
  $region65: #{tpu_custom_call.1} parent=0
    _
  %s10 = ssub.s32 1, %s8
  %s11 = scalar_select 0, %s10, %s8
  $region1: #{tpu_custom_call.1} parent=0
    #allocation3 [shape = 'u8[49152]{0}', space=vmem, size = 0xc000, scoped, tag = 'input window, operand 0']
    #allocation4 [shape = 's32[2]{0}', space=sflag, size = 0x8, scoped, tag = 'scoped memory for tpu_custom_call.1']
    #allocation5 [shape = 's32[2]{0}', space=sflag, size = 0x8, scoped, tag = 'scoped memory for tpu_custom_call.1']
    #allocation6 [shape = 'u8[65536]{0}', space=vmem, size = 0x10000, scoped, tag = 'output window, operand 0']
    %12 = vsyncpa [#allocation4], 0
    %s13 = scalar_lea.sflag [#allocation4], 1
    %14 = vsyncpa %s13, 0
    %15 = vsyncpa [#allocation5], 0
    %s16 = scalar_lea.sflag [#allocation5], 1
    %17 = vsyncpa %s16, 0
    loop: start=0, step=1, limit=4
    $region2: #{tpu_custom_call.1} parent=1 // loop_pre_header
      _
    $region3: #{tpu_custom_call.1} parent=1 // loop_header
      %s19 = sphi 0, %s23
      %p20 = scmp.ge.s32.totalorder %s19, 4
      %s29 = sphi 0, %s31
      %s32 = sphi 0, %s29
      %s33 = sphi 0, %s32
      %s49 = sphi 0, %s33
      %s53 = sphi 0, %s53
      %s55 = sphi 0, %s53
      %s56 = sphi 0, %s55
      %s70 = sphi 0, %s56
      %s74 = sphi 0, %s74
      %s76 = sphi 0, %s74
      %s77 = sphi 0, %s76
      %s91 = sphi 0, %s77
      %s95 = sphi 0, %s95
      %s97 = sphi 0, %s95
      %s98 = sphi 0, %s97
      %s112 = sphi 0, %s98
      %s116 = sphi 0, %s116
      %s118 = sphi 0, %s116
      %s119 = sphi 0, %s118
      %s133 = sphi 0, %s119
      %s137 = sphi 0, %s137
      %s139 = sphi 0, %s137
      %s140 = sphi 0, %s139
      %s154 = sphi 0, %s140
      %s158 = sphi 0, %s158
      %s160 = sphi 0, %s158
      %s161 = sphi 0, %s160
      %s175 = sphi 0, %s161
      %s181 = sphi 0, %s183
      %s184 = sphi 0, %s181
      %s185 = sphi 0, %s184
      %s201 = sphi 0, %s185
    $region4: #{tpu_custom_call.1} parent=1 // loop_header_branch
      %22 = sbr.rel (%p20) target = $region8
    $region5: #{tpu_custom_call.1} parent=1 // loop_body
      %s24 = ssub.s32 %s19, 1
      %s25 = ssub.s32 %s19, 2
      %s26 = sadd.s32 %s19, 1
      %s27 = ssub.s32 %s19, %s26
      %p28 = scmp.eq.s32.totalorder %s27, 0
      %s30 = sadd.s32 %s29, 1
      %s31 = scalar_select %p28, %s29, %s30
      %p34 = pneg %p28
      %p35 = scmp.eq.s32.totalorder %s19, 1
      %p36 = por %p34, %p35
      %p37 = scmp.ne.s32.totalorder %s29, %s32
      %p38 = scmp.eq.s32.totalorder %s19, 0
      %p39 = por %p37, %p38
      %p40 = scmp.ne.s32.totalorder %s29, %s32
      %p41 = scmp.eq.s32.totalorder %s24, 1
      %p42 = por %p40, %p41
      %p43 = scmp.ne.s32.totalorder %s32, %s33
      %p44 = scmp.eq.s32.totalorder %s24, 0
      %p45 = por %p43, %p44
      %p46 = scmp.ne.s32.totalorder %s32, %s33
      %p47 = scmp.eq.s32.totalorder %s25, 1
      %p48 = por %p46, %p47
      %p50 = scmp.ne.s32.totalorder %s33, %s49
      %p51 = scmp.eq.s32.totalorder %s25, 0
      %p52 = por %p50, %p51
      %s54 = sadd.s32 %s53, 1
      %p57 = scmp.eq.s32.totalorder %s19, 1
      %p58 = scmp.ne.s32.totalorder %s53, %s55
      %p59 = scmp.eq.s32.totalorder %s19, 0
      %p60 = por %p58, %p59
      %p61 = scmp.ne.s32.totalorder %s53, %s55
      %p62 = scmp.eq.s32.totalorder %s24, 1
      %p63 = por %p61, %p62
      %p64 = scmp.ne.s32.totalorder %s55, %s56
      %p65 = scmp.eq.s32.totalorder %s24, 0
      %p66 = por %p64, %p65
      %p67 = scmp.ne.s32.totalorder %s55, %s56
      %p68 = scmp.eq.s32.totalorder %s25, 1
      %p69 = por %p67, %p68
      %p71 = scmp.ne.s32.totalorder %s56, %s70
      %p72 = scmp.eq.s32.totalorder %s25, 0
      %p73 = por %p71, %p72
      %s75 = sadd.s32 %s74, 1
      %p78 = scmp.eq.s32.totalorder %s19, 1
      %p79 = scmp.ne.s32.totalorder %s74, %s76
      %p80 = scmp.eq.s32.totalorder %s19, 0
      %p81 = por %p79, %p80
      %p82 = scmp.ne.s32.totalorder %s74, %s76
      %p83 = scmp.eq.s32.totalorder %s24, 1
      %p84 = por %p82, %p83
      %p85 = scmp.ne.s32.totalorder %s76, %s77
      %p86 = scmp.eq.s32.totalorder %s24, 0
      %p87 = por %p85, %p86
      %p88 = scmp.ne.s32.totalorder %s76, %s77
      %p89 = scmp.eq.s32.totalorder %s25, 1
      %p90 = por %p88, %p89
      %p92 = scmp.ne.s32.totalorder %s77, %s91
      %p93 = scmp.eq.s32.totalorder %s25, 0
      %p94 = por %p92, %p93
      %s96 = sadd.s32 %s95, 1
      %p99 = scmp.eq.s32.totalorder %s19, 1
      %p100 = scmp.ne.s32.totalorder %s95, %s97
      %p101 = scmp.eq.s32.totalorder %s19, 0
      %p102 = por %p100, %p101
      %p103 = scmp.ne.s32.totalorder %s95, %s97
      %p104 = scmp.eq.s32.totalorder %s24, 1
      %p105 = por %p103, %p104
      %p106 = scmp.ne.s32.totalorder %s97, %s98
      %p107 = scmp.eq.s32.totalorder %s24, 0
      %p108 = por %p106, %p107
      %p109 = scmp.ne.s32.totalorder %s97, %s98
      %p110 = scmp.eq.s32.totalorder %s25, 1
      %p111 = por %p109, %p110
      %p113 = scmp.ne.s32.totalorder %s98, %s112
      %p114 = scmp.eq.s32.totalorder %s25, 0
      %p115 = por %p113, %p114
      %s117 = sadd.s32 %s116, 1
      %p120 = scmp.eq.s32.totalorder %s19, 1
      %p121 = scmp.ne.s32.totalorder %s116, %s118
      %p122 = scmp.eq.s32.totalorder %s19, 0
      %p123 = por %p121, %p122
      %p124 = scmp.ne.s32.totalorder %s116, %s118
      %p125 = scmp.eq.s32.totalorder %s24, 1
      %p126 = por %p124, %p125
      %p127 = scmp.ne.s32.totalorder %s118, %s119
      %p128 = scmp.eq.s32.totalorder %s24, 0
      %p129 = por %p127, %p128
      %p130 = scmp.ne.s32.totalorder %s118, %s119
      %p131 = scmp.eq.s32.totalorder %s25, 1
      %p132 = por %p130, %p131
      %p134 = scmp.ne.s32.totalorder %s119, %s133
      %p135 = scmp.eq.s32.totalorder %s25, 0
      %p136 = por %p134, %p135
      %s138 = sadd.s32 %s137, 1
      %p141 = scmp.eq.s32.totalorder %s19, 1
      %p142 = scmp.ne.s32.totalorder %s137, %s139
      %p143 = scmp.eq.s32.totalorder %s19, 0
      %p144 = por %p142, %p143
      %p145 = scmp.ne.s32.totalorder %s137, %s139
      %p146 = scmp.eq.s32.totalorder %s24, 1
      %p147 = por %p145, %p146
      %p148 = scmp.ne.s32.totalorder %s139, %s140
      %p149 = scmp.eq.s32.totalorder %s24, 0
      %p150 = por %p148, %p149
      %p151 = scmp.ne.s32.totalorder %s139, %s140
      %p152 = scmp.eq.s32.totalorder %s25, 1
      %p153 = por %p151, %p152
      %p155 = scmp.ne.s32.totalorder %s140, %s154
      %p156 = scmp.eq.s32.totalorder %s25, 0
      %p157 = por %p155, %p156
      %s159 = sadd.s32 %s158, 1
      %p162 = scmp.eq.s32.totalorder %s19, 1
      %p163 = scmp.ne.s32.totalorder %s158, %s160
      %p164 = scmp.eq.s32.totalorder %s19, 0
      %p165 = por %p163, %p164
      %p166 = scmp.ne.s32.totalorder %s158, %s160
      %p167 = scmp.eq.s32.totalorder %s24, 1
      %p168 = por %p166, %p167
      %p169 = scmp.ne.s32.totalorder %s160, %s161
      %p170 = scmp.eq.s32.totalorder %s24, 0
      %p171 = por %p169, %p170
      %p172 = scmp.ne.s32.totalorder %s160, %s161
      %p173 = scmp.eq.s32.totalorder %s25, 1
      %p174 = por %p172, %p173
      %p176 = scmp.ne.s32.totalorder %s161, %s175
      %p177 = scmp.eq.s32.totalorder %s25, 0
      %p178 = por %p176, %p177
      %s179 = ssub.s32 %s19, %s26
      %p180 = scmp.eq.s32.totalorder %s179, 0
      %s182 = sadd.s32 %s181, 1
      %s183 = scalar_select %p180, %s181, %s182
      %p186 = pneg %p180
      %p187 = scmp.eq.s32.totalorder %s19, 1
      %p188 = por %p186, %p187
      %p189 = scmp.ne.s32.totalorder %s181, %s184
      %p190 = scmp.eq.s32.totalorder %s19, 0
      %p191 = por %p189, %p190
      %p192 = scmp.ne.s32.totalorder %s181, %s184
      %p193 = scmp.eq.s32.totalorder %s24, 1
      %p194 = por %p192, %p193
      %p195 = scmp.ne.s32.totalorder %s184, %s185
      %p196 = scmp.eq.s32.totalorder %s24, 0
      %p197 = por %p195, %p196
      %p198 = scmp.ne.s32.totalorder %s184, %s185
      %p199 = scmp.eq.s32.totalorder %s25, 1
      %p200 = por %p198, %p199
      %p202 = scmp.ne.s32.totalorder %s185, %s201
      %p203 = scmp.eq.s32.totalorder %s25, 0
      %p204 = por %p202, %p203
      %p205 = scmp.le.s32.totalorder 1, %s19
      %p206 = scmp.lt.s32.totalorder %s19, 3
      %p207 = pnand %p205, %p206
      %p208 = pneg %p207
      // Predicated region
      $region9: #{tpu_custom_call.1} parent=5 // pred_check
        _
      $region10: #{tpu_custom_call.1} parent=5 // pred_check_branch
        %210 = sbr.rel (%p207) target = $region12
      $region11: #{tpu_custom_call.1} parent=5 // pred_region
        %s211 = ssub.s32 %s19, 1
        // Predicated region
        $region13: #{tpu_custom_call.1} parent=11 // pred_check
          %p212 = pneg %p66
        $region14: #{tpu_custom_call.1} parent=11 // pred_check_branch
          %214 = sbr.rel (%p212) target = $region16
        $region15: #{tpu_custom_call.1} parent=11 // pred_region
          _
        $region16: #{tpu_custom_call.1} parent=11 // pred_fallthru
          _
        // Predicated region
        $region17: #{tpu_custom_call.1} parent=11 // pred_check
          %p215 = pneg %p87
        $region18: #{tpu_custom_call.1} parent=11 // pred_check_branch
          %217 = sbr.rel (%p215) target = $region20
        $region19: #{tpu_custom_call.1} parent=11 // pred_region
          _
        $region20: #{tpu_custom_call.1} parent=11 // pred_fallthru
          _
        // Predicated region
        $region21: #{tpu_custom_call.1} parent=11 // pred_check
          %p218 = pneg %p108
        $region22: #{tpu_custom_call.1} parent=11 // pred_check_branch
          %220 = sbr.rel (%p218) target = $region24
        $region23: #{tpu_custom_call.1} parent=11 // pred_region
          _
        $region24: #{tpu_custom_call.1} parent=11 // pred_fallthru
          _
        // Predicated region
        $region25: #{tpu_custom_call.1} parent=11 // pred_check
          %p221 = pneg %p129
        $region26: #{tpu_custom_call.1} parent=11 // pred_check_branch
          %223 = sbr.rel (%p221) target = $region28
        $region27: #{tpu_custom_call.1} parent=11 // pred_region
          _
        $region28: #{tpu_custom_call.1} parent=11 // pred_fallthru
          _
        // Predicated region
        $region29: #{tpu_custom_call.1} parent=11 // pred_check
          %p224 = pneg %p150
        $region30: #{tpu_custom_call.1} parent=11 // pred_check_branch
          %226 = sbr.rel (%p224) target = $region32
        $region31: #{tpu_custom_call.1} parent=11 // pred_region
          _
        $region32: #{tpu_custom_call.1} parent=11 // pred_fallthru
          _
        // Predicated region
        $region33: #{tpu_custom_call.1} parent=11 // pred_check
          %p227 = pneg %p171
        $region34: #{tpu_custom_call.1} parent=11 // pred_check_branch
          %229 = sbr.rel (%p227) target = $region36
        $region35: #{tpu_custom_call.1} parent=11 // pred_region
          _
        $region36: #{tpu_custom_call.1} parent=11 // pred_fallthru
          _
      $region12: #{tpu_custom_call.1} parent=5 // pred_fallthru
        _
      %p230 = scmp.lt.s32.totalorder %s19, 2
      // Predicated region
      $region37: #{tpu_custom_call.1} parent=5 // pred_check
        %p231 = pneg %p230
      $region38: #{tpu_custom_call.1} parent=5 // pred_check_branch
        %233 = sbr.rel (%p231) target = $region40
      $region39: #{tpu_custom_call.1} parent=5 // pred_region
        // Predicated region
        $region41: #{tpu_custom_call.1} parent=39 // pred_check
          %p234 = pneg %p39
        $region42: #{tpu_custom_call.1} parent=39 // pred_check_branch
          %236 = sbr.rel (%p234) target = $region44
        $region43: #{tpu_custom_call.1} parent=39 // pred_region
          %s237 = sand.u32 %s29, 1
          %s238 = scalar_lea.sflag [#allocation4], %s237
          %s239 = sand.u32 %s29, 1
          %s240 = smul.addr %s239, 48
          %s241 = scalar_lea.vmem [#allocation3], %s240
          %s243 = ssub.s32 768, 768
          %244 = vsyncadd %s238, %s243
          %s245 = smul.addr %s19, 6
          %s246 = smul.addr %s245, 128
          %s247 = scalar_lea.hbm %s0, %s246
          %s249 = sshll.u32 %s241, 4
          %s250 = int_to_ptr.vmem [resolvable:$true] %s249
          %252 = dma.hbm_to_vmem [thread:$0]  %s247, 768, %s250, %s238
        $region44: #{tpu_custom_call.1} parent=39 // pred_fallthru
          _
      $region40: #{tpu_custom_call.1} parent=5 // pred_fallthru
        _
      %p253 = scmp.le.s32.totalorder 1, %s19
      %p254 = scmp.lt.s32.totalorder %s19, 3
      %p255 = pnand %p253, %p254
      %p256 = pneg %p255
      // Predicated region
      $region45: #{tpu_custom_call.1} parent=5 // pred_check
        _
      $region46: #{tpu_custom_call.1} parent=5 // pred_check_branch
        %258 = sbr.rel (%p255) target = $region48
      $region47: #{tpu_custom_call.1} parent=5 // pred_region
        %s259 = ssub.s32 %s19, 1
        %s260 = sand.u32 %s32, 1
        %s261 = scalar_lea.sflag [#allocation4], %s260
        %s262 = sand.u32 %s32, 1
        %s263 = smul.addr %s262, 48
        %s264 = scalar_lea.vmem [#allocation3], %s263
        // Predicated region
        $region49: #{tpu_custom_call.1} parent=47 // pred_check
          %p265 = pneg %p45
        $region50: #{tpu_custom_call.1} parent=47 // pred_check_branch
          %267 = sbr.rel (%p265) target = $region52
        $region51: #{tpu_custom_call.1} parent=47 // pred_region
          %268 = dma.done %s261, 768
        $region52: #{tpu_custom_call.1} parent=47 // pred_fallthru
          _
        %s269 = sand.u32 %s32, 1
        %s270 = scalar_lea.sflag [#allocation4], %s269
        %s271 = sand.u32 %s32, 1
        %s272 = smul.addr %s271, 48
        %s273 = scalar_lea.vmem [#allocation3], %s272
        %p274 = pneg %p45
        %p275 = pneg %p42
        %p276 = pneg %p66
        %p277 = pneg %p63
        %p278 = pneg %p87
        %p279 = pneg %p84
        %p280 = pneg %p108
        %p281 = pneg %p105
        %p282 = pneg %p129
        %p283 = pneg %p126
        %p284 = pneg %p150
        %p285 = pneg %p147
        %p286 = pneg %p171
        %p287 = pneg %p168
        %p288 = pneg %p197
        %p289 = pneg %p194
        %s290 = sand.u32 %s184, 1
        %s291 = scalar_lea.sflag [#allocation5], %s290
        %s292 = sand.u32 %s184, 1
        %s293 = smul.addr %s292, 64
        %s294 = scalar_lea.vmem [#allocation6], %s293
        %v296 = vld [vmem:[%s264] sm:$0xff]
        %v297 = vld [vmem:[%s264 + $0x8] sm:$0xff]
        %v298 = vld [vmem:[%s264 + $0x10] sm:$0xff]
        %v299 = vld [vmem:[%s264 + $0x18] sm:$0xff]
        %300 = vst [vmem:[#allocation2] sm:$0xff] %v296
        %301 = vst [vmem:[#allocation2 + $0x8] sm:$0xff] %v297
        %302 = vst [vmem:[#allocation2 + $0x10] sm:$0xff] %v298
        %303 = vst [vmem:[#allocation2 + $0x18] sm:$0xff] %v299
        %v304 = vld [vmem:[%s264] sm:$0xff]
        %v305 = vld [vmem:[%s264 + $0x8] sm:$0xff]
        %v306 = vld [vmem:[%s264 + $0x10] sm:$0xff]
        %v307 = vld [vmem:[%s264 + $0x18] sm:$0xff]
        %v308 = vld [vmem:[%s264 + $0x20] sm:$0xff]
        %314 = vrot.lane.b32.xlu0 %v304, 127
        %v315 = vpop.permute.xlu0 %314
        %316 = vrot.lane.b32.xlu0 %v305, 127
        %v317 = vpop.permute.xlu0 %316
        %318 = vrot.lane.b32.xlu0 %v306, 127
        %v319 = vpop.permute.xlu0 %318
        %320 = vrot.lane.b32.xlu0 %v307, 127
        %v321 = vpop.permute.xlu0 %320
        %322 = vrot.lane.b32.xlu0 %v308, 127
        %v323 = vpop.permute.xlu0 %322
        %vm324 = vcmask 1039360
        %v325 = vsel %vm324, %v315, %v317
        %v326 = vsel %vm324, %v317, %v319
        %v327 = vsel %vm324, %v319, %v321
        %v328 = vsel %vm324, %v321, %v323
        %333 = vst [vmem:[#allocation2 + $0x20] sm:$0xff] %v325
        %334 = vst [vmem:[#allocation2 + $0x28] sm:$0xff] %v326
        %335 = vst [vmem:[#allocation2 + $0x30] sm:$0xff] %v327
        %336 = vst [vmem:[#allocation2 + $0x38] sm:$0xff] %v328
        %v337 = vld [vmem:[%s264] sm:$0xff]
        %v338 = vld [vmem:[%s264 + $0x8] sm:$0xff]
        %v339 = vld [vmem:[%s264 + $0x10] sm:$0xff]
        %v340 = vld [vmem:[%s264 + $0x18] sm:$0xff]
        %v341 = vld [vmem:[%s264 + $0x20] sm:$0xff]
        %347 = vrot.lane.b32.xlu0 %v337, 126
        %v348 = vpop.permute.xlu0 %347
        %349 = vrot.lane.b32.xlu0 %v338, 126
        %v350 = vpop.permute.xlu0 %349
        %351 = vrot.lane.b32.xlu0 %v339, 126
        %v352 = vpop.permute.xlu0 %351
        %353 = vrot.lane.b32.xlu0 %v340, 126
        %v354 = vpop.permute.xlu0 %353
        %355 = vrot.lane.b32.xlu0 %v341, 126
        %v356 = vpop.permute.xlu0 %355
        %vm357 = vcmask 1031168
        %v358 = vsel %vm357, %v348, %v350
        %v359 = vsel %vm357, %v350, %v352
        %v360 = vsel %vm357, %v352, %v354
        %v361 = vsel %vm357, %v354, %v356
        %366 = vst [vmem:[#allocation2 + $0x40] sm:$0xff] %v358
        %367 = vst [vmem:[#allocation2 + $0x48] sm:$0xff] %v359
        %368 = vst [vmem:[#allocation2 + $0x50] sm:$0xff] %v360
        %369 = vst [vmem:[#allocation2 + $0x58] sm:$0xff] %v361
        %v370 = vld [vmem:[%s264] sm:$0xff]
        %v371 = vld [vmem:[%s264 + $0x8] sm:$0xff]
        %v372 = vld [vmem:[%s264 + $0x10] sm:$0xff]
        %v373 = vld [vmem:[%s264 + $0x18] sm:$0xff]
        %v374 = vld [vmem:[%s264 + $0x20] sm:$0xff]
        %380 = vrot.lane.b32.xlu0 %v370, 125
        %v381 = vpop.permute.xlu0 %380
        %382 = vrot.lane.b32.xlu0 %v371, 125
        %v383 = vpop.permute.xlu0 %382
        %384 = vrot.lane.b32.xlu0 %v372, 125
        %v385 = vpop.permute.xlu0 %384
        %386 = vrot.lane.b32.xlu0 %v373, 125
        %v387 = vpop.permute.xlu0 %386
        %388 = vrot.lane.b32.xlu0 %v374, 125
        %v389 = vpop.permute.xlu0 %388
        %vm390 = vcmask 1022976
        %v391 = vsel %vm390, %v381, %v383
        %v392 = vsel %vm390, %v383, %v385
        %v393 = vsel %vm390, %v385, %v387
        %v394 = vsel %vm390, %v387, %v389
        %399 = vst [vmem:[#allocation2 + $0x60] sm:$0xff] %v391
        %400 = vst [vmem:[#allocation2 + $0x68] sm:$0xff] %v392
        %401 = vst [vmem:[#allocation2 + $0x70] sm:$0xff] %v393
        %402 = vst [vmem:[#allocation2 + $0x78] sm:$0xff] %v394
        %v403 = vld [vmem:[%s264] sm:$0xff]
        %v404 = vld [vmem:[%s264 + $0x8] sm:$0xff]
        %v405 = vld [vmem:[%s264 + $0x10] sm:$0xff]
        %v406 = vld [vmem:[%s264 + $0x18] sm:$0xff]
        %v407 = vld [vmem:[%s264 + $0x20] sm:$0xff]
        %413 = vrot.lane.b32.xlu0 %v403, 124
        %v414 = vpop.permute.xlu0 %413
        %415 = vrot.lane.b32.xlu0 %v404, 124
        %v416 = vpop.permute.xlu0 %415
        %417 = vrot.lane.b32.xlu0 %v405, 124
        %v418 = vpop.permute.xlu0 %417
        %419 = vrot.lane.b32.xlu0 %v406, 124
        %v420 = vpop.permute.xlu0 %419
        %421 = vrot.lane.b32.xlu0 %v407, 124
        %v422 = vpop.permute.xlu0 %421
        %vm423 = vcmask 1014784
        %v424 = vsel %vm423, %v414, %v416
        %v425 = vsel %vm423, %v416, %v418
        %v426 = vsel %vm423, %v418, %v420
        %v427 = vsel %vm423, %v420, %v422
        %432 = vst [vmem:[#allocation2 + $0x80] sm:$0xff] %v424
        %433 = vst [vmem:[#allocation2 + $0x88] sm:$0xff] %v425
        %434 = vst [vmem:[#allocation2 + $0x90] sm:$0xff] %v426
        %435 = vst [vmem:[#allocation2 + $0x98] sm:$0xff] %v427
        %v436 = vld [vmem:[%s264] sm:$0xff]
        %v437 = vld [vmem:[%s264 + $0x8] sm:$0xff]
        %v438 = vld [vmem:[%s264 + $0x10] sm:$0xff]
        %v439 = vld [vmem:[%s264 + $0x18] sm:$0xff]
        %v440 = vld [vmem:[%s264 + $0x20] sm:$0xff]
        %446 = vrot.lane.b32.xlu0 %v436, 123
        %v447 = vpop.permute.xlu0 %446
        %448 = vrot.lane.b32.xlu0 %v437, 123
        %v449 = vpop.permute.xlu0 %448
        %450 = vrot.lane.b32.xlu0 %v438, 123
        %v451 = vpop.permute.xlu0 %450
        %452 = vrot.lane.b32.xlu0 %v439, 123
        %v453 = vpop.permute.xlu0 %452
        %454 = vrot.lane.b32.xlu0 %v440, 123
        %v455 = vpop.permute.xlu0 %454
        %vm456 = vcmask 1006592
        %v457 = vsel %vm456, %v447, %v449
        %v458 = vsel %vm456, %v449, %v451
        %v459 = vsel %vm456, %v451, %v453
        %v460 = vsel %vm456, %v453, %v455
        %465 = vst [vmem:[#allocation2 + $0xa0] sm:$0xff] %v457
        %466 = vst [vmem:[#allocation2 + $0xa8] sm:$0xff] %v458
        %467 = vst [vmem:[#allocation2 + $0xb0] sm:$0xff] %v459
        %468 = vst [vmem:[#allocation2 + $0xb8] sm:$0xff] %v460
        %v469 = vld [vmem:[%s264] sm:$0xff]
        %v470 = vld [vmem:[%s264 + $0x8] sm:$0xff]
        %v471 = vld [vmem:[%s264 + $0x10] sm:$0xff]
        %v472 = vld [vmem:[%s264 + $0x18] sm:$0xff]
        %v473 = vld [vmem:[%s264 + $0x20] sm:$0xff]
        %479 = vrot.lane.b32.xlu0 %v469, 122
        %v480 = vpop.permute.xlu0 %479
        %481 = vrot.lane.b32.xlu0 %v470, 122
        %v482 = vpop.permute.xlu0 %481
        %483 = vrot.lane.b32.xlu0 %v471, 122
        %v484 = vpop.permute.xlu0 %483
        %485 = vrot.lane.b32.xlu0 %v472, 122
        %v486 = vpop.permute.xlu0 %485
        %487 = vrot.lane.b32.xlu0 %v473, 122
        %v488 = vpop.permute.xlu0 %487
        %vm489 = vcmask 998400
        %v490 = vsel %vm489, %v480, %v482
        %v491 = vsel %vm489, %v482, %v484
        %v492 = vsel %vm489, %v484, %v486
        %v493 = vsel %vm489, %v486, %v488
        %498 = vst [vmem:[#allocation2 + $0xc0] sm:$0xff] %v490
        %499 = vst [vmem:[#allocation2 + $0xc8] sm:$0xff] %v491
        %500 = vst [vmem:[#allocation2 + $0xd0] sm:$0xff] %v492
        %501 = vst [vmem:[#allocation2 + $0xd8] sm:$0xff] %v493
        %v502 = vld [vmem:[%s264] sm:$0xff]
        %v503 = vld [vmem:[%s264 + $0x8] sm:$0xff]
        %v504 = vld [vmem:[%s264 + $0x10] sm:$0xff]
        %v505 = vld [vmem:[%s264 + $0x18] sm:$0xff]
        %v506 = vld [vmem:[%s264 + $0x20] sm:$0xff]
        %512 = vrot.lane.b32.xlu0 %v502, 106
        %v513 = vpop.permute.xlu0 %512
        %514 = vrot.lane.b32.xlu0 %v503, 106
        %v515 = vpop.permute.xlu0 %514
        %516 = vrot.lane.b32.xlu0 %v504, 106
        %v517 = vpop.permute.xlu0 %516
        %518 = vrot.lane.b32.xlu0 %v505, 106
        %v519 = vpop.permute.xlu0 %518
        %520 = vrot.lane.b32.xlu0 %v506, 106
        %v521 = vpop.permute.xlu0 %520
        %vm522 = vcmask 867328
        %v523 = vsel %vm522, %v513, %v515
        %v524 = vsel %vm522, %v515, %v517
        %v525 = vsel %vm522, %v517, %v519
        %v526 = vsel %vm522, %v519, %v521
        %531 = vst [vmem:[#allocation2 + $0xe0] sm:$0xff] %v523
        %532 = vst [vmem:[#allocation2 + $0xe8] sm:$0xff] %v524
        %533 = vst [vmem:[#allocation2 + $0xf0] sm:$0xff] %v525
        %534 = vst [vmem:[#allocation2 + $0xf8] sm:$0xff] %v526
        %v535 = vld [vmem:[%s264] sm:$0xff]
        %v536 = vld [vmem:[%s264 + $0x8] sm:$0xff]
        %v537 = vld [vmem:[%s264 + $0x10] sm:$0xff]
        %v538 = vld [vmem:[%s264 + $0x18] sm:$0xff]
        %v539 = vld [vmem:[%s264 + $0x20] sm:$0xff]
        %545 = vrot.lane.b32.xlu0 %v535, 105
        %v546 = vpop.permute.xlu0 %545
        %547 = vrot.lane.b32.xlu0 %v536, 105
        %v548 = vpop.permute.xlu0 %547
        %549 = vrot.lane.b32.xlu0 %v537, 105
        %v550 = vpop.permute.xlu0 %549
        %551 = vrot.lane.b32.xlu0 %v538, 105
        %v552 = vpop.permute.xlu0 %551
        %553 = vrot.lane.b32.xlu0 %v539, 105
        %v554 = vpop.permute.xlu0 %553
        %vm555 = vcmask 859136
        %v556 = vsel %vm555, %v546, %v548
        %v557 = vsel %vm555, %v548, %v550
        %v558 = vsel %vm555, %v550, %v552
        %v559 = vsel %vm555, %v552, %v554
        %564 = vst [vmem:[#allocation2 + $0x100] sm:$0xff] %v556
        %565 = vst [vmem:[#allocation2 + $0x108] sm:$0xff] %v557
        %566 = vst [vmem:[#allocation2 + $0x110] sm:$0xff] %v558
        %567 = vst [vmem:[#allocation2 + $0x118] sm:$0xff] %v559
        %v568 = vld [vmem:[%s264] sm:$0xff]
        %v569 = vld [vmem:[%s264 + $0x8] sm:$0xff]
        %v570 = vld [vmem:[%s264 + $0x10] sm:$0xff]
        %v571 = vld [vmem:[%s264 + $0x18] sm:$0xff]
        %v572 = vld [vmem:[%s264 + $0x20] sm:$0xff]
        %578 = vrot.lane.b32.xlu0 %v568, 104
        %v579 = vpop.permute.xlu0 %578
        %580 = vrot.lane.b32.xlu0 %v569, 104
        %v581 = vpop.permute.xlu0 %580
        %582 = vrot.lane.b32.xlu0 %v570, 104
        %v583 = vpop.permute.xlu0 %582
        %584 = vrot.lane.b32.xlu0 %v571, 104
        %v585 = vpop.permute.xlu0 %584
        %586 = vrot.lane.b32.xlu0 %v572, 104
        %v587 = vpop.permute.xlu0 %586
        %vm588 = vcmask 850944
        %v589 = vsel %vm588, %v579, %v581
        %v590 = vsel %vm588, %v581, %v583
        %v591 = vsel %vm588, %v583, %v585
        %v592 = vsel %vm588, %v585, %v587
        %597 = vst [vmem:[#allocation2 + $0x120] sm:$0xff] %v589
        %598 = vst [vmem:[#allocation2 + $0x128] sm:$0xff] %v590
        %599 = vst [vmem:[#allocation2 + $0x130] sm:$0xff] %v591
        %600 = vst [vmem:[#allocation2 + $0x138] sm:$0xff] %v592
        %v601 = vld [vmem:[%s264] sm:$0xff]
        %v602 = vld [vmem:[%s264 + $0x8] sm:$0xff]
        %v603 = vld [vmem:[%s264 + $0x10] sm:$0xff]
        %v604 = vld [vmem:[%s264 + $0x18] sm:$0xff]
        %v605 = vld [vmem:[%s264 + $0x20] sm:$0xff]
        %611 = vrot.lane.b32.xlu0 %v601, 103
        %v612 = vpop.permute.xlu0 %611
        %613 = vrot.lane.b32.xlu0 %v602, 103
        %v614 = vpop.permute.xlu0 %613
        %615 = vrot.lane.b32.xlu0 %v603, 103
        %v616 = vpop.permute.xlu0 %615
        %617 = vrot.lane.b32.xlu0 %v604, 103
        %v618 = vpop.permute.xlu0 %617
        %619 = vrot.lane.b32.xlu0 %v605, 103
        %v620 = vpop.permute.xlu0 %619
        %vm621 = vcmask 842752
        %v622 = vsel %vm621, %v612, %v614
        %v623 = vsel %vm621, %v614, %v616
        %v624 = vsel %vm621, %v616, %v618
        %v625 = vsel %vm621, %v618, %v620
        %630 = vst [vmem:[#allocation2 + $0x140] sm:$0xff] %v622
        %631 = vst [vmem:[#allocation2 + $0x148] sm:$0xff] %v623
        %632 = vst [vmem:[#allocation2 + $0x150] sm:$0xff] %v624
        %633 = vst [vmem:[#allocation2 + $0x158] sm:$0xff] %v625
        %v634 = vld [vmem:[%s264] sm:$0xff]
        %v635 = vld [vmem:[%s264 + $0x8] sm:$0xff]
        %v636 = vld [vmem:[%s264 + $0x10] sm:$0xff]
        %v637 = vld [vmem:[%s264 + $0x18] sm:$0xff]
        %v638 = vld [vmem:[%s264 + $0x20] sm:$0xff]
        %644 = vrot.lane.b32.xlu0 %v634, 102
        %v645 = vpop.permute.xlu0 %644
        %646 = vrot.lane.b32.xlu0 %v635, 102
        %v647 = vpop.permute.xlu0 %646
        %648 = vrot.lane.b32.xlu0 %v636, 102
        %v649 = vpop.permute.xlu0 %648
        %650 = vrot.lane.b32.xlu0 %v637, 102
        %v651 = vpop.permute.xlu0 %650
        %652 = vrot.lane.b32.xlu0 %v638, 102
        %v653 = vpop.permute.xlu0 %652
        %vm654 = vcmask 834560
        %v655 = vsel %vm654, %v645, %v647
        %v656 = vsel %vm654, %v647, %v649
        %v657 = vsel %vm654, %v649, %v651
        %v658 = vsel %vm654, %v651, %v653
        %663 = vst [vmem:[#allocation2 + $0x160] sm:$0xff] %v655
        %664 = vst [vmem:[#allocation2 + $0x168] sm:$0xff] %v656
        %665 = vst [vmem:[#allocation2 + $0x170] sm:$0xff] %v657
        %666 = vst [vmem:[#allocation2 + $0x178] sm:$0xff] %v658
        %v667 = vld [vmem:[%s264] sm:$0xff]
        %v668 = vld [vmem:[%s264 + $0x8] sm:$0xff]
        %v669 = vld [vmem:[%s264 + $0x10] sm:$0xff]
        %v670 = vld [vmem:[%s264 + $0x18] sm:$0xff]
        %v671 = vld [vmem:[%s264 + $0x20] sm:$0xff]
        %677 = vrot.lane.b32.xlu0 %v667, 101
        %v678 = vpop.permute.xlu0 %677
        %679 = vrot.lane.b32.xlu0 %v668, 101
        %v680 = vpop.permute.xlu0 %679
        %681 = vrot.lane.b32.xlu0 %v669, 101
        %v682 = vpop.permute.xlu0 %681
        %683 = vrot.lane.b32.xlu0 %v670, 101
        %v684 = vpop.permute.xlu0 %683
        %685 = vrot.lane.b32.xlu0 %v671, 101
        %v686 = vpop.permute.xlu0 %685
        %vm687 = vcmask 826368
        %v688 = vsel %vm687, %v678, %v680
        %v689 = vsel %vm687, %v680, %v682
        %v690 = vsel %vm687, %v682, %v684
        %v691 = vsel %vm687, %v684, %v686
        %696 = vst [vmem:[#allocation2 + $0x180] sm:$0xff] %v688
        %697 = vst [vmem:[#allocation2 + $0x188] sm:$0xff] %v689
        %698 = vst [vmem:[#allocation2 + $0x190] sm:$0xff] %v690
        %699 = vst [vmem:[#allocation2 + $0x198] sm:$0xff] %v691
        %v700 = vld [vmem:[%s264] sm:$0xff]
        %v701 = vld [vmem:[%s264 + $0x8] sm:$0xff]
        %v702 = vld [vmem:[%s264 + $0x10] sm:$0xff]
        %v703 = vld [vmem:[%s264 + $0x18] sm:$0xff]
        %v704 = vld [vmem:[%s264 + $0x20] sm:$0xff]
        %710 = vrot.lane.b32.xlu0 %v700, 100
        %v711 = vpop.permute.xlu0 %710
        %712 = vrot.lane.b32.xlu0 %v701, 100
        %v713 = vpop.permute.xlu0 %712
        %714 = vrot.lane.b32.xlu0 %v702, 100
        %v715 = vpop.permute.xlu0 %714
        %716 = vrot.lane.b32.xlu0 %v703, 100
        %v717 = vpop.permute.xlu0 %716
        %718 = vrot.lane.b32.xlu0 %v704, 100
        %v719 = vpop.permute.xlu0 %718
        %vm720 = vcmask 818176
        %v721 = vsel %vm720, %v711, %v713
        %v722 = vsel %vm720, %v713, %v715
        %v723 = vsel %vm720, %v715, %v717
        %v724 = vsel %vm720, %v717, %v719
        %729 = vst [vmem:[#allocation2 + $0x1a0] sm:$0xff] %v721
        %730 = vst [vmem:[#allocation2 + $0x1a8] sm:$0xff] %v722
        %731 = vst [vmem:[#allocation2 + $0x1b0] sm:$0xff] %v723
        %732 = vst [vmem:[#allocation2 + $0x1b8] sm:$0xff] %v724
        %v733 = vld [vmem:[%s264] sm:$0xff]
        %v734 = vld [vmem:[%s264 + $0x8] sm:$0xff]
        %v735 = vld [vmem:[%s264 + $0x10] sm:$0xff]
        %v736 = vld [vmem:[%s264 + $0x18] sm:$0xff]
        %v737 = vld [vmem:[%s264 + $0x20] sm:$0xff]
        %743 = vrot.lane.b32.xlu0 %v733, 84
        %v744 = vpop.permute.xlu0 %743
        %745 = vrot.lane.b32.xlu0 %v734, 84
        %v746 = vpop.permute.xlu0 %745
        %747 = vrot.lane.b32.xlu0 %v735, 84
        %v748 = vpop.permute.xlu0 %747
        %749 = vrot.lane.b32.xlu0 %v736, 84
        %v750 = vpop.permute.xlu0 %749
        %751 = vrot.lane.b32.xlu0 %v737, 84
        %v752 = vpop.permute.xlu0 %751
        %vm753 = vcmask 687104
        %v754 = vsel %vm753, %v744, %v746
        %v755 = vsel %vm753, %v746, %v748
        %v756 = vsel %vm753, %v748, %v750
        %v757 = vsel %vm753, %v750, %v752
        %762 = vst [vmem:[#allocation2 + $0x1c0] sm:$0xff] %v754
        %763 = vst [vmem:[#allocation2 + $0x1c8] sm:$0xff] %v755
        %764 = vst [vmem:[#allocation2 + $0x1d0] sm:$0xff] %v756
        %765 = vst [vmem:[#allocation2 + $0x1d8] sm:$0xff] %v757
        %v766 = vld [vmem:[%s264] sm:$0xff]
        %v767 = vld [vmem:[%s264 + $0x8] sm:$0xff]
        %v768 = vld [vmem:[%s264 + $0x10] sm:$0xff]
        %v769 = vld [vmem:[%s264 + $0x18] sm:$0xff]
        %v770 = vld [vmem:[%s264 + $0x20] sm:$0xff]
        %776 = vrot.lane.b32.xlu0 %v766, 83
        %v777 = vpop.permute.xlu0 %776
        %778 = vrot.lane.b32.xlu0 %v767, 83
        %v779 = vpop.permute.xlu0 %778
        %780 = vrot.lane.b32.xlu0 %v768, 83
        %v781 = vpop.permute.xlu0 %780
        %782 = vrot.lane.b32.xlu0 %v769, 83
        %v783 = vpop.permute.xlu0 %782
        %784 = vrot.lane.b32.xlu0 %v770, 83
        %v785 = vpop.permute.xlu0 %784
        %vm786 = vcmask 678912
        %v787 = vsel %vm786, %v777, %v779
        %v788 = vsel %vm786, %v779, %v781
        %v789 = vsel %vm786, %v781, %v783
        %v790 = vsel %vm786, %v783, %v785
        %795 = vst [vmem:[#allocation2 + $0x1e0] sm:$0xff] %v787
        %796 = vst [vmem:[#allocation2 + $0x1e8] sm:$0xff] %v788
        %797 = vst [vmem:[#allocation2 + $0x1f0] sm:$0xff] %v789
        %798 = vst [vmem:[#allocation2 + $0x1f8] sm:$0xff] %v790
        %v799 = vld [vmem:[%s264] sm:$0xff]
        %v800 = vld [vmem:[%s264 + $0x8] sm:$0xff]
        %v801 = vld [vmem:[%s264 + $0x10] sm:$0xff]
        %v802 = vld [vmem:[%s264 + $0x18] sm:$0xff]
        %v803 = vld [vmem:[%s264 + $0x20] sm:$0xff]
        %809 = vrot.lane.b32.xlu0 %v799, 82
        %v810 = vpop.permute.xlu0 %809
        %811 = vrot.lane.b32.xlu0 %v800, 82
        %v812 = vpop.permute.xlu0 %811
        %813 = vrot.lane.b32.xlu0 %v801, 82
        %v814 = vpop.permute.xlu0 %813
        %815 = vrot.lane.b32.xlu0 %v802, 82
        %v816 = vpop.permute.xlu0 %815
        %817 = vrot.lane.b32.xlu0 %v803, 82
        %v818 = vpop.permute.xlu0 %817
        %vm819 = vcmask 670720
        %v820 = vsel %vm819, %v810, %v812
        %v821 = vsel %vm819, %v812, %v814
        %v822 = vsel %vm819, %v814, %v816
        %v823 = vsel %vm819, %v816, %v818
        %828 = vst [vmem:[#allocation2 + $0x200] sm:$0xff] %v820
        %829 = vst [vmem:[#allocation2 + $0x208] sm:$0xff] %v821
        %830 = vst [vmem:[#allocation2 + $0x210] sm:$0xff] %v822
        %831 = vst [vmem:[#allocation2 + $0x218] sm:$0xff] %v823
        %v832 = vld [vmem:[%s264] sm:$0xff]
        %v833 = vld [vmem:[%s264 + $0x8] sm:$0xff]
        %v834 = vld [vmem:[%s264 + $0x10] sm:$0xff]
        %v835 = vld [vmem:[%s264 + $0x18] sm:$0xff]
        %v836 = vld [vmem:[%s264 + $0x20] sm:$0xff]
        %842 = vrot.lane.b32.xlu0 %v832, 81
        %v843 = vpop.permute.xlu0 %842
        %844 = vrot.lane.b32.xlu0 %v833, 81
        %v845 = vpop.permute.xlu0 %844
        %846 = vrot.lane.b32.xlu0 %v834, 81
        %v847 = vpop.permute.xlu0 %846
        %848 = vrot.lane.b32.xlu0 %v835, 81
        %v849 = vpop.permute.xlu0 %848
        %850 = vrot.lane.b32.xlu0 %v836, 81
        %v851 = vpop.permute.xlu0 %850
        %vm852 = vcmask 662528
        %v853 = vsel %vm852, %v843, %v845
        %v854 = vsel %vm852, %v845, %v847
        %v855 = vsel %vm852, %v847, %v849
        %v856 = vsel %vm852, %v849, %v851
        %861 = vst [vmem:[#allocation2 + $0x220] sm:$0xff] %v853
        %862 = vst [vmem:[#allocation2 + $0x228] sm:$0xff] %v854
        %863 = vst [vmem:[#allocation2 + $0x230] sm:$0xff] %v855
        %864 = vst [vmem:[#allocation2 + $0x238] sm:$0xff] %v856
        %v865 = vld [vmem:[%s264] sm:$0xff]
        %v866 = vld [vmem:[%s264 + $0x8] sm:$0xff]
        %v867 = vld [vmem:[%s264 + $0x10] sm:$0xff]
        %v868 = vld [vmem:[%s264 + $0x18] sm:$0xff]
        %v869 = vld [vmem:[%s264 + $0x20] sm:$0xff]
        %875 = vrot.lane.b32.xlu0 %v865, 80
        %v876 = vpop.permute.xlu0 %875
        %877 = vrot.lane.b32.xlu0 %v866, 80
        %v878 = vpop.permute.xlu0 %877
        %879 = vrot.lane.b32.xlu0 %v867, 80
        %v880 = vpop.permute.xlu0 %879
        %881 = vrot.lane.b32.xlu0 %v868, 80
        %v882 = vpop.permute.xlu0 %881
        %883 = vrot.lane.b32.xlu0 %v869, 80
        %v884 = vpop.permute.xlu0 %883
        %vm885 = vcmask 654336
        %v886 = vsel %vm885, %v876, %v878
        %v887 = vsel %vm885, %v878, %v880
        %v888 = vsel %vm885, %v880, %v882
        %v889 = vsel %vm885, %v882, %v884
        %894 = vst [vmem:[#allocation2 + $0x240] sm:$0xff] %v886
        %895 = vst [vmem:[#allocation2 + $0x248] sm:$0xff] %v887
        %896 = vst [vmem:[#allocation2 + $0x250] sm:$0xff] %v888
        %897 = vst [vmem:[#allocation2 + $0x258] sm:$0xff] %v889
        %v898 = vld [vmem:[%s264] sm:$0xff]
        %v899 = vld [vmem:[%s264 + $0x8] sm:$0xff]
        %v900 = vld [vmem:[%s264 + $0x10] sm:$0xff]
        %v901 = vld [vmem:[%s264 + $0x18] sm:$0xff]
        %v902 = vld [vmem:[%s264 + $0x20] sm:$0xff]
        %908 = vrot.lane.b32.xlu0 %v898, 79
        %v909 = vpop.permute.xlu0 %908
        %910 = vrot.lane.b32.xlu0 %v899, 79
        %v911 = vpop.permute.xlu0 %910
        %912 = vrot.lane.b32.xlu0 %v900, 79
        %v913 = vpop.permute.xlu0 %912
        %914 = vrot.lane.b32.xlu0 %v901, 79
        %v915 = vpop.permute.xlu0 %914
        %916 = vrot.lane.b32.xlu0 %v902, 79
        %v917 = vpop.permute.xlu0 %916
        %vm918 = vcmask 646144
        %v919 = vsel %vm918, %v909, %v911
        %v920 = vsel %vm918, %v911, %v913
        %v921 = vsel %vm918, %v913, %v915
        %v922 = vsel %vm918, %v915, %v917
        %927 = vst [vmem:[#allocation2 + $0x260] sm:$0xff] %v919
        %928 = vst [vmem:[#allocation2 + $0x268] sm:$0xff] %v920
        %929 = vst [vmem:[#allocation2 + $0x270] sm:$0xff] %v921
        %930 = vst [vmem:[#allocation2 + $0x278] sm:$0xff] %v922
        %v931 = vld [vmem:[%s264] sm:$0xff]
        %v932 = vld [vmem:[%s264 + $0x8] sm:$0xff]
        %v933 = vld [vmem:[%s264 + $0x10] sm:$0xff]
        %v934 = vld [vmem:[%s264 + $0x18] sm:$0xff]
        %v935 = vld [vmem:[%s264 + $0x20] sm:$0xff]
        %941 = vrot.lane.b32.xlu0 %v931, 78
        %v942 = vpop.permute.xlu0 %941
        %943 = vrot.lane.b32.xlu0 %v932, 78
        %v944 = vpop.permute.xlu0 %943
        %945 = vrot.lane.b32.xlu0 %v933, 78
        %v946 = vpop.permute.xlu0 %945
        %947 = vrot.lane.b32.xlu0 %v934, 78
        %v948 = vpop.permute.xlu0 %947
        %949 = vrot.lane.b32.xlu0 %v935, 78
        %v950 = vpop.permute.xlu0 %949
        %vm951 = vcmask 637952
        %v952 = vsel %vm951, %v942, %v944
        %v953 = vsel %vm951, %v944, %v946
        %v954 = vsel %vm951, %v946, %v948
        %v955 = vsel %vm951, %v948, %v950
        %960 = vst [vmem:[#allocation2 + $0x280] sm:$0xff] %v952
        %961 = vst [vmem:[#allocation2 + $0x288] sm:$0xff] %v953
        %962 = vst [vmem:[#allocation2 + $0x290] sm:$0xff] %v954
        %963 = vst [vmem:[#allocation2 + $0x298] sm:$0xff] %v955
        %v964 = vld [vmem:[%s264] sm:$0xff]
        %v965 = vld [vmem:[%s264 + $0x8] sm:$0xff]
        %v966 = vld [vmem:[%s264 + $0x10] sm:$0xff]
        %v967 = vld [vmem:[%s264 + $0x18] sm:$0xff]
        %v968 = vld [vmem:[%s264 + $0x20] sm:$0xff]
        %974 = vrot.lane.b32.xlu0 %v964, 62
        %v975 = vpop.permute.xlu0 %974
        %976 = vrot.lane.b32.xlu0 %v965, 62
        %v977 = vpop.permute.xlu0 %976
        %978 = vrot.lane.b32.xlu0 %v966, 62
        %v979 = vpop.permute.xlu0 %978
        %980 = vrot.lane.b32.xlu0 %v967, 62
        %v981 = vpop.permute.xlu0 %980
        %982 = vrot.lane.b32.xlu0 %v968, 62
        %v983 = vpop.permute.xlu0 %982
        %vm984 = vcmask 506880
        %v985 = vsel %vm984, %v975, %v977
        %v986 = vsel %vm984, %v977, %v979
        %v987 = vsel %vm984, %v979, %v981
        %v988 = vsel %vm984, %v981, %v983
        %993 = vst [vmem:[#allocation2 + $0x2a0] sm:$0xff] %v985
        %994 = vst [vmem:[#allocation2 + $0x2a8] sm:$0xff] %v986
        %995 = vst [vmem:[#allocation2 + $0x2b0] sm:$0xff] %v987
        %996 = vst [vmem:[#allocation2 + $0x2b8] sm:$0xff] %v988
        %v997 = vld [vmem:[%s264] sm:$0xff]
        %v998 = vld [vmem:[%s264 + $0x8] sm:$0xff]
        %v999 = vld [vmem:[%s264 + $0x10] sm:$0xff]
        %v1000 = vld [vmem:[%s264 + $0x18] sm:$0xff]
        %v1001 = vld [vmem:[%s264 + $0x20] sm:$0xff]
        %1007 = vrot.lane.b32.xlu0 %v997, 61
        %v1008 = vpop.permute.xlu0 %1007
        %1009 = vrot.lane.b32.xlu0 %v998, 61
        %v1010 = vpop.permute.xlu0 %1009
        %1011 = vrot.lane.b32.xlu0 %v999, 61
        %v1012 = vpop.permute.xlu0 %1011
        %1013 = vrot.lane.b32.xlu0 %v1000, 61
        %v1014 = vpop.permute.xlu0 %1013
        %1015 = vrot.lane.b32.xlu0 %v1001, 61
        %v1016 = vpop.permute.xlu0 %1015
        %vm1017 = vcmask 498688
        %v1018 = vsel %vm1017, %v1008, %v1010
        %v1019 = vsel %vm1017, %v1010, %v1012
        %v1020 = vsel %vm1017, %v1012, %v1014
        %v1021 = vsel %vm1017, %v1014, %v1016
        %1026 = vst [vmem:[#allocation2 + $0x2c0] sm:$0xff] %v1018
        %1027 = vst [vmem:[#allocation2 + $0x2c8] sm:$0xff] %v1019
        %1028 = vst [vmem:[#allocation2 + $0x2d0] sm:$0xff] %v1020
        %1029 = vst [vmem:[#allocation2 + $0x2d8] sm:$0xff] %v1021
        %v1030 = vld [vmem:[%s264] sm:$0xff]
        %v1031 = vld [vmem:[%s264 + $0x8] sm:$0xff]
        %v1032 = vld [vmem:[%s264 + $0x10] sm:$0xff]
        %v1033 = vld [vmem:[%s264 + $0x18] sm:$0xff]
        %v1034 = vld [vmem:[%s264 + $0x20] sm:$0xff]
        %1040 = vrot.lane.b32.xlu0 %v1030, 60
        %v1041 = vpop.permute.xlu0 %1040
        %1042 = vrot.lane.b32.xlu0 %v1031, 60
        %v1043 = vpop.permute.xlu0 %1042
        %1044 = vrot.lane.b32.xlu0 %v1032, 60
        %v1045 = vpop.permute.xlu0 %1044
        %1046 = vrot.lane.b32.xlu0 %v1033, 60
        %v1047 = vpop.permute.xlu0 %1046
        %1048 = vrot.lane.b32.xlu0 %v1034, 60
        %v1049 = vpop.permute.xlu0 %1048
        %vm1050 = vcmask 490496
        %v1051 = vsel %vm1050, %v1041, %v1043
        %v1052 = vsel %vm1050, %v1043, %v1045
        %v1053 = vsel %vm1050, %v1045, %v1047
        %v1054 = vsel %vm1050, %v1047, %v1049
        %1059 = vst [vmem:[#allocation2 + $0x2e0] sm:$0xff] %v1051
        %1060 = vst [vmem:[#allocation2 + $0x2e8] sm:$0xff] %v1052
        %1061 = vst [vmem:[#allocation2 + $0x2f0] sm:$0xff] %v1053
        %1062 = vst [vmem:[#allocation2 + $0x2f8] sm:$0xff] %v1054
        %v1063 = vld [vmem:[%s264] sm:$0xff]
        %v1064 = vld [vmem:[%s264 + $0x8] sm:$0xff]
        %v1065 = vld [vmem:[%s264 + $0x10] sm:$0xff]
        %v1066 = vld [vmem:[%s264 + $0x18] sm:$0xff]
        %v1067 = vld [vmem:[%s264 + $0x20] sm:$0xff]
        %1073 = vrot.lane.b32.xlu0 %v1063, 59
        %v1074 = vpop.permute.xlu0 %1073
        %1075 = vrot.lane.b32.xlu0 %v1064, 59
        %v1076 = vpop.permute.xlu0 %1075
        %1077 = vrot.lane.b32.xlu0 %v1065, 59
        %v1078 = vpop.permute.xlu0 %1077
        %1079 = vrot.lane.b32.xlu0 %v1066, 59
        %v1080 = vpop.permute.xlu0 %1079
        %1081 = vrot.lane.b32.xlu0 %v1067, 59
        %v1082 = vpop.permute.xlu0 %1081
        %vm1083 = vcmask 482304
        %v1084 = vsel %vm1083, %v1074, %v1076
        %v1085 = vsel %vm1083, %v1076, %v1078
        %v1086 = vsel %vm1083, %v1078, %v1080
        %v1087 = vsel %vm1083, %v1080, %v1082
        %1092 = vst [vmem:[#allocation2 + $0x300] sm:$0xff] %v1084
        %1093 = vst [vmem:[#allocation2 + $0x308] sm:$0xff] %v1085
        %1094 = vst [vmem:[#allocation2 + $0x310] sm:$0xff] %v1086
        %1095 = vst [vmem:[#allocation2 + $0x318] sm:$0xff] %v1087
        %v1096 = vld [vmem:[%s264] sm:$0xff]
        %v1097 = vld [vmem:[%s264 + $0x8] sm:$0xff]
        %v1098 = vld [vmem:[%s264 + $0x10] sm:$0xff]
        %v1099 = vld [vmem:[%s264 + $0x18] sm:$0xff]
        %v1100 = vld [vmem:[%s264 + $0x20] sm:$0xff]
        %1106 = vrot.lane.b32.xlu0 %v1096, 58
        %v1107 = vpop.permute.xlu0 %1106
        %1108 = vrot.lane.b32.xlu0 %v1097, 58
        %v1109 = vpop.permute.xlu0 %1108
        %1110 = vrot.lane.b32.xlu0 %v1098, 58
        %v1111 = vpop.permute.xlu0 %1110
        %1112 = vrot.lane.b32.xlu0 %v1099, 58
        %v1113 = vpop.permute.xlu0 %1112
        %1114 = vrot.lane.b32.xlu0 %v1100, 58
        %v1115 = vpop.permute.xlu0 %1114
        %vm1116 = vcmask 474112
        %v1117 = vsel %vm1116, %v1107, %v1109
        %v1118 = vsel %vm1116, %v1109, %v1111
        %v1119 = vsel %vm1116, %v1111, %v1113
        %v1120 = vsel %vm1116, %v1113, %v1115
        %1125 = vst [vmem:[#allocation2 + $0x320] sm:$0xff] %v1117
        %1126 = vst [vmem:[#allocation2 + $0x328] sm:$0xff] %v1118
        %1127 = vst [vmem:[#allocation2 + $0x330] sm:$0xff] %v1119
        %1128 = vst [vmem:[#allocation2 + $0x338] sm:$0xff] %v1120
        %v1129 = vld [vmem:[%s264] sm:$0xff]
        %v1130 = vld [vmem:[%s264 + $0x8] sm:$0xff]
        %v1131 = vld [vmem:[%s264 + $0x10] sm:$0xff]
        %v1132 = vld [vmem:[%s264 + $0x18] sm:$0xff]
        %v1133 = vld [vmem:[%s264 + $0x20] sm:$0xff]
        %1139 = vrot.lane.b32.xlu0 %v1129, 57
        %v1140 = vpop.permute.xlu0 %1139
        %1141 = vrot.lane.b32.xlu0 %v1130, 57
        %v1142 = vpop.permute.xlu0 %1141
        %1143 = vrot.lane.b32.xlu0 %v1131, 57
        %v1144 = vpop.permute.xlu0 %1143
        %1145 = vrot.lane.b32.xlu0 %v1132, 57
        %v1146 = vpop.permute.xlu0 %1145
        %1147 = vrot.lane.b32.xlu0 %v1133, 57
        %v1148 = vpop.permute.xlu0 %1147
        %vm1149 = vcmask 465920
        %v1150 = vsel %vm1149, %v1140, %v1142
        %v1151 = vsel %vm1149, %v1142, %v1144
        %v1152 = vsel %vm1149, %v1144, %v1146
        %v1153 = vsel %vm1149, %v1146, %v1148
        %1158 = vst [vmem:[#allocation2 + $0x340] sm:$0xff] %v1150
        %1159 = vst [vmem:[#allocation2 + $0x348] sm:$0xff] %v1151
        %1160 = vst [vmem:[#allocation2 + $0x350] sm:$0xff] %v1152
        %1161 = vst [vmem:[#allocation2 + $0x358] sm:$0xff] %v1153
        %v1162 = vld [vmem:[%s264] sm:$0xff]
        %v1163 = vld [vmem:[%s264 + $0x8] sm:$0xff]
        %v1164 = vld [vmem:[%s264 + $0x10] sm:$0xff]
        %v1165 = vld [vmem:[%s264 + $0x18] sm:$0xff]
        %v1166 = vld [vmem:[%s264 + $0x20] sm:$0xff]
        %1172 = vrot.lane.b32.xlu0 %v1162, 56
        %v1173 = vpop.permute.xlu0 %1172
        %1174 = vrot.lane.b32.xlu0 %v1163, 56
        %v1175 = vpop.permute.xlu0 %1174
        %1176 = vrot.lane.b32.xlu0 %v1164, 56
        %v1177 = vpop.permute.xlu0 %1176
        %1178 = vrot.lane.b32.xlu0 %v1165, 56
        %v1179 = vpop.permute.xlu0 %1178
        %1180 = vrot.lane.b32.xlu0 %v1166, 56
        %v1181 = vpop.permute.xlu0 %1180
        %vm1182 = vcmask 457728
        %v1183 = vsel %vm1182, %v1173, %v1175
        %v1184 = vsel %vm1182, %v1175, %v1177
        %v1185 = vsel %vm1182, %v1177, %v1179
        %v1186 = vsel %vm1182, %v1179, %v1181
        %1191 = vst [vmem:[#allocation2 + $0x360] sm:$0xff] %v1183
        %1192 = vst [vmem:[#allocation2 + $0x368] sm:$0xff] %v1184
        %1193 = vst [vmem:[#allocation2 + $0x370] sm:$0xff] %v1185
        %1194 = vst [vmem:[#allocation2 + $0x378] sm:$0xff] %v1186
        %v1195 = vld [vmem:[%s264] sm:$0xff]
        %v1196 = vld [vmem:[%s264 + $0x8] sm:$0xff]
        %v1197 = vld [vmem:[%s264 + $0x10] sm:$0xff]
        %v1198 = vld [vmem:[%s264 + $0x18] sm:$0xff]
        %v1199 = vld [vmem:[%s264 + $0x20] sm:$0xff]
        %1205 = vrot.lane.b32.xlu0 %v1195, 40
        %v1206 = vpop.permute.xlu0 %1205
        %1207 = vrot.lane.b32.xlu0 %v1196, 40
        %v1208 = vpop.permute.xlu0 %1207
        %1209 = vrot.lane.b32.xlu0 %v1197, 40
        %v1210 = vpop.permute.xlu0 %1209
        %1211 = vrot.lane.b32.xlu0 %v1198, 40
        %v1212 = vpop.permute.xlu0 %1211
        %1213 = vrot.lane.b32.xlu0 %v1199, 40
        %v1214 = vpop.permute.xlu0 %1213
        %vm1215 = vcmask 326656
        %v1216 = vsel %vm1215, %v1206, %v1208
        %v1217 = vsel %vm1215, %v1208, %v1210
        %v1218 = vsel %vm1215, %v1210, %v1212
        %v1219 = vsel %vm1215, %v1212, %v1214
        %1224 = vst [vmem:[#allocation2 + $0x380] sm:$0xff] %v1216
        %1225 = vst [vmem:[#allocation2 + $0x388] sm:$0xff] %v1217
        %1226 = vst [vmem:[#allocation2 + $0x390] sm:$0xff] %v1218
        %1227 = vst [vmem:[#allocation2 + $0x398] sm:$0xff] %v1219
        %v1228 = vld [vmem:[%s264] sm:$0xff]
        %v1229 = vld [vmem:[%s264 + $0x8] sm:$0xff]
        %v1230 = vld [vmem:[%s264 + $0x10] sm:$0xff]
        %v1231 = vld [vmem:[%s264 + $0x18] sm:$0xff]
        %v1232 = vld [vmem:[%s264 + $0x20] sm:$0xff]
        %1238 = vrot.lane.b32.xlu0 %v1228, 39
        %v1239 = vpop.permute.xlu0 %1238
        %1240 = vrot.lane.b32.xlu0 %v1229, 39
        %v1241 = vpop.permute.xlu0 %1240
        %1242 = vrot.lane.b32.xlu0 %v1230, 39
        %v1243 = vpop.permute.xlu0 %1242
        %1244 = vrot.lane.b32.xlu0 %v1231, 39
        %v1245 = vpop.permute.xlu0 %1244
        %1246 = vrot.lane.b32.xlu0 %v1232, 39
        %v1247 = vpop.permute.xlu0 %1246
        %vm1248 = vcmask 318464
        %v1249 = vsel %vm1248, %v1239, %v1241
        %v1250 = vsel %vm1248, %v1241, %v1243
        %v1251 = vsel %vm1248, %v1243, %v1245
        %v1252 = vsel %vm1248, %v1245, %v1247
        %1257 = vst [vmem:[#allocation2 + $0x3a0] sm:$0xff] %v1249
        %1258 = vst [vmem:[#allocation2 + $0x3a8] sm:$0xff] %v1250
        %1259 = vst [vmem:[#allocation2 + $0x3b0] sm:$0xff] %v1251
        %1260 = vst [vmem:[#allocation2 + $0x3b8] sm:$0xff] %v1252
        %v1261 = vld [vmem:[%s264] sm:$0xff]
        %v1262 = vld [vmem:[%s264 + $0x8] sm:$0xff]
        %v1263 = vld [vmem:[%s264 + $0x10] sm:$0xff]
        %v1264 = vld [vmem:[%s264 + $0x18] sm:$0xff]
        %v1265 = vld [vmem:[%s264 + $0x20] sm:$0xff]
        %1271 = vrot.lane.b32.xlu0 %v1261, 38
        %v1272 = vpop.permute.xlu0 %1271
        %1273 = vrot.lane.b32.xlu0 %v1262, 38
        %v1274 = vpop.permute.xlu0 %1273
        %1275 = vrot.lane.b32.xlu0 %v1263, 38
        %v1276 = vpop.permute.xlu0 %1275
        %1277 = vrot.lane.b32.xlu0 %v1264, 38
        %v1278 = vpop.permute.xlu0 %1277
        %1279 = vrot.lane.b32.xlu0 %v1265, 38
        %v1280 = vpop.permute.xlu0 %1279
        %vm1281 = vcmask 310272
        %v1282 = vsel %vm1281, %v1272, %v1274
        %v1283 = vsel %vm1281, %v1274, %v1276
        %v1284 = vsel %vm1281, %v1276, %v1278
        %v1285 = vsel %vm1281, %v1278, %v1280
        %1290 = vst [vmem:[#allocation2 + $0x3c0] sm:$0xff] %v1282
        %1291 = vst [vmem:[#allocation2 + $0x3c8] sm:$0xff] %v1283
        %1292 = vst [vmem:[#allocation2 + $0x3d0] sm:$0xff] %v1284
        %1293 = vst [vmem:[#allocation2 + $0x3d8] sm:$0xff] %v1285
        %v1294 = vld [vmem:[%s264] sm:$0xff]
        %v1295 = vld [vmem:[%s264 + $0x8] sm:$0xff]
        %v1296 = vld [vmem:[%s264 + $0x10] sm:$0xff]
        %v1297 = vld [vmem:[%s264 + $0x18] sm:$0xff]
        %v1298 = vld [vmem:[%s264 + $0x20] sm:$0xff]
        %1304 = vrot.lane.b32.xlu0 %v1294, 37
        %v1305 = vpop.permute.xlu0 %1304
        %1306 = vrot.lane.b32.xlu0 %v1295, 37
        %v1307 = vpop.permute.xlu0 %1306
        %1308 = vrot.lane.b32.xlu0 %v1296, 37
        %v1309 = vpop.permute.xlu0 %1308
        %1310 = vrot.lane.b32.xlu0 %v1297, 37
        %v1311 = vpop.permute.xlu0 %1310
        %1312 = vrot.lane.b32.xlu0 %v1298, 37
        %v1313 = vpop.permute.xlu0 %1312
        %vm1314 = vcmask 302080
        %v1315 = vsel %vm1314, %v1305, %v1307
        %v1316 = vsel %vm1314, %v1307, %v1309
        %v1317 = vsel %vm1314, %v1309, %v1311
        %v1318 = vsel %vm1314, %v1311, %v1313
        %1323 = vst [vmem:[#allocation2 + $0x3e0] sm:$0xff] %v1315
        %1324 = vst [vmem:[#allocation2 + $0x3e8] sm:$0xff] %v1316
        %1325 = vst [vmem:[#allocation2 + $0x3f0] sm:$0xff] %v1317
        %1326 = vst [vmem:[#allocation2 + $0x3f8] sm:$0xff] %v1318
        %v1327 = vld [vmem:[%s264] sm:$0xff]
        %v1328 = vld [vmem:[%s264 + $0x8] sm:$0xff]
        %v1329 = vld [vmem:[%s264 + $0x10] sm:$0xff]
        %v1330 = vld [vmem:[%s264 + $0x18] sm:$0xff]
        %v1331 = vld [vmem:[%s264 + $0x20] sm:$0xff]
        %1337 = vrot.lane.b32.xlu0 %v1327, 36
        %v1338 = vpop.permute.xlu0 %1337
        %1339 = vrot.lane.b32.xlu0 %v1328, 36
        %v1340 = vpop.permute.xlu0 %1339
        %1341 = vrot.lane.b32.xlu0 %v1329, 36
        %v1342 = vpop.permute.xlu0 %1341
        %1343 = vrot.lane.b32.xlu0 %v1330, 36
        %v1344 = vpop.permute.xlu0 %1343
        %1345 = vrot.lane.b32.xlu0 %v1331, 36
        %v1346 = vpop.permute.xlu0 %1345
        %vm1347 = vcmask 293888
        %v1348 = vsel %vm1347, %v1338, %v1340
        %v1349 = vsel %vm1347, %v1340, %v1342
        %v1350 = vsel %vm1347, %v1342, %v1344
        %v1351 = vsel %vm1347, %v1344, %v1346
        %1356 = vst [vmem:[#allocation2 + $0x400] sm:$0xff] %v1348
        %1357 = vst [vmem:[#allocation2 + $0x408] sm:$0xff] %v1349
        %1358 = vst [vmem:[#allocation2 + $0x410] sm:$0xff] %v1350
        %1359 = vst [vmem:[#allocation2 + $0x418] sm:$0xff] %v1351
        %v1360 = vld [vmem:[%s264] sm:$0xff]
        %v1361 = vld [vmem:[%s264 + $0x8] sm:$0xff]
        %v1362 = vld [vmem:[%s264 + $0x10] sm:$0xff]
        %v1363 = vld [vmem:[%s264 + $0x18] sm:$0xff]
        %v1364 = vld [vmem:[%s264 + $0x20] sm:$0xff]
        %1370 = vrot.lane.b32.xlu0 %v1360, 35
        %v1371 = vpop.permute.xlu0 %1370
        %1372 = vrot.lane.b32.xlu0 %v1361, 35
        %v1373 = vpop.permute.xlu0 %1372
        %1374 = vrot.lane.b32.xlu0 %v1362, 35
        %v1375 = vpop.permute.xlu0 %1374
        %1376 = vrot.lane.b32.xlu0 %v1363, 35
        %v1377 = vpop.permute.xlu0 %1376
        %1378 = vrot.lane.b32.xlu0 %v1364, 35
        %v1379 = vpop.permute.xlu0 %1378
        %vm1380 = vcmask 285696
        %v1381 = vsel %vm1380, %v1371, %v1373
        %v1382 = vsel %vm1380, %v1373, %v1375
        %v1383 = vsel %vm1380, %v1375, %v1377
        %v1384 = vsel %vm1380, %v1377, %v1379
        %1389 = vst [vmem:[#allocation2 + $0x420] sm:$0xff] %v1381
        %1390 = vst [vmem:[#allocation2 + $0x428] sm:$0xff] %v1382
        %1391 = vst [vmem:[#allocation2 + $0x430] sm:$0xff] %v1383
        %1392 = vst [vmem:[#allocation2 + $0x438] sm:$0xff] %v1384
        %v1393 = vld [vmem:[%s264] sm:$0xff]
        %v1394 = vld [vmem:[%s264 + $0x8] sm:$0xff]
        %v1395 = vld [vmem:[%s264 + $0x10] sm:$0xff]
        %v1396 = vld [vmem:[%s264 + $0x18] sm:$0xff]
        %v1397 = vld [vmem:[%s264 + $0x20] sm:$0xff]
        %1403 = vrot.lane.b32.xlu0 %v1393, 34
        %v1404 = vpop.permute.xlu0 %1403
        %1405 = vrot.lane.b32.xlu0 %v1394, 34
        %v1406 = vpop.permute.xlu0 %1405
        %1407 = vrot.lane.b32.xlu0 %v1395, 34
        %v1408 = vpop.permute.xlu0 %1407
        %1409 = vrot.lane.b32.xlu0 %v1396, 34
        %v1410 = vpop.permute.xlu0 %1409
        %1411 = vrot.lane.b32.xlu0 %v1397, 34
        %v1412 = vpop.permute.xlu0 %1411
        %vm1413 = vcmask 277504
        %v1414 = vsel %vm1413, %v1404, %v1406
        %v1415 = vsel %vm1413, %v1406, %v1408
        %v1416 = vsel %vm1413, %v1408, %v1410
        %v1417 = vsel %vm1413, %v1410, %v1412
        %1422 = vst [vmem:[#allocation2 + $0x440] sm:$0xff] %v1414
        %1423 = vst [vmem:[#allocation2 + $0x448] sm:$0xff] %v1415
        %1424 = vst [vmem:[#allocation2 + $0x450] sm:$0xff] %v1416
        %1425 = vst [vmem:[#allocation2 + $0x458] sm:$0xff] %v1417
        %v1426 = vld [vmem:[%s264] sm:$0xff]
        %v1427 = vld [vmem:[%s264 + $0x8] sm:$0xff]
        %v1428 = vld [vmem:[%s264 + $0x10] sm:$0xff]
        %v1429 = vld [vmem:[%s264 + $0x18] sm:$0xff]
        %v1430 = vld [vmem:[%s264 + $0x20] sm:$0xff]
        %1436 = vrot.lane.b32.xlu0 %v1426, 18
        %v1437 = vpop.permute.xlu0 %1436
        %1438 = vrot.lane.b32.xlu0 %v1427, 18
        %v1439 = vpop.permute.xlu0 %1438
        %1440 = vrot.lane.b32.xlu0 %v1428, 18
        %v1441 = vpop.permute.xlu0 %1440
        %1442 = vrot.lane.b32.xlu0 %v1429, 18
        %v1443 = vpop.permute.xlu0 %1442
        %1444 = vrot.lane.b32.xlu0 %v1430, 18
        %v1445 = vpop.permute.xlu0 %1444
        %vm1446 = vcmask 146432
        %v1447 = vsel %vm1446, %v1437, %v1439
        %v1448 = vsel %vm1446, %v1439, %v1441
        %v1449 = vsel %vm1446, %v1441, %v1443
        %v1450 = vsel %vm1446, %v1443, %v1445
        %1455 = vst [vmem:[#allocation2 + $0x460] sm:$0xff] %v1447
        %1456 = vst [vmem:[#allocation2 + $0x468] sm:$0xff] %v1448
        %1457 = vst [vmem:[#allocation2 + $0x470] sm:$0xff] %v1449
        %1458 = vst [vmem:[#allocation2 + $0x478] sm:$0xff] %v1450
        %v1459 = vld [vmem:[%s264] sm:$0xff]
        %v1460 = vld [vmem:[%s264 + $0x8] sm:$0xff]
        %v1461 = vld [vmem:[%s264 + $0x10] sm:$0xff]
        %v1462 = vld [vmem:[%s264 + $0x18] sm:$0xff]
        %v1463 = vld [vmem:[%s264 + $0x20] sm:$0xff]
        %1469 = vrot.lane.b32.xlu0 %v1459, 17
        %v1470 = vpop.permute.xlu0 %1469
        %1471 = vrot.lane.b32.xlu0 %v1460, 17
        %v1472 = vpop.permute.xlu0 %1471
        %1473 = vrot.lane.b32.xlu0 %v1461, 17
        %v1474 = vpop.permute.xlu0 %1473
        %1475 = vrot.lane.b32.xlu0 %v1462, 17
        %v1476 = vpop.permute.xlu0 %1475
        %1477 = vrot.lane.b32.xlu0 %v1463, 17
        %v1478 = vpop.permute.xlu0 %1477
        %vm1479 = vcmask 138240
        %v1480 = vsel %vm1479, %v1470, %v1472
        %v1481 = vsel %vm1479, %v1472, %v1474
        %v1482 = vsel %vm1479, %v1474, %v1476
        %v1483 = vsel %vm1479, %v1476, %v1478
        %1488 = vst [vmem:[#allocation2 + $0x480] sm:$0xff] %v1480
        %1489 = vst [vmem:[#allocation2 + $0x488] sm:$0xff] %v1481
        %1490 = vst [vmem:[#allocation2 + $0x490] sm:$0xff] %v1482
        %1491 = vst [vmem:[#allocation2 + $0x498] sm:$0xff] %v1483
        %v1492 = vld [vmem:[%s264] sm:$0xff]
        %v1493 = vld [vmem:[%s264 + $0x8] sm:$0xff]
        %v1494 = vld [vmem:[%s264 + $0x10] sm:$0xff]
        %v1495 = vld [vmem:[%s264 + $0x18] sm:$0xff]
        %v1496 = vld [vmem:[%s264 + $0x20] sm:$0xff]
        %1502 = vrot.lane.b32.xlu0 %v1492, 16
        %v1503 = vpop.permute.xlu0 %1502
        %1504 = vrot.lane.b32.xlu0 %v1493, 16
        %v1505 = vpop.permute.xlu0 %1504
        %1506 = vrot.lane.b32.xlu0 %v1494, 16
        %v1507 = vpop.permute.xlu0 %1506
        %1508 = vrot.lane.b32.xlu0 %v1495, 16
        %v1509 = vpop.permute.xlu0 %1508
        %1510 = vrot.lane.b32.xlu0 %v1496, 16
        %v1511 = vpop.permute.xlu0 %1510
        %vm1512 = vcmask 130048
        %v1513 = vsel %vm1512, %v1503, %v1505
        %v1514 = vsel %vm1512, %v1505, %v1507
        %v1515 = vsel %vm1512, %v1507, %v1509
        %v1516 = vsel %vm1512, %v1509, %v1511
        %1521 = vst [vmem:[#allocation2 + $0x4a0] sm:$0xff] %v1513
        %1522 = vst [vmem:[#allocation2 + $0x4a8] sm:$0xff] %v1514
        %1523 = vst [vmem:[#allocation2 + $0x4b0] sm:$0xff] %v1515
        %1524 = vst [vmem:[#allocation2 + $0x4b8] sm:$0xff] %v1516
        %v1525 = vld [vmem:[%s264] sm:$0xff]
        %v1526 = vld [vmem:[%s264 + $0x8] sm:$0xff]
        %v1527 = vld [vmem:[%s264 + $0x10] sm:$0xff]
        %v1528 = vld [vmem:[%s264 + $0x18] sm:$0xff]
        %v1529 = vld [vmem:[%s264 + $0x20] sm:$0xff]
        %1535 = vrot.lane.b32.xlu0 %v1525, 15
        %v1536 = vpop.permute.xlu0 %1535
        %1537 = vrot.lane.b32.xlu0 %v1526, 15
        %v1538 = vpop.permute.xlu0 %1537
        %1539 = vrot.lane.b32.xlu0 %v1527, 15
        %v1540 = vpop.permute.xlu0 %1539
        %1541 = vrot.lane.b32.xlu0 %v1528, 15
        %v1542 = vpop.permute.xlu0 %1541
        %1543 = vrot.lane.b32.xlu0 %v1529, 15
        %v1544 = vpop.permute.xlu0 %1543
        %vm1545 = vcmask 121856
        %v1546 = vsel %vm1545, %v1536, %v1538
        %v1547 = vsel %vm1545, %v1538, %v1540
        %v1548 = vsel %vm1545, %v1540, %v1542
        %v1549 = vsel %vm1545, %v1542, %v1544
        %1554 = vst [vmem:[#allocation2 + $0x4c0] sm:$0xff] %v1546
        %1555 = vst [vmem:[#allocation2 + $0x4c8] sm:$0xff] %v1547
        %1556 = vst [vmem:[#allocation2 + $0x4d0] sm:$0xff] %v1548
        %1557 = vst [vmem:[#allocation2 + $0x4d8] sm:$0xff] %v1549
        %v1558 = vld [vmem:[%s264] sm:$0xff]
        %v1559 = vld [vmem:[%s264 + $0x8] sm:$0xff]
        %v1560 = vld [vmem:[%s264 + $0x10] sm:$0xff]
        %v1561 = vld [vmem:[%s264 + $0x18] sm:$0xff]
        %v1562 = vld [vmem:[%s264 + $0x20] sm:$0xff]
        %1568 = vrot.lane.b32.xlu0 %v1558, 14
        %v1569 = vpop.permute.xlu0 %1568
        %1570 = vrot.lane.b32.xlu0 %v1559, 14
        %v1571 = vpop.permute.xlu0 %1570
        %1572 = vrot.lane.b32.xlu0 %v1560, 14
        %v1573 = vpop.permute.xlu0 %1572
        %1574 = vrot.lane.b32.xlu0 %v1561, 14
        %v1575 = vpop.permute.xlu0 %1574
        %1576 = vrot.lane.b32.xlu0 %v1562, 14
        %v1577 = vpop.permute.xlu0 %1576
        %vm1578 = vcmask 113664
        %v1579 = vsel %vm1578, %v1569, %v1571
        %v1580 = vsel %vm1578, %v1571, %v1573
        %v1581 = vsel %vm1578, %v1573, %v1575
        %v1582 = vsel %vm1578, %v1575, %v1577
        %1587 = vst [vmem:[#allocation2 + $0x4e0] sm:$0xff] %v1579
        %1588 = vst [vmem:[#allocation2 + $0x4e8] sm:$0xff] %v1580
        %1589 = vst [vmem:[#allocation2 + $0x4f0] sm:$0xff] %v1581
        %1590 = vst [vmem:[#allocation2 + $0x4f8] sm:$0xff] %v1582
        %v1591 = vld [vmem:[%s264] sm:$0xff]
        %v1592 = vld [vmem:[%s264 + $0x8] sm:$0xff]
        %v1593 = vld [vmem:[%s264 + $0x10] sm:$0xff]
        %v1594 = vld [vmem:[%s264 + $0x18] sm:$0xff]
        %v1595 = vld [vmem:[%s264 + $0x20] sm:$0xff]
        %1601 = vrot.lane.b32.xlu0 %v1591, 13
        %v1602 = vpop.permute.xlu0 %1601
        %1603 = vrot.lane.b32.xlu0 %v1592, 13
        %v1604 = vpop.permute.xlu0 %1603
        %1605 = vrot.lane.b32.xlu0 %v1593, 13
        %v1606 = vpop.permute.xlu0 %1605
        %1607 = vrot.lane.b32.xlu0 %v1594, 13
        %v1608 = vpop.permute.xlu0 %1607
        %1609 = vrot.lane.b32.xlu0 %v1595, 13
        %v1610 = vpop.permute.xlu0 %1609
        %vm1611 = vcmask 105472
        %v1612 = vsel %vm1611, %v1602, %v1604
        %v1613 = vsel %vm1611, %v1604, %v1606
        %v1614 = vsel %vm1611, %v1606, %v1608
        %v1615 = vsel %vm1611, %v1608, %v1610
        %1620 = vst [vmem:[#allocation2 + $0x500] sm:$0xff] %v1612
        %1621 = vst [vmem:[#allocation2 + $0x508] sm:$0xff] %v1613
        %1622 = vst [vmem:[#allocation2 + $0x510] sm:$0xff] %v1614
        %1623 = vst [vmem:[#allocation2 + $0x518] sm:$0xff] %v1615
        %v1624 = vld [vmem:[%s264] sm:$0xff]
        %v1625 = vld [vmem:[%s264 + $0x8] sm:$0xff]
        %v1626 = vld [vmem:[%s264 + $0x10] sm:$0xff]
        %v1627 = vld [vmem:[%s264 + $0x18] sm:$0xff]
        %v1628 = vld [vmem:[%s264 + $0x20] sm:$0xff]
        %1634 = vrot.lane.b32.xlu0 %v1624, 12
        %v1635 = vpop.permute.xlu0 %1634
        %1636 = vrot.lane.b32.xlu0 %v1625, 12
        %v1637 = vpop.permute.xlu0 %1636
        %1638 = vrot.lane.b32.xlu0 %v1626, 12
        %v1639 = vpop.permute.xlu0 %1638
        %1640 = vrot.lane.b32.xlu0 %v1627, 12
        %v1641 = vpop.permute.xlu0 %1640
        %1642 = vrot.lane.b32.xlu0 %v1628, 12
        %v1643 = vpop.permute.xlu0 %1642
        %vm1644 = vcmask 97280
        %v1645 = vsel %vm1644, %v1635, %v1637
        %v1646 = vsel %vm1644, %v1637, %v1639
        %v1647 = vsel %vm1644, %v1639, %v1641
        %v1648 = vsel %vm1644, %v1641, %v1643
        %1653 = vst [vmem:[#allocation2 + $0x520] sm:$0xff] %v1645
        %1654 = vst [vmem:[#allocation2 + $0x528] sm:$0xff] %v1646
        %1655 = vst [vmem:[#allocation2 + $0x530] sm:$0xff] %v1647
        %1656 = vst [vmem:[#allocation2 + $0x538] sm:$0xff] %v1648
        %v1657 = vld [vmem:[%s264 + $0x8] sm:$0xff]
        %v1658 = vld [vmem:[%s264 + $0x10] sm:$0xff]
        %v1659 = vld [vmem:[%s264 + $0x18] sm:$0xff]
        %v1660 = vld [vmem:[%s264 + $0x20] sm:$0xff]
        %v1661 = vld [vmem:[%s264 + $0x28] sm:$0xff]
        %1667 = vrot.lane.b32.xlu0 %v1657, 124
        %v1668 = vpop.permute.xlu0 %1667
        %1669 = vrot.lane.b32.xlu0 %v1658, 124
        %v1670 = vpop.permute.xlu0 %1669
        %1671 = vrot.lane.b32.xlu0 %v1659, 124
        %v1672 = vpop.permute.xlu0 %1671
        %1673 = vrot.lane.b32.xlu0 %v1660, 124
        %v1674 = vpop.permute.xlu0 %1673
        %1675 = vrot.lane.b32.xlu0 %v1661, 124
        %v1676 = vpop.permute.xlu0 %1675
        %v1677 = vsel %vm423, %v1668, %v1670
        %v1678 = vsel %vm423, %v1670, %v1672
        %v1679 = vsel %vm423, %v1672, %v1674
        %v1680 = vsel %vm423, %v1674, %v1676
        %1685 = vst [vmem:[#allocation2 + $0x540] sm:$0xff] %v1677
        %1686 = vst [vmem:[#allocation2 + $0x548] sm:$0xff] %v1678
        %1687 = vst [vmem:[#allocation2 + $0x550] sm:$0xff] %v1679
        %1688 = vst [vmem:[#allocation2 + $0x558] sm:$0xff] %v1680
        %v1689 = vld [vmem:[%s264 + $0x8] sm:$0xff]
        %v1690 = vld [vmem:[%s264 + $0x10] sm:$0xff]
        %v1691 = vld [vmem:[%s264 + $0x18] sm:$0xff]
        %v1692 = vld [vmem:[%s264 + $0x20] sm:$0xff]
        %v1693 = vld [vmem:[%s264 + $0x28] sm:$0xff]
        %1699 = vrot.lane.b32.xlu0 %v1689, 123
        %v1700 = vpop.permute.xlu0 %1699
        %1701 = vrot.lane.b32.xlu0 %v1690, 123
        %v1702 = vpop.permute.xlu0 %1701
        %1703 = vrot.lane.b32.xlu0 %v1691, 123
        %v1704 = vpop.permute.xlu0 %1703
        %1705 = vrot.lane.b32.xlu0 %v1692, 123
        %v1706 = vpop.permute.xlu0 %1705
        %1707 = vrot.lane.b32.xlu0 %v1693, 123
        %v1708 = vpop.permute.xlu0 %1707
        %v1709 = vsel %vm456, %v1700, %v1702
        %v1710 = vsel %vm456, %v1702, %v1704
        %v1711 = vsel %vm456, %v1704, %v1706
        %v1712 = vsel %vm456, %v1706, %v1708
        %1717 = vst [vmem:[#allocation2 + $0x560] sm:$0xff] %v1709
        %1718 = vst [vmem:[#allocation2 + $0x568] sm:$0xff] %v1710
        %1719 = vst [vmem:[#allocation2 + $0x570] sm:$0xff] %v1711
        %1720 = vst [vmem:[#allocation2 + $0x578] sm:$0xff] %v1712
        %v1721 = vld [vmem:[%s264 + $0x8] sm:$0xff]
        %v1722 = vld [vmem:[%s264 + $0x10] sm:$0xff]
        %v1723 = vld [vmem:[%s264 + $0x18] sm:$0xff]
        %v1724 = vld [vmem:[%s264 + $0x20] sm:$0xff]
        %v1725 = vld [vmem:[%s264 + $0x28] sm:$0xff]
        %1731 = vrot.lane.b32.xlu0 %v1721, 122
        %v1732 = vpop.permute.xlu0 %1731
        %1733 = vrot.lane.b32.xlu0 %v1722, 122
        %v1734 = vpop.permute.xlu0 %1733
        %1735 = vrot.lane.b32.xlu0 %v1723, 122
        %v1736 = vpop.permute.xlu0 %1735
        %1737 = vrot.lane.b32.xlu0 %v1724, 122
        %v1738 = vpop.permute.xlu0 %1737
        %1739 = vrot.lane.b32.xlu0 %v1725, 122
        %v1740 = vpop.permute.xlu0 %1739
        %v1741 = vsel %vm489, %v1732, %v1734
        %v1742 = vsel %vm489, %v1734, %v1736
        %v1743 = vsel %vm489, %v1736, %v1738
        %v1744 = vsel %vm489, %v1738, %v1740
        %1749 = vst [vmem:[#allocation2 + $0x580] sm:$0xff] %v1741
        %1750 = vst [vmem:[#allocation2 + $0x588] sm:$0xff] %v1742
        %1751 = vst [vmem:[#allocation2 + $0x590] sm:$0xff] %v1743
        %1752 = vst [vmem:[#allocation2 + $0x598] sm:$0xff] %v1744
        %v1753 = vld [vmem:[%s264 + $0x8] sm:$0xff]
        %v1754 = vld [vmem:[%s264 + $0x10] sm:$0xff]
        %v1755 = vld [vmem:[%s264 + $0x18] sm:$0xff]
        %v1756 = vld [vmem:[%s264 + $0x20] sm:$0xff]
        %v1757 = vld [vmem:[%s264 + $0x28] sm:$0xff]
        %1763 = vrot.lane.b32.xlu0 %v1753, 121
        %v1764 = vpop.permute.xlu0 %1763
        %1765 = vrot.lane.b32.xlu0 %v1754, 121
        %v1766 = vpop.permute.xlu0 %1765
        %1767 = vrot.lane.b32.xlu0 %v1755, 121
        %v1768 = vpop.permute.xlu0 %1767
        %1769 = vrot.lane.b32.xlu0 %v1756, 121
        %v1770 = vpop.permute.xlu0 %1769
        %1771 = vrot.lane.b32.xlu0 %v1757, 121
        %v1772 = vpop.permute.xlu0 %1771
        %vm1773 = vcmask 990208
        %v1774 = vsel %vm1773, %v1764, %v1766
        %v1775 = vsel %vm1773, %v1766, %v1768
        %v1776 = vsel %vm1773, %v1768, %v1770
        %v1777 = vsel %vm1773, %v1770, %v1772
        %1782 = vst [vmem:[#allocation2 + $0x5a0] sm:$0xff] %v1774
        %1783 = vst [vmem:[#allocation2 + $0x5a8] sm:$0xff] %v1775
        %1784 = vst [vmem:[#allocation2 + $0x5b0] sm:$0xff] %v1776
        %1785 = vst [vmem:[#allocation2 + $0x5b8] sm:$0xff] %v1777
        %v1786 = vld [vmem:[%s264 + $0x8] sm:$0xff]
        %v1787 = vld [vmem:[%s264 + $0x10] sm:$0xff]
        %v1788 = vld [vmem:[%s264 + $0x18] sm:$0xff]
        %v1789 = vld [vmem:[%s264 + $0x20] sm:$0xff]
        %v1790 = vld [vmem:[%s264 + $0x28] sm:$0xff]
        %1796 = vrot.lane.b32.xlu0 %v1786, 120
        %v1797 = vpop.permute.xlu0 %1796
        %1798 = vrot.lane.b32.xlu0 %v1787, 120
        %v1799 = vpop.permute.xlu0 %1798
        %1800 = vrot.lane.b32.xlu0 %v1788, 120
        %v1801 = vpop.permute.xlu0 %1800
        %1802 = vrot.lane.b32.xlu0 %v1789, 120
        %v1803 = vpop.permute.xlu0 %1802
        %1804 = vrot.lane.b32.xlu0 %v1790, 120
        %v1805 = vpop.permute.xlu0 %1804
        %vm1806 = vcmask 982016
        %v1807 = vsel %vm1806, %v1797, %v1799
        %v1808 = vsel %vm1806, %v1799, %v1801
        %v1809 = vsel %vm1806, %v1801, %v1803
        %v1810 = vsel %vm1806, %v1803, %v1805
        %1815 = vst [vmem:[#allocation2 + $0x5c0] sm:$0xff] %v1807
        %1816 = vst [vmem:[#allocation2 + $0x5c8] sm:$0xff] %v1808
        %1817 = vst [vmem:[#allocation2 + $0x5d0] sm:$0xff] %v1809
        %1818 = vst [vmem:[#allocation2 + $0x5d8] sm:$0xff] %v1810
        %v1819 = vld [vmem:[%s264 + $0x8] sm:$0xff]
        %v1820 = vld [vmem:[%s264 + $0x10] sm:$0xff]
        %v1821 = vld [vmem:[%s264 + $0x18] sm:$0xff]
        %v1822 = vld [vmem:[%s264 + $0x20] sm:$0xff]
        %v1823 = vld [vmem:[%s264 + $0x28] sm:$0xff]
        %1829 = vrot.lane.b32.xlu0 %v1819, 119
        %v1830 = vpop.permute.xlu0 %1829
        %1831 = vrot.lane.b32.xlu0 %v1820, 119
        %v1832 = vpop.permute.xlu0 %1831
        %1833 = vrot.lane.b32.xlu0 %v1821, 119
        %v1834 = vpop.permute.xlu0 %1833
        %1835 = vrot.lane.b32.xlu0 %v1822, 119
        %v1836 = vpop.permute.xlu0 %1835
        %1837 = vrot.lane.b32.xlu0 %v1823, 119
        %v1838 = vpop.permute.xlu0 %1837
        %vm1839 = vcmask 973824
        %v1840 = vsel %vm1839, %v1830, %v1832
        %v1841 = vsel %vm1839, %v1832, %v1834
        %v1842 = vsel %vm1839, %v1834, %v1836
        %v1843 = vsel %vm1839, %v1836, %v1838
        %1848 = vst [vmem:[#allocation2 + $0x5e0] sm:$0xff] %v1840
        %1849 = vst [vmem:[#allocation2 + $0x5e8] sm:$0xff] %v1841
        %1850 = vst [vmem:[#allocation2 + $0x5f0] sm:$0xff] %v1842
        %1851 = vst [vmem:[#allocation2 + $0x5f8] sm:$0xff] %v1843
        %v1852 = vld [vmem:[%s264 + $0x8] sm:$0xff]
        %v1853 = vld [vmem:[%s264 + $0x10] sm:$0xff]
        %v1854 = vld [vmem:[%s264 + $0x18] sm:$0xff]
        %v1855 = vld [vmem:[%s264 + $0x20] sm:$0xff]
        %v1856 = vld [vmem:[%s264 + $0x28] sm:$0xff]
        %1862 = vrot.lane.b32.xlu0 %v1852, 118
        %v1863 = vpop.permute.xlu0 %1862
        %1864 = vrot.lane.b32.xlu0 %v1853, 118
        %v1865 = vpop.permute.xlu0 %1864
        %1866 = vrot.lane.b32.xlu0 %v1854, 118
        %v1867 = vpop.permute.xlu0 %1866
        %1868 = vrot.lane.b32.xlu0 %v1855, 118
        %v1869 = vpop.permute.xlu0 %1868
        %1870 = vrot.lane.b32.xlu0 %v1856, 118
        %v1871 = vpop.permute.xlu0 %1870
        %vm1872 = vcmask 965632
        %v1873 = vsel %vm1872, %v1863, %v1865
        %v1874 = vsel %vm1872, %v1865, %v1867
        %v1875 = vsel %vm1872, %v1867, %v1869
        %v1876 = vsel %vm1872, %v1869, %v1871
        %1881 = vst [vmem:[#allocation2 + $0x600] sm:$0xff] %v1873
        %1882 = vst [vmem:[#allocation2 + $0x608] sm:$0xff] %v1874
        %1883 = vst [vmem:[#allocation2 + $0x610] sm:$0xff] %v1875
        %1884 = vst [vmem:[#allocation2 + $0x618] sm:$0xff] %v1876
        %v1885 = vld [vmem:[%s1] sm:$0xff]
        %v1886 = vld [vmem:[%s1 + $0x8] sm:$0xff]
        %v1887 = vld [vmem:[%s1 + $0x10] sm:$0xff]
        %v1888 = vld [vmem:[%s1 + $0x18] sm:$0xff]
        %v1889 = vld [vmem:[#allocation2] sm:$0xff]
        %v1890 = vld [vmem:[#allocation2 + $0x8] sm:$0xff]
        %v1891 = vld [vmem:[#allocation2 + $0x10] sm:$0xff]
        %v1892 = vld [vmem:[#allocation2 + $0x18] sm:$0xff]
        %v1893 = vld [vmem:[#allocation2 + $0x20] sm:$0xff]
        %v1894 = vld [vmem:[#allocation2 + $0x28] sm:$0xff]
        %v1895 = vld [vmem:[#allocation2 + $0x30] sm:$0xff]
        %v1896 = vld [vmem:[#allocation2 + $0x38] sm:$0xff]
        %v1897 = vld [vmem:[#allocation2 + $0x40] sm:$0xff]
        %v1898 = vld [vmem:[#allocation2 + $0x48] sm:$0xff]
        %v1899 = vld [vmem:[#allocation2 + $0x50] sm:$0xff]
        %v1900 = vld [vmem:[#allocation2 + $0x58] sm:$0xff]
        %v1901 = vld [vmem:[#allocation2 + $0x60] sm:$0xff]
        %v1902 = vld [vmem:[#allocation2 + $0x68] sm:$0xff]
        %v1903 = vld [vmem:[#allocation2 + $0x70] sm:$0xff]
        %v1904 = vld [vmem:[#allocation2 + $0x78] sm:$0xff]
        %v1905 = vld [vmem:[#allocation2 + $0x80] sm:$0xff]
        %v1906 = vld [vmem:[#allocation2 + $0x88] sm:$0xff]
        %v1907 = vld [vmem:[#allocation2 + $0x90] sm:$0xff]
        %v1908 = vld [vmem:[#allocation2 + $0x98] sm:$0xff]
        %v1909 = vld [vmem:[#allocation2 + $0xa0] sm:$0xff]
        %v1910 = vld [vmem:[#allocation2 + $0xa8] sm:$0xff]
        %v1911 = vld [vmem:[#allocation2 + $0xb0] sm:$0xff]
        %v1912 = vld [vmem:[#allocation2 + $0xb8] sm:$0xff]
        %v1913 = vld [vmem:[#allocation2 + $0xc0] sm:$0xff]
        %v1914 = vld [vmem:[#allocation2 + $0xc8] sm:$0xff]
        %v1915 = vld [vmem:[#allocation2 + $0xd0] sm:$0xff]
        %v1916 = vld [vmem:[#allocation2 + $0xd8] sm:$0xff]
        %v1917 = vld [vmem:[#allocation2 + $0xe0] sm:$0xff]
        %v1918 = vld [vmem:[#allocation2 + $0xe8] sm:$0xff]
        %v1919 = vld [vmem:[#allocation2 + $0xf0] sm:$0xff]
        %v1920 = vld [vmem:[#allocation2 + $0xf8] sm:$0xff]
        %v1921 = vld [vmem:[#allocation2 + $0x100] sm:$0xff]
        %v1922 = vld [vmem:[#allocation2 + $0x108] sm:$0xff]
        %v1923 = vld [vmem:[#allocation2 + $0x110] sm:$0xff]
        %v1924 = vld [vmem:[#allocation2 + $0x118] sm:$0xff]
        %v1925 = vld [vmem:[#allocation2 + $0x120] sm:$0xff]
        %v1926 = vld [vmem:[#allocation2 + $0x128] sm:$0xff]
        %v1927 = vld [vmem:[#allocation2 + $0x130] sm:$0xff]
        %v1928 = vld [vmem:[#allocation2 + $0x138] sm:$0xff]
        %v1929 = vld [vmem:[#allocation2 + $0x140] sm:$0xff]
        %v1930 = vld [vmem:[#allocation2 + $0x148] sm:$0xff]
        %v1931 = vld [vmem:[#allocation2 + $0x150] sm:$0xff]
        %v1932 = vld [vmem:[#allocation2 + $0x158] sm:$0xff]
        %v1933 = vld [vmem:[#allocation2 + $0x160] sm:$0xff]
        %v1934 = vld [vmem:[#allocation2 + $0x168] sm:$0xff]
        %v1935 = vld [vmem:[#allocation2 + $0x170] sm:$0xff]
        %v1936 = vld [vmem:[#allocation2 + $0x178] sm:$0xff]
        %v1937 = vld [vmem:[#allocation2 + $0x180] sm:$0xff]
        %v1938 = vld [vmem:[#allocation2 + $0x188] sm:$0xff]
        %v1939 = vld [vmem:[#allocation2 + $0x190] sm:$0xff]
        %v1940 = vld [vmem:[#allocation2 + $0x198] sm:$0xff]
        %v1941 = vld [vmem:[#allocation2 + $0x1a0] sm:$0xff]
        %v1942 = vld [vmem:[#allocation2 + $0x1a8] sm:$0xff]
        %v1943 = vld [vmem:[#allocation2 + $0x1b0] sm:$0xff]
        %v1944 = vld [vmem:[#allocation2 + $0x1b8] sm:$0xff]
        %v1945 = vld [vmem:[#allocation2 + $0x1c0] sm:$0xff]
        %v1946 = vld [vmem:[#allocation2 + $0x1c8] sm:$0xff]
        %v1947 = vld [vmem:[#allocation2 + $0x1d0] sm:$0xff]
        %v1948 = vld [vmem:[#allocation2 + $0x1d8] sm:$0xff]
        %v1949 = vld [vmem:[#allocation2 + $0x1e0] sm:$0xff]
        %v1950 = vld [vmem:[#allocation2 + $0x1e8] sm:$0xff]
        %v1951 = vld [vmem:[#allocation2 + $0x1f0] sm:$0xff]
        %v1952 = vld [vmem:[#allocation2 + $0x1f8] sm:$0xff]
        %v1953 = vld [vmem:[#allocation2 + $0x200] sm:$0xff]
        %v1954 = vld [vmem:[#allocation2 + $0x208] sm:$0xff]
        %v1955 = vld [vmem:[#allocation2 + $0x210] sm:$0xff]
        %v1956 = vld [vmem:[#allocation2 + $0x218] sm:$0xff]
        %v1957 = vld [vmem:[#allocation2 + $0x220] sm:$0xff]
        %v1958 = vld [vmem:[#allocation2 + $0x228] sm:$0xff]
        %v1959 = vld [vmem:[#allocation2 + $0x230] sm:$0xff]
        %v1960 = vld [vmem:[#allocation2 + $0x238] sm:$0xff]
        %v1961 = vld [vmem:[#allocation2 + $0x240] sm:$0xff]
        %v1962 = vld [vmem:[#allocation2 + $0x248] sm:$0xff]
        %v1963 = vld [vmem:[#allocation2 + $0x250] sm:$0xff]
        %v1964 = vld [vmem:[#allocation2 + $0x258] sm:$0xff]
        %v1965 = vld [vmem:[#allocation2 + $0x260] sm:$0xff]
        %v1966 = vld [vmem:[#allocation2 + $0x268] sm:$0xff]
        %v1967 = vld [vmem:[#allocation2 + $0x270] sm:$0xff]
        %v1968 = vld [vmem:[#allocation2 + $0x278] sm:$0xff]
        %v1969 = vld [vmem:[#allocation2 + $0x280] sm:$0xff]
        %v1970 = vld [vmem:[#allocation2 + $0x288] sm:$0xff]
        %v1971 = vld [vmem:[#allocation2 + $0x290] sm:$0xff]
        %v1972 = vld [vmem:[#allocation2 + $0x298] sm:$0xff]
        %v1973 = vld [vmem:[#allocation2 + $0x2a0] sm:$0xff]
        %v1974 = vld [vmem:[#allocation2 + $0x2a8] sm:$0xff]
        %v1975 = vld [vmem:[#allocation2 + $0x2b0] sm:$0xff]
        %v1976 = vld [vmem:[#allocation2 + $0x2b8] sm:$0xff]
        %v1977 = vld [vmem:[#allocation2 + $0x2c0] sm:$0xff]
        %v1978 = vld [vmem:[#allocation2 + $0x2c8] sm:$0xff]
        %v1979 = vld [vmem:[#allocation2 + $0x2d0] sm:$0xff]
        %v1980 = vld [vmem:[#allocation2 + $0x2d8] sm:$0xff]
        %v1981 = vld [vmem:[#allocation2 + $0x2e0] sm:$0xff]
        %v1982 = vld [vmem:[#allocation2 + $0x2e8] sm:$0xff]
        %v1983 = vld [vmem:[#allocation2 + $0x2f0] sm:$0xff]
        %v1984 = vld [vmem:[#allocation2 + $0x2f8] sm:$0xff]
        %v1985 = vld [vmem:[#allocation2 + $0x300] sm:$0xff]
        %v1986 = vld [vmem:[#allocation2 + $0x308] sm:$0xff]
        %v1987 = vld [vmem:[#allocation2 + $0x310] sm:$0xff]
        %v1988 = vld [vmem:[#allocation2 + $0x318] sm:$0xff]
        %v1989 = vld [vmem:[#allocation2 + $0x320] sm:$0xff]
        %v1990 = vld [vmem:[#allocation2 + $0x328] sm:$0xff]
        %v1991 = vld [vmem:[#allocation2 + $0x330] sm:$0xff]
        %v1992 = vld [vmem:[#allocation2 + $0x338] sm:$0xff]
        %v1993 = vld [vmem:[#allocation2 + $0x340] sm:$0xff]
        %v1994 = vld [vmem:[#allocation2 + $0x348] sm:$0xff]
        %v1995 = vld [vmem:[#allocation2 + $0x350] sm:$0xff]
        %v1996 = vld [vmem:[#allocation2 + $0x358] sm:$0xff]
        %v1997 = vld [vmem:[#allocation2 + $0x360] sm:$0xff]
        %v1998 = vld [vmem:[#allocation2 + $0x368] sm:$0xff]
        %v1999 = vld [vmem:[#allocation2 + $0x370] sm:$0xff]
        %v2000 = vld [vmem:[#allocation2 + $0x378] sm:$0xff]
        %v2001 = vld [vmem:[#allocation2 + $0x380] sm:$0xff]
        %v2002 = vld [vmem:[#allocation2 + $0x388] sm:$0xff]
        %v2003 = vld [vmem:[#allocation2 + $0x390] sm:$0xff]
        %v2004 = vld [vmem:[#allocation2 + $0x398] sm:$0xff]
        %v2005 = vld [vmem:[#allocation2 + $0x3a0] sm:$0xff]
        %v2006 = vld [vmem:[#allocation2 + $0x3a8] sm:$0xff]
        %v2007 = vld [vmem:[#allocation2 + $0x3b0] sm:$0xff]
        %v2008 = vld [vmem:[#allocation2 + $0x3b8] sm:$0xff]
        %v2009 = vld [vmem:[#allocation2 + $0x3c0] sm:$0xff]
        %v2010 = vld [vmem:[#allocation2 + $0x3c8] sm:$0xff]
        %v2011 = vld [vmem:[#allocation2 + $0x3d0] sm:$0xff]
        %v2012 = vld [vmem:[#allocation2 + $0x3d8] sm:$0xff]
        %v2013 = vld [vmem:[#allocation2 + $0x3e0] sm:$0xff]
        %v2014 = vld [vmem:[#allocation2 + $0x3e8] sm:$0xff]
        %v2015 = vld [vmem:[#allocation2 + $0x3f0] sm:$0xff]
        %v2016 = vld [vmem:[#allocation2 + $0x3f8] sm:$0xff]
        %v2017 = vld [vmem:[#allocation2 + $0x400] sm:$0xff]
        %v2018 = vld [vmem:[#allocation2 + $0x408] sm:$0xff]
        %v2019 = vld [vmem:[#allocation2 + $0x410] sm:$0xff]
        %v2020 = vld [vmem:[#allocation2 + $0x418] sm:$0xff]
        %v2021 = vld [vmem:[#allocation2 + $0x420] sm:$0xff]
        %v2022 = vld [vmem:[#allocation2 + $0x428] sm:$0xff]
        %v2023 = vld [vmem:[#allocation2 + $0x430] sm:$0xff]
        %v2024 = vld [vmem:[#allocation2 + $0x438] sm:$0xff]
        %v2025 = vld [vmem:[#allocation2 + $0x440] sm:$0xff]
        %v2026 = vld [vmem:[#allocation2 + $0x448] sm:$0xff]
        %v2027 = vld [vmem:[#allocation2 + $0x450] sm:$0xff]
        %v2028 = vld [vmem:[#allocation2 + $0x458] sm:$0xff]
        %v2029 = vld [vmem:[#allocation2 + $0x460] sm:$0xff]
        %v2030 = vld [vmem:[#allocation2 + $0x468] sm:$0xff]
        %v2031 = vld [vmem:[#allocation2 + $0x470] sm:$0xff]
        %v2032 = vld [vmem:[#allocation2 + $0x478] sm:$0xff]
        %v2033 = vld [vmem:[#allocation2 + $0x480] sm:$0xff]
        %v2034 = vld [vmem:[#allocation2 + $0x488] sm:$0xff]
        %v2035 = vld [vmem:[#allocation2 + $0x490] sm:$0xff]
        %v2036 = vld [vmem:[#allocation2 + $0x498] sm:$0xff]
        %v2037 = vld [vmem:[#allocation2 + $0x4a0] sm:$0xff]
        %v2038 = vld [vmem:[#allocation2 + $0x4a8] sm:$0xff]
        %v2039 = vld [vmem:[#allocation2 + $0x4b0] sm:$0xff]
        %v2040 = vld [vmem:[#allocation2 + $0x4b8] sm:$0xff]
        %v2041 = vld [vmem:[#allocation2 + $0x4c0] sm:$0xff]
        %v2042 = vld [vmem:[#allocation2 + $0x4c8] sm:$0xff]
        %v2043 = vld [vmem:[#allocation2 + $0x4d0] sm:$0xff]
        %v2044 = vld [vmem:[#allocation2 + $0x4d8] sm:$0xff]
        %v2045 = vld [vmem:[#allocation2 + $0x4e0] sm:$0xff]
        %v2046 = vld [vmem:[#allocation2 + $0x4e8] sm:$0xff]
        %v2047 = vld [vmem:[#allocation2 + $0x4f0] sm:$0xff]
        %v2048 = vld [vmem:[#allocation2 + $0x4f8] sm:$0xff]
        %v2049 = vld [vmem:[#allocation2 + $0x500] sm:$0xff]
        %v2050 = vld [vmem:[#allocation2 + $0x508] sm:$0xff]
        %v2051 = vld [vmem:[#allocation2 + $0x510] sm:$0xff]
        %v2052 = vld [vmem:[#allocation2 + $0x518] sm:$0xff]
        %v2053 = vld [vmem:[#allocation2 + $0x520] sm:$0xff]
        %v2054 = vld [vmem:[#allocation2 + $0x528] sm:$0xff]
        %v2055 = vld [vmem:[#allocation2 + $0x530] sm:$0xff]
        %v2056 = vld [vmem:[#allocation2 + $0x538] sm:$0xff]
        %v2057 = vld [vmem:[#allocation2 + $0x540] sm:$0xff]
        %v2058 = vld [vmem:[#allocation2 + $0x548] sm:$0xff]
        %v2059 = vld [vmem:[#allocation2 + $0x550] sm:$0xff]
        %v2060 = vld [vmem:[#allocation2 + $0x558] sm:$0xff]
        %v2061 = vld [vmem:[#allocation2 + $0x560] sm:$0xff]
        %v2062 = vld [vmem:[#allocation2 + $0x568] sm:$0xff]
        %v2063 = vld [vmem:[#allocation2 + $0x570] sm:$0xff]
        %v2064 = vld [vmem:[#allocation2 + $0x578] sm:$0xff]
        %v2065 = vld [vmem:[#allocation2 + $0x580] sm:$0xff]
        %v2066 = vld [vmem:[#allocation2 + $0x588] sm:$0xff]
        %v2067 = vld [vmem:[#allocation2 + $0x590] sm:$0xff]
        %v2068 = vld [vmem:[#allocation2 + $0x598] sm:$0xff]
        %v2069 = vld [vmem:[#allocation2 + $0x5a0] sm:$0xff]
        %v2070 = vld [vmem:[#allocation2 + $0x5a8] sm:$0xff]
        %v2071 = vld [vmem:[#allocation2 + $0x5b0] sm:$0xff]
        %v2072 = vld [vmem:[#allocation2 + $0x5b8] sm:$0xff]
        %v2073 = vld [vmem:[#allocation2 + $0x5c0] sm:$0xff]
        %v2074 = vld [vmem:[#allocation2 + $0x5c8] sm:$0xff]
        %v2075 = vld [vmem:[#allocation2 + $0x5d0] sm:$0xff]
        %v2076 = vld [vmem:[#allocation2 + $0x5d8] sm:$0xff]
        %v2077 = vld [vmem:[#allocation2 + $0x5e0] sm:$0xff]
        %v2078 = vld [vmem:[#allocation2 + $0x5e8] sm:$0xff]
        %v2079 = vld [vmem:[#allocation2 + $0x5f0] sm:$0xff]
        %v2080 = vld [vmem:[#allocation2 + $0x5f8] sm:$0xff]
        %v2081 = vld [vmem:[#allocation2 + $0x600] sm:$0xff]
        %v2082 = vld [vmem:[#allocation2 + $0x608] sm:$0xff]
        %v2083 = vld [vmem:[#allocation2 + $0x610] sm:$0xff]
        %v2084 = vld [vmem:[#allocation2 + $0x618] sm:$0xff]
        %v2085 = vpack.c.bf16 %v1893, %v1889
        %v2086 = vpack.c.bf16 %v1894, %v1890
        %v2087 = vpack.c.bf16 %v1895, %v1891
        %v2088 = vpack.c.bf16 %v1896, %v1892
        %v2089 = vpack.c.bf16 %v1901, %v1897
        %v2090 = vpack.c.bf16 %v1902, %v1898
        %v2091 = vpack.c.bf16 %v1903, %v1899
        %v2092 = vpack.c.bf16 %v1904, %v1900
        %v2093 = vpack.c.bf16 %v1909, %v1905
        %v2094 = vpack.c.bf16 %v1910, %v1906
        %v2095 = vpack.c.bf16 %v1911, %v1907
        %v2096 = vpack.c.bf16 %v1912, %v1908
        %v2097 = vpack.c.bf16 %v1917, %v1913
        %v2098 = vpack.c.bf16 %v1918, %v1914
        %v2099 = vpack.c.bf16 %v1919, %v1915
        %v2100 = vpack.c.bf16 %v1920, %v1916
        %v2101 = vpack.c.bf16 %v1925, %v1921
        %v2102 = vpack.c.bf16 %v1926, %v1922
        %v2103 = vpack.c.bf16 %v1927, %v1923
        %v2104 = vpack.c.bf16 %v1928, %v1924
        %v2105 = vpack.c.bf16 %v1933, %v1929
        %v2106 = vpack.c.bf16 %v1934, %v1930
        %v2107 = vpack.c.bf16 %v1935, %v1931
        %v2108 = vpack.c.bf16 %v1936, %v1932
        %v2109 = vpack.c.bf16 %v1941, %v1937
        %v2110 = vpack.c.bf16 %v1942, %v1938
        %v2111 = vpack.c.bf16 %v1943, %v1939
        %v2112 = vpack.c.bf16 %v1944, %v1940
        %v2113 = vpack.c.bf16 %v1949, %v1945
        %v2114 = vpack.c.bf16 %v1950, %v1946
        %v2115 = vpack.c.bf16 %v1951, %v1947
        %v2116 = vpack.c.bf16 %v1952, %v1948
        %v2117 = vpack.c.bf16 %v1957, %v1953
        %v2118 = vpack.c.bf16 %v1958, %v1954
        %v2119 = vpack.c.bf16 %v1959, %v1955
        %v2120 = vpack.c.bf16 %v1960, %v1956
        %v2121 = vpack.c.bf16 %v1965, %v1961
        %v2122 = vpack.c.bf16 %v1966, %v1962
        %v2123 = vpack.c.bf16 %v1967, %v1963
        %v2124 = vpack.c.bf16 %v1968, %v1964
        %v2125 = vpack.c.bf16 %v1973, %v1969
        %v2126 = vpack.c.bf16 %v1974, %v1970
        %v2127 = vpack.c.bf16 %v1975, %v1971
        %v2128 = vpack.c.bf16 %v1976, %v1972
        %v2129 = vpack.c.bf16 %v1981, %v1977
        %v2130 = vpack.c.bf16 %v1982, %v1978
        %v2131 = vpack.c.bf16 %v1983, %v1979
        %v2132 = vpack.c.bf16 %v1984, %v1980
        %v2133 = vpack.c.bf16 %v1989, %v1985
        %v2134 = vpack.c.bf16 %v1990, %v1986
        %v2135 = vpack.c.bf16 %v1991, %v1987
        %v2136 = vpack.c.bf16 %v1992, %v1988
        %v2137 = vpack.c.bf16 %v1997, %v1993
        %v2138 = vpack.c.bf16 %v1998, %v1994
        %v2139 = vpack.c.bf16 %v1999, %v1995
        %v2140 = vpack.c.bf16 %v2000, %v1996
        %v2141 = vpack.c.bf16 %v2005, %v2001
        %v2142 = vpack.c.bf16 %v2006, %v2002
        %v2143 = vpack.c.bf16 %v2007, %v2003
        %v2144 = vpack.c.bf16 %v2008, %v2004
        %v2145 = vpack.c.bf16 %v2013, %v2009
        %v2146 = vpack.c.bf16 %v2014, %v2010
        %v2147 = vpack.c.bf16 %v2015, %v2011
        %v2148 = vpack.c.bf16 %v2016, %v2012
        %v2149 = vpack.c.bf16 %v2021, %v2017
        %v2150 = vpack.c.bf16 %v2022, %v2018
        %v2151 = vpack.c.bf16 %v2023, %v2019
        %v2152 = vpack.c.bf16 %v2024, %v2020
        %v2153 = vpack.c.bf16 %v2029, %v2025
        %v2154 = vpack.c.bf16 %v2030, %v2026
        %v2155 = vpack.c.bf16 %v2031, %v2027
        %v2156 = vpack.c.bf16 %v2032, %v2028
        %v2157 = vpack.c.bf16 %v2037, %v2033
        %v2158 = vpack.c.bf16 %v2038, %v2034
        %v2159 = vpack.c.bf16 %v2039, %v2035
        %v2160 = vpack.c.bf16 %v2040, %v2036
        %v2161 = vpack.c.bf16 %v2045, %v2041
        %v2162 = vpack.c.bf16 %v2046, %v2042
        %v2163 = vpack.c.bf16 %v2047, %v2043
        %v2164 = vpack.c.bf16 %v2048, %v2044
        %v2165 = vpack.c.bf16 %v2053, %v2049
        %v2166 = vpack.c.bf16 %v2054, %v2050
        %v2167 = vpack.c.bf16 %v2055, %v2051
        %v2168 = vpack.c.bf16 %v2056, %v2052
        %v2169 = vpack.c.bf16 %v2061, %v2057
        %v2170 = vpack.c.bf16 %v2062, %v2058
        %v2171 = vpack.c.bf16 %v2063, %v2059
        %v2172 = vpack.c.bf16 %v2064, %v2060
        %v2173 = vpack.c.bf16 %v2069, %v2065
        %v2174 = vpack.c.bf16 %v2070, %v2066
        %v2175 = vpack.c.bf16 %v2071, %v2067
        %v2176 = vpack.c.bf16 %v2072, %v2068
        %v2177 = vpack.c.bf16 %v2077, %v2073
        %v2178 = vpack.c.bf16 %v2078, %v2074
        %v2179 = vpack.c.bf16 %v2079, %v2075
        %v2180 = vpack.c.bf16 %v2080, %v2076
        %v2181 = vpack.c.bf16 %v2081, %v2081
        %v2182 = vpack.c.bf16 %v2082, %v2082
        %v2183 = vpack.c.bf16 %v2083, %v2083
        %v2184 = vpack.c.bf16 %v2084, %v2084
        %v2185 = vld [vmem:[%s2] sm:$0xff]
        %v2186 = vld [vmem:[%s2 + $0x8] sm:$0xff]
        %2188 = vset.pattern.permute.xlu0 0
        %2189 = vperm.xlu0 %2188, %v2185
        %v2190 = vpop.permute.xlu0 %2189
        %2193 = vset.pattern.permute.xlu0 0
        %2194 = vperm.xlu0 %2193, %v2186
        %v2195 = vpop.permute.xlu0 %2194
        %v2201 = vunpack.c.l.b16 %v1885
        %v2202 = vunpack.c.h.b16 %v1885
        %v2203 = vunpack.c.l.b16 %v1886
        %v2204 = vunpack.c.h.b16 %v1886
        %v2205 = vunpack.c.l.b16 %v1887
        %v2206 = vunpack.c.h.b16 %v1887
        %v2207 = vunpack.c.l.b16 %v1888
        %v2208 = vunpack.c.h.b16 %v1888
        %v2209 = vpack.c.b16 %v2205, %v2201
        %v2210 = vpack.c.b16 %v2206, %v2202
        %v2211 = vpack.c.b16 %v2207, %v2203
        %v2212 = vpack.c.b16 %v2208, %v2204
        %vm2216 = vcmask 64512
        %v2218 = vsel %vm2216, %v2212, 0
        %vm2220 = vcmask 1043456
        %v2222 = vsel %vm2220, %v2181, 0
        %v2225 = vsel %vm2220, %v2182, 0
        %v2228 = vsel %vm2220, %v2183, 0
        %v2231 = vsel %vm2220, %v2184, 0
        %2233 = vmatprep.subr.bf16.mxu0 %v2114
        %2234 = vmatpush1.bf16.msra.mxu0 %v2113
        %2235 = vmatprep.subr.bf16.mxu0 %v2110
        %2236 = vmatpush1.bf16.msra.mxu0 %v2109
        %2237 = vmatprep.subr.bf16.mxu0 %v2106
        %2238 = vmatpush1.bf16.msra.mxu0 %v2105
        %2239 = vmatprep.subr.bf16.mxu0 %v2102
        %2240 = vmatpush1.bf16.msra.mxu0 %v2101
        %2241 = vmatprep.subr.bf16.mxu0 %v2098
        %2242 = vmatpush1.bf16.msra.mxu0 %v2097
        %2243 = vmatprep.subr.bf16.mxu0 %v2094
        %2244 = vmatpush1.bf16.msra.mxu0 %v2093
        %2245 = vmatprep.subr.bf16.mxu0 %v2090
        %2246 = vmatpush1.bf16.msra.mxu0 %v2089
        %2247 = vmatprep.subr.bf16.mxu0 %v2086
        %2248 = vmatpush1.bf16.msra.mxu0 %v2085
        %2249 = vmatprep.subr.bf16.mxu0 %v2146
        %2250 = vmatpush2.bf16.msra.mxu0 %v2145
        %2251 = vmatprep.subr.bf16.mxu0 %v2142
        %2252 = vmatpush2.bf16.msra.mxu0 %v2141
        %2253 = vmatprep.subr.bf16.mxu0 %v2138
        %2254 = vmatpush2.bf16.msra.mxu0 %v2137
        %2255 = vmatprep.subr.bf16.mxu0 %v2134
        %2256 = vmatpush2.bf16.msra.mxu0 %v2133
        %2257 = vmatprep.subr.bf16.mxu0 %v2130
        %2258 = vmatpush2.bf16.msra.mxu0 %v2129
        %2259 = vmatprep.subr.bf16.mxu0 %v2126
        %2260 = vmatpush2.bf16.msra.mxu0 %v2125
        %2261 = vmatprep.subr.bf16.mxu0 %v2122
        %2262 = vmatpush2.bf16.msra.mxu0 %v2121
        %2263 = vmatprep.subr.bf16.mxu0 %v2118
        %2264 = vmatpush2.bf16.msra.mxu0 %v2117
        %2265 = vmatprep.mubr.bf16.mxu0 %v2210
        %2266 = vmatmul.mubr.bf16.gmra.mxu0 %v2209
        %v2267 = vpop.f32.mrf.mxu0
        %v2268 = vadd.f32 %v2190, %v2267
        %v2269 = vpop.f32.mrf.mxu0
        %v2270 = vadd.f32 %v2190, %v2269
        %v2271 = vpop.f32.mrf.mxu0
        %v2272 = vadd.f32 %v2195, %v2271
        %v2273 = vpop.f32.mrf.mxu0
        %v2274 = vadd.f32 %v2195, %v2273
        %2275 = vdwg.mxu0
        %2276 = vmatprep.subr.bf16.mxu0 %v2178
        %2277 = vmatpush1.bf16.msra.mxu0 %v2177
        %2278 = vmatprep.subr.bf16.mxu0 %v2174
        %2279 = vmatpush1.bf16.msra.mxu0 %v2173
        %2280 = vmatprep.subr.bf16.mxu0 %v2170
        %2281 = vmatpush1.bf16.msra.mxu0 %v2169
        %2282 = vmatprep.subr.bf16.mxu0 %v2166
        %2283 = vmatpush1.bf16.msra.mxu0 %v2165
        %2284 = vmatprep.subr.bf16.mxu0 %v2162
        %2285 = vmatpush1.bf16.msra.mxu0 %v2161
        %2286 = vmatprep.subr.bf16.mxu0 %v2158
        %2287 = vmatpush1.bf16.msra.mxu0 %v2157
        %2288 = vmatprep.subr.bf16.mxu0 %v2154
        %2289 = vmatpush1.bf16.msra.mxu0 %v2153
        %2290 = vmatprep.subr.bf16.mxu0 %v2150
        %2291 = vmatpush1.bf16.msra.mxu0 %v2149
        %2292 = vmatprep.subr.bf16.mxu0 0
        %2293 = vmatpush2.bf16.msra.mxu0 0
        %2294 = vmatprep.subr.bf16.mxu0 0
        %2295 = vmatpush2.bf16.msra.mxu0 0
        %2296 = vmatprep.subr.bf16.mxu0 0
        %2297 = vmatpush2.bf16.msra.mxu0 0
        %2298 = vmatprep.subr.bf16.mxu0 0
        %2299 = vmatpush2.bf16.msra.mxu0 0
        %2300 = vmatprep.subr.bf16.mxu0 0
        %2301 = vmatpush2.bf16.msra.mxu0 0
        %2302 = vmatprep.subr.bf16.mxu0 0
        %2303 = vmatpush2.bf16.msra.mxu0 0
        %2304 = vmatprep.subr.bf16.mxu0 0
        %2305 = vmatpush2.bf16.msra.mxu0 0
        %2306 = vmatprep.subr.bf16.mxu0 %v2225
        %2307 = vmatpush2.bf16.msra.mxu0 %v2222
        %2308 = vmatprep.mubr.bf16.mxu0 %v2218
        %2309 = vmatmul.mubr.bf16.gmra.mxu0 %v2211
        %v2310 = vpop.f32.mrf.mxu0
        %v2311 = vadd.f32 %v2268, %v2310
        %v2312 = vpop.f32.mrf.mxu0
        %v2313 = vadd.f32 %v2270, %v2312
        %v2314 = vpop.f32.mrf.mxu0
        %v2315 = vadd.f32 %v2272, %v2314
        %v2316 = vpop.f32.mrf.mxu0
        %v2317 = vadd.f32 %v2274, %v2316
        %2318 = vdwg.mxu0
        %2319 = vmatprep.subr.bf16.mxu0 %v2116
        %2320 = vmatpush1.bf16.msra.mxu0 %v2115
        %2321 = vmatprep.subr.bf16.mxu0 %v2112
        %2322 = vmatpush1.bf16.msra.mxu0 %v2111
        %2323 = vmatprep.subr.bf16.mxu0 %v2108
        %2324 = vmatpush1.bf16.msra.mxu0 %v2107
        %2325 = vmatprep.subr.bf16.mxu0 %v2104
        %2326 = vmatpush1.bf16.msra.mxu0 %v2103
        %2327 = vmatprep.subr.bf16.mxu0 %v2100
        %2328 = vmatpush1.bf16.msra.mxu0 %v2099
        %2329 = vmatprep.subr.bf16.mxu0 %v2096
        %2330 = vmatpush1.bf16.msra.mxu0 %v2095
        %2331 = vmatprep.subr.bf16.mxu0 %v2092
        %2332 = vmatpush1.bf16.msra.mxu0 %v2091
        %2333 = vmatprep.subr.bf16.mxu0 %v2088
        %2334 = vmatpush1.bf16.msra.mxu0 %v2087
        %2335 = vmatprep.subr.bf16.mxu0 %v2148
        %2336 = vmatpush2.bf16.msra.mxu0 %v2147
        %2337 = vmatprep.subr.bf16.mxu0 %v2144
        %2338 = vmatpush2.bf16.msra.mxu0 %v2143
        %2339 = vmatprep.subr.bf16.mxu0 %v2140
        %2340 = vmatpush2.bf16.msra.mxu0 %v2139
        %2341 = vmatprep.subr.bf16.mxu0 %v2136
        %2342 = vmatpush2.bf16.msra.mxu0 %v2135
        %2343 = vmatprep.subr.bf16.mxu0 %v2132
        %2344 = vmatpush2.bf16.msra.mxu0 %v2131
        %2345 = vmatprep.subr.bf16.mxu0 %v2128
        %2346 = vmatpush2.bf16.msra.mxu0 %v2127
        %2347 = vmatprep.subr.bf16.mxu0 %v2124
        %2348 = vmatpush2.bf16.msra.mxu0 %v2123
        %2349 = vmatprep.subr.bf16.mxu0 %v2120
        %2350 = vmatpush2.bf16.msra.mxu0 %v2119
        %2351 = vmatprep.mubr.bf16.mxu0 %v2210
        %2352 = vmatmul.mubr.bf16.gmra.mxu0 %v2209
        %v2353 = vpop.f32.mrf.mxu0
        %v2354 = vadd.f32 %v2190, %v2353
        %v2355 = vpop.f32.mrf.mxu0
        %v2356 = vadd.f32 %v2190, %v2355
        %v2357 = vpop.f32.mrf.mxu0
        %v2358 = vadd.f32 %v2195, %v2357
        %v2359 = vpop.f32.mrf.mxu0
        %v2360 = vadd.f32 %v2195, %v2359
        %2361 = vdwg.mxu0
        %2362 = vmatprep.subr.bf16.mxu0 %v2180
        %2363 = vmatpush1.bf16.msra.mxu0 %v2179
        %2364 = vmatprep.subr.bf16.mxu0 %v2176
        %2365 = vmatpush1.bf16.msra.mxu0 %v2175
        %2366 = vmatprep.subr.bf16.mxu0 %v2172
        %2367 = vmatpush1.bf16.msra.mxu0 %v2171
        %2368 = vmatprep.subr.bf16.mxu0 %v2168
        %2369 = vmatpush1.bf16.msra.mxu0 %v2167
        %2370 = vmatprep.subr.bf16.mxu0 %v2164
        %2371 = vmatpush1.bf16.msra.mxu0 %v2163
        %2372 = vmatprep.subr.bf16.mxu0 %v2160
        %2373 = vmatpush1.bf16.msra.mxu0 %v2159
        %2374 = vmatprep.subr.bf16.mxu0 %v2156
        %2375 = vmatpush1.bf16.msra.mxu0 %v2155
        %2376 = vmatprep.subr.bf16.mxu0 %v2152
        %2377 = vmatpush1.bf16.msra.mxu0 %v2151
        %2378 = vmatprep.subr.bf16.mxu0 0
        %2379 = vmatpush2.bf16.msra.mxu0 0
        %2380 = vmatprep.subr.bf16.mxu0 0
        %2381 = vmatpush2.bf16.msra.mxu0 0
        %2382 = vmatprep.subr.bf16.mxu0 0
        %2383 = vmatpush2.bf16.msra.mxu0 0
        %2384 = vmatprep.subr.bf16.mxu0 0
        %2385 = vmatpush2.bf16.msra.mxu0 0
        %2386 = vmatprep.subr.bf16.mxu0 0
        %2387 = vmatpush2.bf16.msra.mxu0 0
        %2388 = vmatprep.subr.bf16.mxu0 0
        %2389 = vmatpush2.bf16.msra.mxu0 0
        %2390 = vmatprep.subr.bf16.mxu0 0
        %2391 = vmatpush2.bf16.msra.mxu0 0
        %2392 = vmatprep.subr.bf16.mxu0 %v2231
        %2393 = vmatpush2.bf16.msra.mxu0 %v2228
        %2394 = vmatprep.mubr.bf16.mxu0 %v2218
        %2395 = vmatmul.mubr.bf16.gmra.mxu0 %v2211
        %v2396 = vpop.f32.mrf.mxu0
        %v2397 = vadd.f32 %v2354, %v2396
        %v2398 = vpop.f32.mrf.mxu0
        %v2399 = vadd.f32 %v2356, %v2398
        %v2400 = vpop.f32.mrf.mxu0
        %v2401 = vadd.f32 %v2358, %v2400
        %v2402 = vpop.f32.mrf.mxu0
        %v2403 = vadd.f32 %v2360, %v2402
        %2404 = vdwg.mxu0
        %v2405 = vmax.f32 %v2311, 0.0
        %v2406 = vmax.f32 %v2313, 0.0
        %v2407 = vmax.f32 %v2397, 0.0
        %v2408 = vmax.f32 %v2399, 0.0
        %v2409 = vmax.f32 %v2315, 0.0
        %v2410 = vmax.f32 %v2317, 0.0
        %v2411 = vmax.f32 %v2401, 0.0
        %v2412 = vmax.f32 %v2403, 0.0
        %v2413 = vld [vmem:[%s6] sm:$0xf]
        %v2415 = vlaneseq
        %v2416 = vshrl.u32 %v2415, 7
        %v2417 = vsub.s32 0, %v2416
        %v2418 = vrot.slane %v2413, %v2417
        %v2419 = vlaneseq
        %v2420 = vshrl.u32 %v2419, 7
        %v2421 = vsub.s32 1, %v2420
        %v2422 = vrot.slane %v2413, %v2421
        %v2423 = vlaneseq
        %v2424 = vshrl.u32 %v2423, 7
        %v2425 = vsub.s32 2, %v2424
        %v2426 = vrot.slane %v2413, %v2425
        %v2427 = vlaneseq
        %v2428 = vshrl.u32 %v2427, 7
        %v2429 = vsub.s32 3, %v2428
        %v2430 = vrot.slane %v2413, %v2429
        %v2435 = vmul.f32 %v2405, %v2418
        %v2436 = vmul.f32 %v2406, %v2422
        %v2437 = vmul.f32 %v2407, %v2426
        %v2438 = vmul.f32 %v2408, %v2430
        %v2439 = vmul.f32 %v2409, %v2418
        %v2440 = vmul.f32 %v2410, %v2422
        %v2441 = vmul.f32 %v2411, %v2426
        %v2442 = vmul.f32 %v2412, %v2430
        %v2443 = vadd.f32 %v2435, %v2436
        %v2444 = vadd.f32 %v2443, %v2437
        %v2445 = vadd.f32 %v2444, %v2438
        %2446 = vadd.xlane.f32.xlu0 %v2445
        %v2447 = vpop.xlane.xlu0 %2446
        %v2448 = vadd.f32 %v2439, %v2440
        %v2449 = vadd.f32 %v2448, %v2441
        %v2450 = vadd.f32 %v2449, %v2442
        %2451 = vadd.xlane.f32.xlu0 %v2450
        %v2452 = vpop.xlane.xlu0 %2451
        %v2453 = vmul.f32 %v2435, %v2435
        %v2454 = vmul.f32 %v2436, %v2436
        %v2455 = vmul.f32 %v2437, %v2437
        %v2456 = vmul.f32 %v2438, %v2438
        %v2457 = vmul.f32 %v2439, %v2439
        %v2458 = vmul.f32 %v2440, %v2440
        %v2459 = vmul.f32 %v2441, %v2441
        %v2460 = vmul.f32 %v2442, %v2442
        %v2461 = vadd.f32 %v2453, %v2454
        %v2462 = vadd.f32 %v2461, %v2455
        %v2463 = vadd.f32 %v2462, %v2456
        %2464 = vadd.xlane.f32.xlu0 %v2463
        %v2465 = vpop.xlane.xlu0 %2464
        %v2466 = vadd.f32 %v2457, %v2458
        %v2467 = vadd.f32 %v2466, %v2459
        %v2468 = vadd.f32 %v2467, %v2460
        %2469 = vadd.xlane.f32.xlu0 %v2468
        %v2470 = vpop.xlane.xlu0 %2469
        %v2471 = vld [vmem:[%s5] sm:$0xff]
        %v2472 = vld [vmem:[%s5 + $0x8] sm:$0xff]
        %v2474 = vsel %vm1512, %v2471, 0
        %v2477 = vsel %vm1512, %v2472, 0
        %2479 = vmatprep.subr.mxu0 0.0
        %2480 = vmatpush1.msra.mxu0 0.0
        %2481 = vmatprep.subr.mxu0 0.0
        %2482 = vmatpush1.msra.mxu0 0.0
        %2483 = vmatprep.subr.mxu0 0.0
        %2484 = vmatpush1.msra.mxu0 0.0
        %2485 = vmatprep.subr.mxu0 0.0
        %2486 = vmatpush1.msra.mxu0 0.0
        %2487 = vmatprep.subr.mxu0 0.0
        %2488 = vmatpush1.msra.mxu0 0.0
        %2489 = vmatprep.subr.mxu0 0.0
        %2490 = vmatpush1.msra.mxu0 0.0
        %2491 = vmatprep.subr.mxu0 0.0
        %2492 = vmatpush1.msra.mxu0 0.0
        %2493 = vmatprep.subr.mxu0 0.0
        %2494 = vmatpush1.msra.mxu0 0.0
        %2495 = vmatprep.subr.mxu0 0.0
        %2496 = vmatpush1.msra.mxu0 0.0
        %2497 = vmatprep.subr.mxu0 0.0
        %2498 = vmatpush1.msra.mxu0 0.0
        %2499 = vmatprep.subr.mxu0 0.0
        %2500 = vmatpush1.msra.mxu0 0.0
        %2501 = vmatprep.subr.mxu0 0.0
        %2502 = vmatpush1.msra.mxu0 0.0
        %2503 = vmatprep.subr.mxu0 0.0
        %2504 = vmatpush1.msra.mxu0 0.0
        %2505 = vmatprep.subr.mxu0 0.0
        %2506 = vmatpush1.msra.mxu0 0.0
        %2507 = vmatprep.subr.mxu0 0.0
        %2508 = vmatpush1.msra.mxu0 %v2452
        %2509 = vmatprep.subr.mxu0 0.0
        %2510 = vmatpush1.msra.mxu0 %v2447
        %2511 = vmatprep.subr.mxu0 0.0
        %2512 = vmatpush2.msra.mxu0 0.0
        %2513 = vmatprep.subr.mxu0 0.0
        %2514 = vmatpush2.msra.mxu0 0.0
        %2515 = vmatprep.subr.mxu0 0.0
        %2516 = vmatpush2.msra.mxu0 0.0
        %2517 = vmatprep.subr.mxu0 0.0
        %2518 = vmatpush2.msra.mxu0 0.0
        %2519 = vmatprep.subr.mxu0 0.0
        %2520 = vmatpush2.msra.mxu0 0.0
        %2521 = vmatprep.subr.mxu0 0.0
        %2522 = vmatpush2.msra.mxu0 0.0
        %2523 = vmatprep.subr.mxu0 0.0
        %2524 = vmatpush2.msra.mxu0 0.0
        %2525 = vmatprep.subr.mxu0 0.0
        %2526 = vmatpush2.msra.mxu0 0.0
        %2527 = vmatprep.subr.mxu0 0.0
        %2528 = vmatpush2.msra.mxu0 0.0
        %2529 = vmatprep.subr.mxu0 0.0
        %2530 = vmatpush2.msra.mxu0 0.0
        %2531 = vmatprep.subr.mxu0 0.0
        %2532 = vmatpush2.msra.mxu0 0.0
        %2533 = vmatprep.subr.mxu0 0.0
        %2534 = vmatpush2.msra.mxu0 0.0
        %2535 = vmatprep.subr.mxu0 0.0
        %2536 = vmatpush2.msra.mxu0 0.0
        %2537 = vmatprep.subr.mxu0 0.0
        %2538 = vmatpush2.msra.mxu0 0.0
        %2539 = vmatprep.subr.mxu0 0.0
        %2540 = vmatpush2.msra.mxu0 0.0
        %2541 = vmatprep.subr.mxu0 0.0
        %2542 = vmatpush2.msra.mxu0 0.0
        %2543 = vmatprep.mubr.f32.mxu0 0.0
        %2544 = vmatmul.mubr.f32.gmra.mxu0 %v2474
        %v2545 = vpop.f32.mrf.mxu0
        %v2546 = vadd.f32 0.0, %v2545
        %v2547 = vpop.f32.mrf.mxu0
        %2548 = vmatprep.mubr.f32.mxu0 0.0
        %2549 = vmatmul.mubr.f32.gmra.mxu0 %v2477
        %v2550 = vpop.f32.mrf.mxu0
        %v2551 = vadd.f32 0.0, %v2550
        %v2552 = vpop.f32.mrf.mxu0
        %2553 = vdwg.mxu0
        %2554 = vmatprep.subr.mxu0 0.0
        %2555 = vmatpush1.msra.mxu0 0.0
        %2556 = vmatprep.subr.mxu0 0.0
        %2557 = vmatpush1.msra.mxu0 0.0
        %2558 = vmatprep.subr.mxu0 0.0
        %2559 = vmatpush1.msra.mxu0 0.0
        %2560 = vmatprep.subr.mxu0 0.0
        %2561 = vmatpush1.msra.mxu0 0.0
        %2562 = vmatprep.subr.mxu0 0.0
        %2563 = vmatpush1.msra.mxu0 0.0
        %2564 = vmatprep.subr.mxu0 0.0
        %2565 = vmatpush1.msra.mxu0 0.0
        %2566 = vmatprep.subr.mxu0 0.0
        %2567 = vmatpush1.msra.mxu0 0.0
        %2568 = vmatprep.subr.mxu0 0.0
        %2569 = vmatpush1.msra.mxu0 0.0
        %2570 = vmatprep.subr.mxu0 0.0
        %2571 = vmatpush1.msra.mxu0 0.0
        %2572 = vmatprep.subr.mxu0 0.0
        %2573 = vmatpush1.msra.mxu0 0.0
        %2574 = vmatprep.subr.mxu0 0.0
        %2575 = vmatpush1.msra.mxu0 0.0
        %2576 = vmatprep.subr.mxu0 0.0
        %2577 = vmatpush1.msra.mxu0 0.0
        %2578 = vmatprep.subr.mxu0 0.0
        %2579 = vmatpush1.msra.mxu0 0.0
        %2580 = vmatprep.subr.mxu0 0.0
        %2581 = vmatpush1.msra.mxu0 0.0
        %2582 = vmatprep.subr.mxu0 0.0
        %2583 = vmatpush1.msra.mxu0 %v2470
        %2584 = vmatprep.subr.mxu0 0.0
        %2585 = vmatpush1.msra.mxu0 %v2465
        %2586 = vmatprep.subr.mxu0 0.0
        %2587 = vmatpush2.msra.mxu0 0.0
        %2588 = vmatprep.subr.mxu0 0.0
        %2589 = vmatpush2.msra.mxu0 0.0
        %2590 = vmatprep.subr.mxu0 0.0
        %2591 = vmatpush2.msra.mxu0 0.0
        %2592 = vmatprep.subr.mxu0 0.0
        %2593 = vmatpush2.msra.mxu0 0.0
        %2594 = vmatprep.subr.mxu0 0.0
        %2595 = vmatpush2.msra.mxu0 0.0
        %2596 = vmatprep.subr.mxu0 0.0
        %2597 = vmatpush2.msra.mxu0 0.0
        %2598 = vmatprep.subr.mxu0 0.0
        %2599 = vmatpush2.msra.mxu0 0.0
        %2600 = vmatprep.subr.mxu0 0.0
        %2601 = vmatpush2.msra.mxu0 0.0
        %2602 = vmatprep.subr.mxu0 0.0
        %2603 = vmatpush2.msra.mxu0 0.0
        %2604 = vmatprep.subr.mxu0 0.0
        %2605 = vmatpush2.msra.mxu0 0.0
        %2606 = vmatprep.subr.mxu0 0.0
        %2607 = vmatpush2.msra.mxu0 0.0
        %2608 = vmatprep.subr.mxu0 0.0
        %2609 = vmatpush2.msra.mxu0 0.0
        %2610 = vmatprep.subr.mxu0 0.0
        %2611 = vmatpush2.msra.mxu0 0.0
        %2612 = vmatprep.subr.mxu0 0.0
        %2613 = vmatpush2.msra.mxu0 0.0
        %2614 = vmatprep.subr.mxu0 0.0
        %2615 = vmatpush2.msra.mxu0 0.0
        %2616 = vmatprep.subr.mxu0 0.0
        %2617 = vmatpush2.msra.mxu0 0.0
        %2618 = vmatprep.mubr.f32.mxu0 0.0
        %2619 = vmatmul.mubr.f32.gmra.mxu0 %v2474
        %v2620 = vpop.f32.mrf.mxu0
        %v2621 = vadd.f32 0.0, %v2620
        %v2622 = vpop.f32.mrf.mxu0
        %2623 = vmatprep.mubr.f32.mxu0 0.0
        %2624 = vmatmul.mubr.f32.gmra.mxu0 %v2477
        %v2625 = vpop.f32.mrf.mxu0
        %v2626 = vadd.f32 0.0, %v2625
        %v2627 = vpop.f32.mrf.mxu0
        %2628 = vdwg.mxu0
        %v2629 = vmul.f32 %v2546, 0.0009765625
        %v2630 = vmul.f32 %v2551, 0.0009765625
        %v2631 = vmul.f32 %v2621, 0.0009765625
        %v2632 = vmul.f32 %v2626, 0.0009765625
        %v2633 = vmul.f32 %v2629, %v2629
        %v2634 = vmul.f32 %v2630, %v2630
        %v2635 = vsub.f32 %v2631, %v2633
        %v2636 = vsub.f32 %v2632, %v2634
        %v2637 = vld [vmem:[%s3] sm:$0xff]
        %v2638 = vld [vmem:[%s3 + $0x8] sm:$0xff]
        %v2639 = vadd.f32 %v2635, 1e-05
        %v2640 = vadd.f32 %v2636, 1e-05
        %v2641 = vrsqrt.pop %v2639
        %v2642 = vrsqrt.pop %v2640
        %v2643 = vmul.f32 %v2637, %v2641
        %v2644 = vmul.f32 %v2638, %v2642
        %v2645 = vld [vmem:[%s4] sm:$0xff]
        %v2646 = vld [vmem:[%s4 + $0x8] sm:$0xff]
        %v2647 = vmul.f32 %v2629, %v2643
        %v2648 = vmul.f32 %v2630, %v2644
        %v2649 = vsub.f32 %v2645, %v2647
        %v2650 = vsub.f32 %v2646, %v2648
        %2652 = vset.pattern.permute.xlu0 0
        %2653 = vperm.xlu0 %2652, %v2643
        %v2654 = vpop.permute.xlu0 %2653
        %2657 = vset.pattern.permute.xlu0 0
        %2658 = vperm.xlu0 %2657, %v2644
        %v2659 = vpop.permute.xlu0 %2658
        %v2661 = vmul.f32 %v2405, %v2654
        %v2662 = vmul.f32 %v2406, %v2654
        %v2663 = vmul.f32 %v2407, %v2654
        %v2664 = vmul.f32 %v2408, %v2654
        %v2665 = vmul.f32 %v2409, %v2659
        %v2666 = vmul.f32 %v2410, %v2659
        %v2667 = vmul.f32 %v2411, %v2659
        %v2668 = vmul.f32 %v2412, %v2659
        %2670 = vset.pattern.permute.xlu0 0
        %2671 = vperm.xlu0 %2670, %v2649
        %v2672 = vpop.permute.xlu0 %2671
        %2675 = vset.pattern.permute.xlu0 0
        %2676 = vperm.xlu0 %2675, %v2650
        %v2677 = vpop.permute.xlu0 %2676
        %v2679 = vadd.f32 %v2661, %v2672
        %v2680 = vadd.f32 %v2662, %v2672
        %v2681 = vadd.f32 %v2663, %v2672
        %v2682 = vadd.f32 %v2664, %v2672
        %v2683 = vadd.f32 %v2665, %v2677
        %v2684 = vadd.f32 %v2666, %v2677
        %v2685 = vadd.f32 %v2667, %v2677
        %v2686 = vadd.f32 %v2668, %v2677
        %2687 = vst [vmem:[%s294] sm:$0xff] %v2679
        %2688 = vst [vmem:[%s294 + $0x8] sm:$0xff] %v2680
        %2689 = vst [vmem:[%s294 + $0x10] sm:$0xff] %v2681
        %2690 = vst [vmem:[%s294 + $0x18] sm:$0xff] %v2682
        %2691 = vst [vmem:[%s294 + $0x20] sm:$0xff] %v2683
        %2692 = vst [vmem:[%s294 + $0x28] sm:$0xff] %v2684
        %2693 = vst [vmem:[%s294 + $0x30] sm:$0xff] %v2685
        %2694 = vst [vmem:[%s294 + $0x38] sm:$0xff] %v2686
        %s2695 = sand.u32 %s184, 1
        %s2696 = scalar_lea.sflag [#allocation5], %s2695
        %s2697 = sand.u32 %s184, 1
        %s2698 = smul.addr %s2697, 64
        %s2699 = scalar_lea.vmem [#allocation6], %s2698
        // Predicated region
        $region53: #{tpu_custom_call.1} parent=47 // pred_check
          %p2700 = pneg %p194
        $region54: #{tpu_custom_call.1} parent=47 // pred_check_branch
          %2702 = sbr.rel (%p2700) target = $region56
        $region55: #{tpu_custom_call.1} parent=47 // pred_region
          %s2704 = ssub.s32 1024, 1024
          %2705 = vsyncadd %s2696, %s2704
          %s2706 = smul.addr %s24, 8
          %s2707 = smul.addr %s2706, 128
          %s2708 = scalar_lea.hbm %s7, %s2707
          %s2709 = sshll.u32 %s2699, 4
          %s2710 = int_to_ptr.vmem [resolvable:$true] %s2709
          %2715 = dma.vmem_to_hbm [thread:$0]  %s2710, 1024, %s2708, %s2696, 512, 512, 32
        $region56: #{tpu_custom_call.1} parent=47 // pred_fallthru
          _
      $region48: #{tpu_custom_call.1} parent=5 // pred_fallthru
        _
      %p2716 = scmp.le.s32.totalorder 2, %s19
      // Predicated region
      $region57: #{tpu_custom_call.1} parent=5 // pred_check
        %p2717 = pneg %p2716
      $region58: #{tpu_custom_call.1} parent=5 // pred_check_branch
        %2719 = sbr.rel (%p2717) target = $region60
      $region59: #{tpu_custom_call.1} parent=5 // pred_region
        %s2720 = ssub.s32 %s19, 2
        // Predicated region
        $region61: #{tpu_custom_call.1} parent=59 // pred_check
          %p2721 = pneg %p200
        $region62: #{tpu_custom_call.1} parent=59 // pred_check_branch
          %2723 = sbr.rel (%p2721) target = $region64
        $region63: #{tpu_custom_call.1} parent=59 // pred_region
          %s2724 = sand.u32 %s185, 1
          %s2725 = scalar_lea.sflag [#allocation5], %s2724
          %s2726 = sand.u32 %s185, 1
          %s2727 = smul.addr %s2726, 64
          %s2728 = scalar_lea.vmem [#allocation6], %s2727
          %2729 = dma.done %s2725, 1024
        $region64: #{tpu_custom_call.1} parent=59 // pred_fallthru
          _
      $region60: #{tpu_custom_call.1} parent=5 // pred_fallthru
        _
    $region6: #{tpu_custom_call.1} parent=1 // loop_footer
      %s23 = sadd.s32 1, %s19
    $region7: #{tpu_custom_call.1} parent=1 // loop_footer_branch
      %18 = sbr.rel target = $region3
    $region8: #{tpu_custom_call.1} parent=1 // loop_exit
      _
    %2730 = vsyncpa [#allocation4], 1
    %s2731 = scalar_lea.sflag [#allocation4], 1
    %2732 = vsyncpa %s2731, 1
    %2733 = vsyncpa [#allocation5], 1
    %s2734 = scalar_lea.sflag [#allocation5], 1
    %2735 = vsyncpa %s2734, 1

</llo_original>
